<compile_context>
chip_gen: v7x
topology: tpu7x:2x2x1
jax: 0.10.0
libtpu: 0.0.40
codegen_flags: <defaults>
</compile_context>

<pallas_src>
import jax
import jax.numpy as jnp
from jax.experimental import pallas as pl
from jax.experimental.pallas import tpu as pltpu


def _round_up(x, m):
    return (x + m - 1) // m * m


# ---------------------------------------------------------------------------
# One-time weight preparation (outside the kernels)
# ---------------------------------------------------------------------------
def _banded_spectral_weight(w, band_in):
    """PyTorch Conv3d weight (Cout, Cin, k1, k2, k3) -> per-spatial-tap banded
    matrices (k1*k2, band_in*Cin, band_out*Cout) mapping activation columns
    (band_in, cin) -> (band_out, cout), band-major / channel-minor."""
    cout, cin, k1, k2, k3 = w.shape
    band_out = band_in - k3 + 1
    wp = jnp.transpose(w, (2, 3, 4, 1, 0))                  # (k1,k2,k3,Cin,Cout)
    full = jnp.zeros((k1, k2, band_out, band_in, cin, cout), w.dtype)
    for bo in range(band_out):
        full = full.at[:, :, bo, bo:bo + k3, :, :].set(wp)
    full = jnp.transpose(full, (0, 1, 3, 4, 2, 5))          # (k1,k2,Bin,Cin,Bout,Cout)
    return full.reshape(k1 * k2, band_in * cin, band_out * cout)


def prepare_kernel_params(params, band):
    d3 = band - 12
    return {
        "w1b": _banded_spectral_weight(params["w1"], band).astype(jnp.bfloat16),
        "w2b": _banded_spectral_weight(params["w2"], band - 6).astype(jnp.bfloat16),
        "w3b": _banded_spectral_weight(params["w3"], band - 10)[0].astype(jnp.bfloat16),
        "w4m": params["w4"].reshape(64, d3 * 32).T.astype(jnp.bfloat16),
        "b1r": jnp.tile(params["b1"], band - 6)[None, :].astype(jnp.float32),
        "b2r": jnp.tile(params["b2"], band - 10)[None, :].astype(jnp.float32),
        "b3r": jnp.tile(params["b3"], d3)[None, :].astype(jnp.float32),
        "b4r": params["b4"][None, :].astype(jnp.float32),
    }


# ---------------------------------------------------------------------------
# Kernel 1: fused conv1 -> conv2 -> conv3 (bias + ReLU), one sample per grid step
# ---------------------------------------------------------------------------
def _make_fused_conv123_kernel(m_rows, w0, k1, k2):
    taps = [(i, j) for i in range(k1) for j in range(k2)]

    def kernel(x_ref, w1_ref, w2_ref, w3_ref, b1_ref, b2_ref, b3_ref,
               o_ref, act1_ref):
        mpad, c1 = act1_ref.shape
        x2d = x_ref[0]                                       # (MPAD, Band) f32

        # conv1: 3x3 spatial taps x banded spectral matmuls (bf16 MXU, f32 acc)
        acc = jnp.zeros((m_rows, c1), jnp.float32)
        for t, (i, j) in enumerate(taps):
            off = i * w0 + j
            a = x2d[off:off + m_rows, :].astype(jnp.bfloat16)
            acc = acc + jnp.dot(a, w1_ref[t], preferred_element_type=jnp.float32)
        act1_ref[0:m_rows, :] = jnp.maximum(acc + b1_ref[...], 0.0)
        act1_ref[m_rows:mpad, :] = jnp.zeros((mpad - m_rows, c1), jnp.float32)

        # conv2: same structure, reading row-shifted slices of the VMEM scratch
        c2 = w2_ref.shape[2]
        acc = jnp.zeros((m_rows, c2), jnp.float32)
        for t, (i, j) in enumerate(taps):
            off = i * w0 + j
            a = act1_ref[off:off + m_rows, :].astype(jnp.bfloat16)
            acc = acc + jnp.dot(a, w2_ref[t], preferred_element_type=jnp.float32)
        a2 = jnp.maximum(acc + b2_ref[...], 0.0)

        # conv3: (1,1,3) kernel -> purely spectral -> a single banded matmul
        acc = jnp.dot(a2.astype(jnp.bfloat16), w3_ref[...],
                      preferred_element_type=jnp.float32)
        o_ref[0] = jnp.maximum(acc + b3_ref[...], 0.0).astype(o_ref.dtype)

    return kernel


def fused_conv123(xp, w1b, w2b, w3b, b1r, b2r, b3r, m_rows, w0):
    n, mpad, band = xp.shape
    c1 = w1b.shape[2]
    c3 = w3b.shape[1]
    kernel = _make_fused_conv123_kernel(m_rows, w0, 3, 3)
    return pl.pallas_call(
        kernel,
        out_shape=jax.ShapeDtypeStruct((n, m_rows, c3), jnp.float32),
        grid=(n,),
        in_specs=[
            pl.BlockSpec((1, mpad, band), lambda b: (b, 0, 0)),
            pl.BlockSpec(w1b.shape, lambda b: (0, 0, 0)),
            pl.BlockSpec(w2b.shape, lambda b: (0, 0, 0)),
            pl.BlockSpec(w3b.shape, lambda b: (0, 0)),
            pl.BlockSpec(b1r.shape, lambda b: (0, 0)),
            pl.BlockSpec(b2r.shape, lambda b: (0, 0)),
            pl.BlockSpec(b3r.shape, lambda b: (0, 0)),
        ],
        out_specs=pl.BlockSpec((1, m_rows, c3), lambda b: (b, 0, 0)),
        scratch_shapes=[pltpu.VMEM((mpad, c1), jnp.float32)],
        compiler_params=pltpu.CompilerParams(
            dimension_semantics=("parallel",),
            vmem_limit_bytes=32 * 1024 * 1024),
    )(xp, w1b, w2b, w3b, b1r, b2r, b3r)


# ---------------------------------------------------------------------------
# Kernel 2: M-tiled matmul + bias + ReLU (conv4, 1x1)
# ---------------------------------------------------------------------------
def _matmul_bias_relu_kernel(a_ref, w_ref, b_ref, o_ref):
    acc = jnp.dot(a_ref[...].astype(jnp.bfloat16), w_ref[...],
                  preferred_element_type=jnp.float32)
    o_ref[...] = jnp.maximum(acc + b_ref[...], 0.0).astype(o_ref.dtype)


def matmul_bias_relu(a, w_bf16, b_row, tile_m=256):
    m, k = a.shape
    c = w_bf16.shape[1]
    if m <= tile_m:
        mp = _round_up(m, 8)
        tm = mp
    else:
        mp = _round_up(m, tile_m)
        tm = tile_m
    if mp != m:
        a = jnp.pad(a, ((0, mp - m), (0, 0)))
    out = pl.pallas_call(
        _matmul_bias_relu_kernel,
        out_shape=jax.ShapeDtypeStruct((mp, c), jnp.float32),
        grid=(mp // tm,),
        in_specs=[
            pl.BlockSpec((tm, k), lambda i: (i, 0)),
            pl.BlockSpec((k, c), lambda i: (0, 0)),
            pl.BlockSpec((1, c), lambda i: (0, 0)),
        ],
        out_specs=pl.BlockSpec((tm, c), lambda i: (i, 0)),
        compiler_params=pltpu.CompilerParams(
            dimension_semantics=("parallel",),
            vmem_limit_bytes=32 * 1024 * 1024),
    )(a.astype(jnp.float32), w_bf16, b_row)
    return out[:m]


# ---------------------------------------------------------------------------
# HYSN forward
# ---------------------------------------------------------------------------
def hysn_forward(X, kp):
    n, cin, h, w, band = X.shape
    assert cin == 1 and band > 12
    m = h * w
    mpad = _round_up(m + 2 * w + 2, 8)       # room for the max (2,2) spatial shift
    x2d = X.reshape(n, m, band).astype(jnp.float32)
    xp = jnp.pad(x2d, ((0, 0), (0, mpad - m), (0, 0)))

    # conv1..conv3 fused; rows cover the FULL h x w grid (only the top-left
    # (h-4) x (w-4) block is valid conv output), cols = band*32 + c.
    y3 = fused_conv123(xp, kp["w1b"], kp["w2b"], kp["w3b"],
                       kp["b1r"], kp["b2r"], kp["b3r"], m, w)

    d3 = band - 12
    h2, w2 = h - 4, w - 4
    x5 = y3.reshape(n, h, w, d3, 32)[:, :h2, :w2]            # (N,h2,w2,d3,32)
    x5 = jnp.transpose(x5, (0, 4, 1, 2, 3))                  # (N,32,h2,w2,d3)
    # Exact reproduction of PyTorch x.view(N, C*D3, D1, D2): raw row-major reshape.
    xv = x5.reshape(n, 32 * d3, h2, w2)

    a4 = jnp.transpose(xv, (0, 2, 3, 1)).reshape(n * h2 * w2, 32 * d3)
    o4 = matmul_bias_relu(a4, kp["w4m"], kp["b4r"])          # (N*h2*w2, 64)
    out = o4.reshape(n, h2, w2, 64)
    return jnp.transpose(out, (0, 3, 1, 2))                  # (N, 64, h-4, w-4)


# ---------------------------------------------------------------------------
# Pure-JAX reference (independent of the banded-matrix formulation)
# ---------------------------------------------------------------------------
def reference_forward(X, params):
    dn3 = ("NCDHW", "OIDHW", "NCDHW")
    prec = jax.lax.Precision.HIGHEST
    x = jax.lax.conv_general_dilated(X, params["w1"], (1, 1, 1), "VALID",
                                     dimension_numbers=dn3, precision=prec)
    x = jax.nn.relu(x + params["b1"].reshape(1, -1, 1, 1, 1))
    x = jax.lax.conv_general_dilated(x, params["w2"], (1, 1, 1), "VALID",
                                     dimension_numbers=dn3, precision=prec)
    x = jax.nn.relu(x + params["b2"].reshape(1, -1, 1, 1, 1))
    x = jax.lax.conv_general_dilated(x, params["w3"], (1, 1, 1), "VALID",
                                     dimension_numbers=dn3, precision=prec)
    x = jax.nn.relu(x + params["b3"].reshape(1, -1, 1, 1, 1))
    n, c, d1, d2, d3 = x.shape
    x = x.reshape(n, c * d3, d1, d2)          # == PyTorch .view
    x = jax.lax.conv_general_dilated(x, params["w4"], (1, 1), "VALID",
                                     dimension_numbers=("NCHW", "OIHW", "NCHW"),
                                     precision=prec)
    return jax.nn.relu(x + params["b4"].reshape(1, -1, 1, 1))


# ---------------------------------------------------------------------------
# Deterministic parameter init (PyTorch-style uniform(-1/sqrt(fan_in), ...))
# ---------------------------------------------------------------------------
def init_params(key, band):
    ks = jax.random.split(key, 8)

    def uinit(k, shape, fan_in):
        bound = 1.0 / (fan_in ** 0.5)
        return jax.random.uniform(k, shape, jnp.float32, -bound, bound)

    return {
        "w1": uinit(ks[0], (8, 1, 3, 3, 7), 1 * 3 * 3 * 7),
        "b1": uinit(ks[1], (8,), 1 * 3 * 3 * 7),
        "w2": uinit(ks[2], (16, 8, 3, 3, 5), 8 * 3 * 3 * 5),
        "b2": uinit(ks[3], (16,), 8 * 3 * 3 * 5),
        "w3": uinit(ks[4], (32, 16, 1, 1, 3), 16 * 1 * 1 * 3),
        "b3": uinit(ks[5], (32,), 16 * 1 * 1 * 3),
        "w4": uinit(ks[6], (64, (band - 12) * 32, 1, 1), (band - 12) * 32),
        "b4": uinit(ks[7], (64,), (band - 12) * 32),
    }


if __name__ == "__main__":
    band = 16            # spectral bands (must be > 12)
    N, H, W = 2, 9, 9    # batch, spatial patch

    root = jax.random.PRNGKey(0)
    pkey, xkey = jax.random.split(root)
    params = init_params(pkey, band)
    X = jax.random.normal(xkey, (N, 1, H, W, band), jnp.float32)

    kp = prepare_kernel_params(params, band)
    out = jax.jit(hysn_forward)(X, kp)
    out = jax.block_until_ready(out)

    ref = reference_forward(X, params)

    assert out.shape == (N, 64, H - 4, W - 4), out.shape
    assert bool(jnp.isfinite(out).all()) and bool(jnp.all(out >= 0.0))
    assert bool(jnp.allclose(out, ref, rtol=5e-2, atol=5e-3)), \
        float(jnp.max(jnp.abs(out - ref)))
    print("KERNEL_OK")
</pallas_src>

<mosaic_0001>
module attributes {stable_mosaic.version = 11 : i64} {
  func.func @kernel(%arg0: i32, %arg1: memref<1x104x16xf32, #tpu.memory_space<vmem>>, %arg2: memref<9x16x80xbf16, #tpu.memory_space<vmem>>, %arg3: memref<9x80x96xbf16, #tpu.memory_space<vmem>>, %arg4: memref<96x128xbf16, #tpu.memory_space<vmem>>, %arg5: memref<1x80xf32, #tpu.memory_space<vmem>>, %arg6: memref<1x96xf32, #tpu.memory_space<vmem>>, %arg7: memref<1x128xf32, #tpu.memory_space<vmem>>, %arg8: memref<1x81x128xf32, #tpu.memory_space<vmem>>, %arg9: memref<104x80xf32, #tpu.memory_space<vmem>>) attributes {dimension_semantics = [#tpu.dimension_semantics<parallel>], iteration_bounds = array<i64: 2>, scalar_prefetch = 0 : i64, scratch_operands = 1 : i64, tpu.core_type = #tpu.core_type<tc>, window_params = [{transform_indices = @transform_0, window_bounds = array<i64: 1, 104, 16>}, {pipeline_mode = #tpu.pipeline_mode<synchronous>, transform_indices = @transform_1, window_bounds = array<i64: 9, 16, 80>}, {pipeline_mode = #tpu.pipeline_mode<synchronous>, transform_indices = @transform_2, window_bounds = array<i64: 9, 80, 96>}, {pipeline_mode = #tpu.pipeline_mode<synchronous>, transform_indices = @transform_3, window_bounds = array<i64: 96, 128>}, {pipeline_mode = #tpu.pipeline_mode<synchronous>, transform_indices = @transform_4, window_bounds = array<i64: 1, 80>}, {pipeline_mode = #tpu.pipeline_mode<synchronous>, transform_indices = @transform_5, window_bounds = array<i64: 1, 96>}, {pipeline_mode = #tpu.pipeline_mode<synchronous>, transform_indices = @transform_6, window_bounds = array<i64: 1, 128>}, {transform_indices = @transform_7, window_bounds = array<i64: 1, 81, 128>}]} {
    %c0 = arith.constant 0 : index
    %c0_0 = arith.constant 0 : index
    %c0_1 = arith.constant 0 : index
    %0 = vector.load %arg1[%c0, %c0_0, %c0_1] : memref<1x104x16xf32, #tpu.memory_space<vmem>>, vector<1x104x16xf32>
    %1 = vector.shape_cast %0 : vector<1x104x16xf32> to vector<104x16xf32>
    %cst = arith.constant 0.000000e+00 : f32
    %2 = vector.broadcast %cst : f32 to vector<81x80xf32>
    %3 = vector.extract_strided_slice %1 {offsets = [0, 0], sizes = [81, 16], strides = [1, 1]} : vector<104x16xf32> to vector<81x16xf32>
    %4 = arith.truncf %3 : vector<81x16xf32> to vector<81x16xbf16>
    %c0_2 = arith.constant 0 : index
    %c0_3 = arith.constant 0 : index
    %c0_4 = arith.constant 0 : index
    %5 = vector.load %arg2[%c0_2, %c0_3, %c0_4] : memref<9x16x80xbf16, #tpu.memory_space<vmem>>, vector<1x16x80xbf16>
    %6 = vector.shape_cast %5 : vector<1x16x80xbf16> to vector<16x80xbf16>
    %cst_5 = arith.constant dense<0.000000e+00> : vector<81x80xf32>
    %7 = tpu.matmul %4, %6, %cst_5 {dimension_numbers = #tpu.dot_dimension_numbers<[1], [0], [0], [1], [0, 0, 1, 1], [], []>} : vector<81x16xbf16>, vector<16x80xbf16>, vector<81x80xf32> -> vector<81x80xf32>
    %8 = arith.addf %2, %7 : vector<81x80xf32>
    %9 = vector.extract_strided_slice %1 {offsets = [1, 0], sizes = [81, 16], strides = [1, 1]} : vector<104x16xf32> to vector<81x16xf32>
    %10 = arith.truncf %9 : vector<81x16xf32> to vector<81x16xbf16>
    %c1 = arith.constant 1 : index
    %c0_6 = arith.constant 0 : index
    %c0_7 = arith.constant 0 : index
    %11 = vector.load %arg2[%c1, %c0_6, %c0_7] : memref<9x16x80xbf16, #tpu.memory_space<vmem>>, vector<1x16x80xbf16>
    %12 = vector.shape_cast %11 : vector<1x16x80xbf16> to vector<16x80xbf16>
    %cst_8 = arith.constant dense<0.000000e+00> : vector<81x80xf32>
    %13 = tpu.matmul %10, %12, %cst_8 {dimension_numbers = #tpu.dot_dimension_numbers<[1], [0], [0], [1], [0, 0, 1, 1], [], []>} : vector<81x16xbf16>, vector<16x80xbf16>, vector<81x80xf32> -> vector<81x80xf32>
    %14 = arith.addf %8, %13 : vector<81x80xf32>
    %15 = vector.extract_strided_slice %1 {offsets = [2, 0], sizes = [81, 16], strides = [1, 1]} : vector<104x16xf32> to vector<81x16xf32>
    %16 = arith.truncf %15 : vector<81x16xf32> to vector<81x16xbf16>
    %c2 = arith.constant 2 : index
    %c0_9 = arith.constant 0 : index
    %c0_10 = arith.constant 0 : index
    %17 = vector.load %arg2[%c2, %c0_9, %c0_10] : memref<9x16x80xbf16, #tpu.memory_space<vmem>>, vector<1x16x80xbf16>
    %18 = vector.shape_cast %17 : vector<1x16x80xbf16> to vector<16x80xbf16>
    %cst_11 = arith.constant dense<0.000000e+00> : vector<81x80xf32>
    %19 = tpu.matmul %16, %18, %cst_11 {dimension_numbers = #tpu.dot_dimension_numbers<[1], [0], [0], [1], [0, 0, 1, 1], [], []>} : vector<81x16xbf16>, vector<16x80xbf16>, vector<81x80xf32> -> vector<81x80xf32>
    %20 = arith.addf %14, %19 : vector<81x80xf32>
    %21 = vector.extract_strided_slice %1 {offsets = [9, 0], sizes = [81, 16], strides = [1, 1]} : vector<104x16xf32> to vector<81x16xf32>
    %22 = arith.truncf %21 : vector<81x16xf32> to vector<81x16xbf16>
    %c3 = arith.constant 3 : index
    %c0_12 = arith.constant 0 : index
    %c0_13 = arith.constant 0 : index
    %23 = vector.load %arg2[%c3, %c0_12, %c0_13] : memref<9x16x80xbf16, #tpu.memory_space<vmem>>, vector<1x16x80xbf16>
    %24 = vector.shape_cast %23 : vector<1x16x80xbf16> to vector<16x80xbf16>
    %cst_14 = arith.constant dense<0.000000e+00> : vector<81x80xf32>
    %25 = tpu.matmul %22, %24, %cst_14 {dimension_numbers = #tpu.dot_dimension_numbers<[1], [0], [0], [1], [0, 0, 1, 1], [], []>} : vector<81x16xbf16>, vector<16x80xbf16>, vector<81x80xf32> -> vector<81x80xf32>
    %26 = arith.addf %20, %25 : vector<81x80xf32>
    %27 = vector.extract_strided_slice %1 {offsets = [10, 0], sizes = [81, 16], strides = [1, 1]} : vector<104x16xf32> to vector<81x16xf32>
    %28 = arith.truncf %27 : vector<81x16xf32> to vector<81x16xbf16>
    %c4 = arith.constant 4 : index
    %c0_15 = arith.constant 0 : index
    %c0_16 = arith.constant 0 : index
    %29 = vector.load %arg2[%c4, %c0_15, %c0_16] : memref<9x16x80xbf16, #tpu.memory_space<vmem>>, vector<1x16x80xbf16>
    %30 = vector.shape_cast %29 : vector<1x16x80xbf16> to vector<16x80xbf16>
    %cst_17 = arith.constant dense<0.000000e+00> : vector<81x80xf32>
    %31 = tpu.matmul %28, %30, %cst_17 {dimension_numbers = #tpu.dot_dimension_numbers<[1], [0], [0], [1], [0, 0, 1, 1], [], []>} : vector<81x16xbf16>, vector<16x80xbf16>, vector<81x80xf32> -> vector<81x80xf32>
    %32 = arith.addf %26, %31 : vector<81x80xf32>
    %33 = vector.extract_strided_slice %1 {offsets = [11, 0], sizes = [81, 16], strides = [1, 1]} : vector<104x16xf32> to vector<81x16xf32>
    %34 = arith.truncf %33 : vector<81x16xf32> to vector<81x16xbf16>
    %c5 = arith.constant 5 : index
    %c0_18 = arith.constant 0 : index
    %c0_19 = arith.constant 0 : index
    %35 = vector.load %arg2[%c5, %c0_18, %c0_19] : memref<9x16x80xbf16, #tpu.memory_space<vmem>>, vector<1x16x80xbf16>
    %36 = vector.shape_cast %35 : vector<1x16x80xbf16> to vector<16x80xbf16>
    %cst_20 = arith.constant dense<0.000000e+00> : vector<81x80xf32>
    %37 = tpu.matmul %34, %36, %cst_20 {dimension_numbers = #tpu.dot_dimension_numbers<[1], [0], [0], [1], [0, 0, 1, 1], [], []>} : vector<81x16xbf16>, vector<16x80xbf16>, vector<81x80xf32> -> vector<81x80xf32>
    %38 = arith.addf %32, %37 : vector<81x80xf32>
    %39 = vector.extract_strided_slice %1 {offsets = [18, 0], sizes = [81, 16], strides = [1, 1]} : vector<104x16xf32> to vector<81x16xf32>
    %40 = arith.truncf %39 : vector<81x16xf32> to vector<81x16xbf16>
    %c6 = arith.constant 6 : index
    %c0_21 = arith.constant 0 : index
    %c0_22 = arith.constant 0 : index
    %41 = vector.load %arg2[%c6, %c0_21, %c0_22] : memref<9x16x80xbf16, #tpu.memory_space<vmem>>, vector<1x16x80xbf16>
    %42 = vector.shape_cast %41 : vector<1x16x80xbf16> to vector<16x80xbf16>
    %cst_23 = arith.constant dense<0.000000e+00> : vector<81x80xf32>
    %43 = tpu.matmul %40, %42, %cst_23 {dimension_numbers = #tpu.dot_dimension_numbers<[1], [0], [0], [1], [0, 0, 1, 1], [], []>} : vector<81x16xbf16>, vector<16x80xbf16>, vector<81x80xf32> -> vector<81x80xf32>
    %44 = arith.addf %38, %43 : vector<81x80xf32>
    %45 = vector.extract_strided_slice %1 {offsets = [19, 0], sizes = [81, 16], strides = [1, 1]} : vector<104x16xf32> to vector<81x16xf32>
    %46 = arith.truncf %45 : vector<81x16xf32> to vector<81x16xbf16>
    %c7 = arith.constant 7 : index
    %c0_24 = arith.constant 0 : index
    %c0_25 = arith.constant 0 : index
    %47 = vector.load %arg2[%c7, %c0_24, %c0_25] : memref<9x16x80xbf16, #tpu.memory_space<vmem>>, vector<1x16x80xbf16>
    %48 = vector.shape_cast %47 : vector<1x16x80xbf16> to vector<16x80xbf16>
    %cst_26 = arith.constant dense<0.000000e+00> : vector<81x80xf32>
    %49 = tpu.matmul %46, %48, %cst_26 {dimension_numbers = #tpu.dot_dimension_numbers<[1], [0], [0], [1], [0, 0, 1, 1], [], []>} : vector<81x16xbf16>, vector<16x80xbf16>, vector<81x80xf32> -> vector<81x80xf32>
    %50 = arith.addf %44, %49 : vector<81x80xf32>
    %51 = vector.extract_strided_slice %1 {offsets = [20, 0], sizes = [81, 16], strides = [1, 1]} : vector<104x16xf32> to vector<81x16xf32>
    %52 = arith.truncf %51 : vector<81x16xf32> to vector<81x16xbf16>
    %c8 = arith.constant 8 : index
    %c0_27 = arith.constant 0 : index
    %c0_28 = arith.constant 0 : index
    %53 = vector.load %arg2[%c8, %c0_27, %c0_28] : memref<9x16x80xbf16, #tpu.memory_space<vmem>>, vector<1x16x80xbf16>
    %54 = vector.shape_cast %53 : vector<1x16x80xbf16> to vector<16x80xbf16>
    %cst_29 = arith.constant dense<0.000000e+00> : vector<81x80xf32>
    %55 = tpu.matmul %52, %54, %cst_29 {dimension_numbers = #tpu.dot_dimension_numbers<[1], [0], [0], [1], [0, 0, 1, 1], [], []>} : vector<81x16xbf16>, vector<16x80xbf16>, vector<81x80xf32> -> vector<81x80xf32>
    %56 = arith.addf %50, %55 : vector<81x80xf32>
    %c0_30 = arith.constant 0 : index
    %c0_31 = arith.constant 0 : index
    %57 = vector.load %arg5[%c0_30, %c0_31] : memref<1x80xf32, #tpu.memory_space<vmem>>, vector<1x80xf32>
    %58 = vector.broadcast %57 : vector<1x80xf32> to vector<81x80xf32>
    %59 = arith.addf %56, %58 : vector<81x80xf32>
    %cst_32 = arith.constant 0.000000e+00 : f32
    %60 = vector.broadcast %cst_32 : f32 to vector<81x80xf32>
    %61 = arith.maximumf %59, %60 : vector<81x80xf32>
    %c0_33 = arith.constant 0 : index
    %c0_34 = arith.constant 0 : index
    %62 = vector.load %arg9[%c0_33, %c0_34] : memref<104x80xf32, #tpu.memory_space<vmem>>, vector<81x80xf32>
    tpu.vector_store %arg9[%c0_33, %c0_34], %61 {strides = array<i32>} : memref<104x80xf32, #tpu.memory_space<vmem>>, vector<81x80xf32>,
    %cst_35 = arith.constant 0.000000e+00 : f32
    %63 = vector.broadcast %cst_35 : f32 to vector<23x80xf32>
    %c81 = arith.constant 81 : index
    %c0_36 = arith.constant 0 : index
    %64 = vector.load %arg9[%c81, %c0_36] : memref<104x80xf32, #tpu.memory_space<vmem>>, vector<23x80xf32>
    tpu.vector_store %arg9[%c81, %c0_36], %63 {strides = array<i32>} : memref<104x80xf32, #tpu.memory_space<vmem>>, vector<23x80xf32>,
    %cst_37 = arith.constant 0.000000e+00 : f32
    %65 = vector.broadcast %cst_37 : f32 to vector<81x96xf32>
    %c0_38 = arith.constant 0 : index
    %c0_39 = arith.constant 0 : index
    %66 = vector.load %arg9[%c0_38, %c0_39] : memref<104x80xf32, #tpu.memory_space<vmem>>, vector<81x80xf32>
    %67 = arith.truncf %66 : vector<81x80xf32> to vector<81x80xbf16>
    %c0_40 = arith.constant 0 : index
    %c0_41 = arith.constant 0 : index
    %c0_42 = arith.constant 0 : index
    %68 = vector.load %arg3[%c0_40, %c0_41, %c0_42] : memref<9x80x96xbf16, #tpu.memory_space<vmem>>, vector<1x80x96xbf16>
    %69 = vector.shape_cast %68 : vector<1x80x96xbf16> to vector<80x96xbf16>
    %cst_43 = arith.constant dense<0.000000e+00> : vector<81x96xf32>
    %70 = tpu.matmul %67, %69, %cst_43 {dimension_numbers = #tpu.dot_dimension_numbers<[1], [0], [0], [1], [0, 0, 1, 1], [], []>} : vector<81x80xbf16>, vector<80x96xbf16>, vector<81x96xf32> -> vector<81x96xf32>
    %71 = arith.addf %65, %70 : vector<81x96xf32>
    %c1_44 = arith.constant 1 : index
    %c0_45 = arith.constant 0 : index
    %72 = vector.load %arg9[%c1_44, %c0_45] : memref<104x80xf32, #tpu.memory_space<vmem>>, vector<81x80xf32>
    %73 = arith.truncf %72 : vector<81x80xf32> to vector<81x80xbf16>
    %c1_46 = arith.constant 1 : index
    %c0_47 = arith.constant 0 : index
    %c0_48 = arith.constant 0 : index
    %74 = vector.load %arg3[%c1_46, %c0_47, %c0_48] : memref<9x80x96xbf16, #tpu.memory_space<vmem>>, vector<1x80x96xbf16>
    %75 = vector.shape_cast %74 : vector<1x80x96xbf16> to vector<80x96xbf16>
    %cst_49 = arith.constant dense<0.000000e+00> : vector<81x96xf32>
    %76 = tpu.matmul %73, %75, %cst_49 {dimension_numbers = #tpu.dot_dimension_numbers<[1], [0], [0], [1], [0, 0, 1, 1], [], []>} : vector<81x80xbf16>, vector<80x96xbf16>, vector<81x96xf32> -> vector<81x96xf32>
    %77 = arith.addf %71, %76 : vector<81x96xf32>
    %c2_50 = arith.constant 2 : index
    %c0_51 = arith.constant 0 : index
    %78 = vector.load %arg9[%c2_50, %c0_51] : memref<104x80xf32, #tpu.memory_space<vmem>>, vector<81x80xf32>
    %79 = arith.truncf %78 : vector<81x80xf32> to vector<81x80xbf16>
    %c2_52 = arith.constant 2 : index
    %c0_53 = arith.constant 0 : index
    %c0_54 = arith.constant 0 : index
    %80 = vector.load %arg3[%c2_52, %c0_53, %c0_54] : memref<9x80x96xbf16, #tpu.memory_space<vmem>>, vector<1x80x96xbf16>
    %81 = vector.shape_cast %80 : vector<1x80x96xbf16> to vector<80x96xbf16>
    %cst_55 = arith.constant dense<0.000000e+00> : vector<81x96xf32>
    %82 = tpu.matmul %79, %81, %cst_55 {dimension_numbers = #tpu.dot_dimension_numbers<[1], [0], [0], [1], [0, 0, 1, 1], [], []>} : vector<81x80xbf16>, vector<80x96xbf16>, vector<81x96xf32> -> vector<81x96xf32>
    %83 = arith.addf %77, %82 : vector<81x96xf32>
    %c9 = arith.constant 9 : index
    %c0_56 = arith.constant 0 : index
    %84 = vector.load %arg9[%c9, %c0_56] : memref<104x80xf32, #tpu.memory_space<vmem>>, vector<81x80xf32>
    %85 = arith.truncf %84 : vector<81x80xf32> to vector<81x80xbf16>
    %c3_57 = arith.constant 3 : index
    %c0_58 = arith.constant 0 : index
    %c0_59 = arith.constant 0 : index
    %86 = vector.load %arg3[%c3_57, %c0_58, %c0_59] : memref<9x80x96xbf16, #tpu.memory_space<vmem>>, vector<1x80x96xbf16>
    %87 = vector.shape_cast %86 : vector<1x80x96xbf16> to vector<80x96xbf16>
    %cst_60 = arith.constant dense<0.000000e+00> : vector<81x96xf32>
    %88 = tpu.matmul %85, %87, %cst_60 {dimension_numbers = #tpu.dot_dimension_numbers<[1], [0], [0], [1], [0, 0, 1, 1], [], []>} : vector<81x80xbf16>, vector<80x96xbf16>, vector<81x96xf32> -> vector<81x96xf32>
    %89 = arith.addf %83, %88 : vector<81x96xf32>
    %c10 = arith.constant 10 : index
    %c0_61 = arith.constant 0 : index
    %90 = vector.load %arg9[%c10, %c0_61] : memref<104x80xf32, #tpu.memory_space<vmem>>, vector<81x80xf32>
    %91 = arith.truncf %90 : vector<81x80xf32> to vector<81x80xbf16>
    %c4_62 = arith.constant 4 : index
    %c0_63 = arith.constant 0 : index
    %c0_64 = arith.constant 0 : index
    %92 = vector.load %arg3[%c4_62, %c0_63, %c0_64] : memref<9x80x96xbf16, #tpu.memory_space<vmem>>, vector<1x80x96xbf16>
    %93 = vector.shape_cast %92 : vector<1x80x96xbf16> to vector<80x96xbf16>
    %cst_65 = arith.constant dense<0.000000e+00> : vector<81x96xf32>
    %94 = tpu.matmul %91, %93, %cst_65 {dimension_numbers = #tpu.dot_dimension_numbers<[1], [0], [0], [1], [0, 0, 1, 1], [], []>} : vector<81x80xbf16>, vector<80x96xbf16>, vector<81x96xf32> -> vector<81x96xf32>
    %95 = arith.addf %89, %94 : vector<81x96xf32>
    %c11 = arith.constant 11 : index
    %c0_66 = arith.constant 0 : index
    %96 = vector.load %arg9[%c11, %c0_66] : memref<104x80xf32, #tpu.memory_space<vmem>>, vector<81x80xf32>
    %97 = arith.truncf %96 : vector<81x80xf32> to vector<81x80xbf16>
    %c5_67 = arith.constant 5 : index
    %c0_68 = arith.constant 0 : index
    %c0_69 = arith.constant 0 : index
    %98 = vector.load %arg3[%c5_67, %c0_68, %c0_69] : memref<9x80x96xbf16, #tpu.memory_space<vmem>>, vector<1x80x96xbf16>
    %99 = vector.shape_cast %98 : vector<1x80x96xbf16> to vector<80x96xbf16>
    %cst_70 = arith.constant dense<0.000000e+00> : vector<81x96xf32>
    %100 = tpu.matmul %97, %99, %cst_70 {dimension_numbers = #tpu.dot_dimension_numbers<[1], [0], [0], [1], [0, 0, 1, 1], [], []>} : vector<81x80xbf16>, vector<80x96xbf16>, vector<81x96xf32> -> vector<81x96xf32>
    %101 = arith.addf %95, %100 : vector<81x96xf32>
    %c18 = arith.constant 18 : index
    %c0_71 = arith.constant 0 : index
    %102 = vector.load %arg9[%c18, %c0_71] : memref<104x80xf32, #tpu.memory_space<vmem>>, vector<81x80xf32>
    %103 = arith.truncf %102 : vector<81x80xf32> to vector<81x80xbf16>
    %c6_72 = arith.constant 6 : index
    %c0_73 = arith.constant 0 : index
    %c0_74 = arith.constant 0 : index
    %104 = vector.load %arg3[%c6_72, %c0_73, %c0_74] : memref<9x80x96xbf16, #tpu.memory_space<vmem>>, vector<1x80x96xbf16>
    %105 = vector.shape_cast %104 : vector<1x80x96xbf16> to vector<80x96xbf16>
    %cst_75 = arith.constant dense<0.000000e+00> : vector<81x96xf32>
    %106 = tpu.matmul %103, %105, %cst_75 {dimension_numbers = #tpu.dot_dimension_numbers<[1], [0], [0], [1], [0, 0, 1, 1], [], []>} : vector<81x80xbf16>, vector<80x96xbf16>, vector<81x96xf32> -> vector<81x96xf32>
    %107 = arith.addf %101, %106 : vector<81x96xf32>
    %c19 = arith.constant 19 : index
    %c0_76 = arith.constant 0 : index
    %108 = vector.load %arg9[%c19, %c0_76] : memref<104x80xf32, #tpu.memory_space<vmem>>, vector<81x80xf32>
    %109 = arith.truncf %108 : vector<81x80xf32> to vector<81x80xbf16>
    %c7_77 = arith.constant 7 : index
    %c0_78 = arith.constant 0 : index
    %c0_79 = arith.constant 0 : index
    %110 = vector.load %arg3[%c7_77, %c0_78, %c0_79] : memref<9x80x96xbf16, #tpu.memory_space<vmem>>, vector<1x80x96xbf16>
    %111 = vector.shape_cast %110 : vector<1x80x96xbf16> to vector<80x96xbf16>
    %cst_80 = arith.constant dense<0.000000e+00> : vector<81x96xf32>
    %112 = tpu.matmul %109, %111, %cst_80 {dimension_numbers = #tpu.dot_dimension_numbers<[1], [0], [0], [1], [0, 0, 1, 1], [], []>} : vector<81x80xbf16>, vector<80x96xbf16>, vector<81x96xf32> -> vector<81x96xf32>
    %113 = arith.addf %107, %112 : vector<81x96xf32>
    %c20 = arith.constant 20 : index
    %c0_81 = arith.constant 0 : index
    %114 = vector.load %arg9[%c20, %c0_81] : memref<104x80xf32, #tpu.memory_space<vmem>>, vector<81x80xf32>
    %115 = arith.truncf %114 : vector<81x80xf32> to vector<81x80xbf16>
    %c8_82 = arith.constant 8 : index
    %c0_83 = arith.constant 0 : index
    %c0_84 = arith.constant 0 : index
    %116 = vector.load %arg3[%c8_82, %c0_83, %c0_84] : memref<9x80x96xbf16, #tpu.memory_space<vmem>>, vector<1x80x96xbf16>
    %117 = vector.shape_cast %116 : vector<1x80x96xbf16> to vector<80x96xbf16>
    %cst_85 = arith.constant dense<0.000000e+00> : vector<81x96xf32>
    %118 = tpu.matmul %115, %117, %cst_85 {dimension_numbers = #tpu.dot_dimension_numbers<[1], [0], [0], [1], [0, 0, 1, 1], [], []>} : vector<81x80xbf16>, vector<80x96xbf16>, vector<81x96xf32> -> vector<81x96xf32>
    %119 = arith.addf %113, %118 : vector<81x96xf32>
    %c0_86 = arith.constant 0 : index
    %c0_87 = arith.constant 0 : index
    %120 = vector.load %arg6[%c0_86, %c0_87] : memref<1x96xf32, #tpu.memory_space<vmem>>, vector<1x96xf32>
    %121 = vector.broadcast %120 : vector<1x96xf32> to vector<81x96xf32>
    %122 = arith.addf %119, %121 : vector<81x96xf32>
    %cst_88 = arith.constant 0.000000e+00 : f32
    %123 = vector.broadcast %cst_88 : f32 to vector<81x96xf32>
    %124 = arith.maximumf %122, %123 : vector<81x96xf32>
    %125 = arith.truncf %124 : vector<81x96xf32> to vector<81x96xbf16>
    %c0_89 = arith.constant 0 : index
    %c0_90 = arith.constant 0 : index
    %126 = vector.load %arg4[%c0_89, %c0_90] : memref<96x128xbf16, #tpu.memory_space<vmem>>, vector<96x128xbf16>
    %cst_91 = arith.constant dense<0.000000e+00> : vector<81x128xf32>
    %127 = tpu.matmul %125, %126, %cst_91 {dimension_numbers = #tpu.dot_dimension_numbers<[1], [0], [0], [1], [0, 0, 1, 1], [], []>} : vector<81x96xbf16>, vector<96x128xbf16>, vector<81x128xf32> -> vector<81x128xf32>
    %c0_92 = arith.constant 0 : index
    %c0_93 = arith.constant 0 : index
    %128 = vector.load %arg7[%c0_92, %c0_93] : memref<1x128xf32, #tpu.memory_space<vmem>>, vector<1x128xf32>
    %129 = vector.broadcast %128 : vector<1x128xf32> to vector<81x128xf32>
    %130 = arith.addf %127, %129 : vector<81x128xf32>
    %cst_94 = arith.constant 0.000000e+00 : f32
    %131 = vector.broadcast %cst_94 : f32 to vector<81x128xf32>
    %132 = arith.maximumf %130, %131 : vector<81x128xf32>
    %c0_95 = arith.constant 0 : index
    %c0_96 = arith.constant 0 : index
    %c0_97 = arith.constant 0 : index
    %133 = vector.load %arg8[%c0_95, %c0_96, %c0_97] : memref<1x81x128xf32, #tpu.memory_space<vmem>>, vector<1x81x128xf32>
    %134 = vector.shape_cast %133 : vector<1x81x128xf32> to vector<81x128xf32>
    %135 = vector.shape_cast %132 : vector<81x128xf32> to vector<1x81x128xf32>
    tpu.vector_store %arg8[%c0_95, %c0_96, %c0_97], %135 {strides = array<i32>} : memref<1x81x128xf32, #tpu.memory_space<vmem>>, vector<1x81x128xf32>,
    return
  }
  func.func @transform_0(%arg0: i32) -> (i32, i32, i32) {
    %c0_i32 = arith.constant 0 : i32
    %c0_i32_0 = arith.constant 0 : i32
    %c0_i32_1 = arith.constant 0 : i32
    return %arg0, %c0_i32, %c0_i32_0 : i32, i32, i32
  }
  func.func @transform_1(%arg0: i32) -> (i32, i32, i32) {
    %c0_i32 = arith.constant 0 : i32
    %c0_i32_0 = arith.constant 0 : i32
    %c0_i32_1 = arith.constant 0 : i32
    %c0_i32_2 = arith.constant 0 : i32
    return %c0_i32, %c0_i32_0, %c0_i32_1 : i32, i32, i32
  }
  func.func @transform_2(%arg0: i32) -> (i32, i32, i32) {
    %c0_i32 = arith.constant 0 : i32
    %c0_i32_0 = arith.constant 0 : i32
    %c0_i32_1 = arith.constant 0 : i32
    %c0_i32_2 = arith.constant 0 : i32
    return %c0_i32, %c0_i32_0, %c0_i32_1 : i32, i32, i32
  }
  func.func @transform_3(%arg0: i32) -> (i32, i32) {
    %c0_i32 = arith.constant 0 : i32
    %c0_i32_0 = arith.constant 0 : i32
    %c0_i32_1 = arith.constant 0 : i32
    return %c0_i32, %c0_i32_0 : i32, i32
  }
  func.func @transform_4(%arg0: i32) -> (i32, i32) {
    %c0_i32 = arith.constant 0 : i32
    %c0_i32_0 = arith.constant 0 : i32
    %c0_i32_1 = arith.constant 0 : i32
    return %c0_i32, %c0_i32_0 : i32, i32
  }
  func.func @transform_5(%arg0: i32) -> (i32, i32) {
    %c0_i32 = arith.constant 0 : i32
    %c0_i32_0 = arith.constant 0 : i32
    %c0_i32_1 = arith.constant 0 : i32
    return %c0_i32, %c0_i32_0 : i32, i32
  }
  func.func @transform_6(%arg0: i32) -> (i32, i32) {
    %c0_i32 = arith.constant 0 : i32
    %c0_i32_0 = arith.constant 0 : i32
    %c0_i32_1 = arith.constant 0 : i32
    return %c0_i32, %c0_i32_0 : i32, i32
  }
  func.func @transform_7(%arg0: i32) -> (i32, i32, i32) {
    %c0_i32 = arith.constant 0 : i32
    %c0_i32_0 = arith.constant 0 : i32
    %c0_i32_1 = arith.constant 0 : i32
    return %arg0, %c0_i32, %c0_i32_0 : i32, i32, i32
  }
}

module attributes {stable_mosaic.version = 11 : i64} {
  func.func @_matmul_bias_relu_kernel(%arg0: i32, %arg1: memref<56x128xf32, #tpu.memory_space<vmem>>, %arg2: memref<128x64xbf16, #tpu.memory_space<vmem>>, %arg3: memref<1x64xf32, #tpu.memory_space<vmem>>, %arg4: memref<56x64xf32, #tpu.memory_space<vmem>>) attributes {dimension_semantics = [#tpu.dimension_semantics<parallel>], iteration_bounds = array<i64: 1>, scalar_prefetch = 0 : i64, scratch_operands = 0 : i64, tpu.core_type = #tpu.core_type<tc>, window_params = [{transform_indices = @transform_0, window_bounds = array<i64: 56, 128>}, {pipeline_mode = #tpu.pipeline_mode<synchronous>, transform_indices = @transform_1, window_bounds = array<i64: 128, 64>}, {pipeline_mode = #tpu.pipeline_mode<synchronous>, transform_indices = @transform_2, window_bounds = array<i64: 1, 64>}, {transform_indices = @transform_3, window_bounds = array<i64: 56, 64>}]} {
    %c0 = arith.constant 0 : index
    %c0_0 = arith.constant 0 : index
    %0 = vector.load %arg1[%c0, %c0_0] : memref<56x128xf32, #tpu.memory_space<vmem>>, vector<56x128xf32>
    %1 = arith.truncf %0 : vector<56x128xf32> to vector<56x128xbf16>
    %c0_1 = arith.constant 0 : index
    %c0_2 = arith.constant 0 : index
    %2 = vector.load %arg2[%c0_1, %c0_2] : memref<128x64xbf16, #tpu.memory_space<vmem>>, vector<128x64xbf16>
    %cst = arith.constant dense<0.000000e+00> : vector<56x64xf32>
    %3 = tpu.matmul %1, %2, %cst {dimension_numbers = #tpu.dot_dimension_numbers<[1], [0], [0], [1], [0, 0, 1, 1], [], []>} : vector<56x128xbf16>, vector<128x64xbf16>, vector<56x64xf32> -> vector<56x64xf32>
    %c0_3 = arith.constant 0 : index
    %c0_4 = arith.constant 0 : index
    %4 = vector.load %arg3[%c0_3, %c0_4] : memref<1x64xf32, #tpu.memory_space<vmem>>, vector<1x64xf32>
    %5 = vector.broadcast %4 : vector<1x64xf32> to vector<56x64xf32>
    %6 = arith.addf %3, %5 : vector<56x64xf32>
    %cst_5 = arith.constant 0.000000e+00 : f32
    %7 = vector.broadcast %cst_5 : f32 to vector<56x64xf32>
    %8 = arith.maximumf %6, %7 : vector<56x64xf32>
    %c0_6 = arith.constant 0 : index
    %c0_7 = arith.constant 0 : index
    %9 = vector.load %arg4[%c0_6, %c0_7] : memref<56x64xf32, #tpu.memory_space<vmem>>, vector<56x64xf32>
    tpu.vector_store %arg4[%c0_6, %c0_7], %8 {strides = array<i32>} : memref<56x64xf32, #tpu.memory_space<vmem>>, vector<56x64xf32>,
    return
  }
  func.func @transform_0(%arg0: i32) -> (i32, i32) {
    %c0_i32 = arith.constant 0 : i32
    %c0_i32_0 = arith.constant 0 : i32
    return %arg0, %c0_i32 : i32, i32
  }
  func.func @transform_1(%arg0: i32) -> (i32, i32) {
    %c0_i32 = arith.constant 0 : i32
    %c0_i32_0 = arith.constant 0 : i32
    %c0_i32_1 = arith.constant 0 : i32
    return %c0_i32, %c0_i32_0 : i32, i32
  }
  func.func @transform_2(%arg0: i32) -> (i32, i32) {
    %c0_i32 = arith.constant 0 : i32
    %c0_i32_0 = arith.constant 0 : i32
    %c0_i32_1 = arith.constant 0 : i32
    return %c0_i32, %c0_i32_0 : i32, i32
  }
  func.func @transform_3(%arg0: i32) -> (i32, i32) {
    %c0_i32 = arith.constant 0 : i32
    %c0_i32_0 = arith.constant 0 : i32
    return %arg0, %c0_i32 : i32, i32
  }
}

</mosaic_0001>

<llo_original>
// kernel: hysn_forward.2
$region0: #{hysn_forward.2}
  #allocation0 [shape = 'u32[]', space=smem, size = 0x4, offset = 0x4, fixed_abs, tag = 'smem constant byte address 0x4 - core index']
  #allocation1 [shape = 'u32[144,128]{1,0:T(1,128)}', space=vmem, size = 0x12000, scoped, tag = 'internal scratch']
  #allocation2 [shape = 'f32[104,80]{1,0:T(8,128)}', space=vmem, size = 0xd000, scoped, tag = 'scratch operand']
  %s0 = inlined_call_operand.vmem [shape: f32[2,104,16], index: 0, kind: input, shape index: {}]
  %s1 = inlined_call_operand.hbm [shape: bf16[9,16,80], index: 1, kind: input, shape index: {}]
  %s2 = inlined_call_operand.hbm [shape: bf16[9,80,96], index: 2, kind: input, shape index: {}]
  %s3 = inlined_call_operand.hbm [shape: bf16[96,128], index: 3, kind: input, shape index: {}]
  %s4 = inlined_call_operand.hbm [shape: f32[1,80], index: 4, kind: input, shape index: {}]
  %s5 = inlined_call_operand.hbm [shape: f32[1,96], index: 5, kind: input, shape index: {}]
  %s6 = inlined_call_operand.hbm [shape: f32[1,128], index: 6, kind: input, shape index: {}]
  %s7 = inlined_call_operand.vmem [shape: f32[2,81,128], index: 7, kind: output, shape index: {}]
  %s8 = sld [smem:[#allocation0]]
  $region85: #{hysn_forward.2} parent=0
    _
  %s10 = ssub.s32 1, %s8
  %s11 = scalar_select 0, %s10, %s8
  $region1: #{hysn_forward.2} parent=0
    #allocation3 [shape = 'u8[36864]{0}', space=vmem, size = 0x9000, scoped, tag = 'input window, operand 1, single buffered']
    #allocation4 [shape = 's32[2]{0}', space=sflag, size = 0x8, scoped, tag = 'scoped memory for hysn_forward.2']
    #allocation5 [shape = 'u8[184320]{0}', space=vmem, size = 0x2d000, scoped, tag = 'input window, operand 2, single buffered']
    #allocation6 [shape = 's32[1]{0}', space=sflag, size = 0x4, scoped, tag = 'scoped memory for hysn_forward.2']
    #allocation7 [shape = 'u8[24576]{0}', space=vmem, size = 0x6000, scoped, tag = 'input window, operand 3, single buffered']
    #allocation8 [shape = 'u8[512]{0}', space=vmem, size = 0x400, scoped, tag = 'input window, operand 4, single buffered']
    #allocation9 [shape = 's32[1]{0}', space=sflag, size = 0x4, scoped, tag = 'scoped memory for hysn_forward.2']
    #allocation10 [shape = 'u8[512]{0}', space=vmem, size = 0x400, scoped, tag = 'input window, operand 5, single buffered']
    #allocation11 [shape = 'u8[512]{0}', space=vmem, size = 0x400, scoped, tag = 'input window, operand 6, single buffered']
    #allocation12 [shape = 's32[1]{0}', space=sflag, size = 0x4, scoped, tag = 'scoped memory for hysn_forward.2']
    %12 = vsyncpa [#allocation4], 0
    %13 = vsyncpa [#allocation6], 0
    %14 = vsyncpa [#allocation9], 0
    %15 = vsyncpa [#allocation12], 0
    loop: start=0, step=1, limit=4
    $region2: #{hysn_forward.2} parent=1 // loop_pre_header
      _
    $region3: #{hysn_forward.2} parent=1 // loop_header
      %s17 = sphi 0, %s21
      %p18 = scmp.ge.s32.totalorder %s17, 4
      %s27 = sphi 0, %s29
      %s30 = sphi 0, %s27
      %s31 = sphi 0, %s30
      %s47 = sphi 0, %s31
      %s51 = sphi 0, %s51
      %s53 = sphi 0, %s51
      %s54 = sphi 0, %s53
      %s68 = sphi 0, %s54
      %s72 = sphi 0, %s72
      %s74 = sphi 0, %s72
      %s75 = sphi 0, %s74
      %s89 = sphi 0, %s75
      %s93 = sphi 0, %s93
      %s95 = sphi 0, %s93
      %s96 = sphi 0, %s95
      %s110 = sphi 0, %s96
      %s114 = sphi 0, %s114
      %s116 = sphi 0, %s114
      %s117 = sphi 0, %s116
      %s131 = sphi 0, %s117
      %s135 = sphi 0, %s135
      %s137 = sphi 0, %s135
      %s138 = sphi 0, %s137
      %s152 = sphi 0, %s138
      %s156 = sphi 0, %s156
      %s158 = sphi 0, %s156
      %s159 = sphi 0, %s158
      %s173 = sphi 0, %s159
      %s179 = sphi 0, %s181
      %s182 = sphi 0, %s179
      %s183 = sphi 0, %s182
      %s199 = sphi 0, %s183
    $region4: #{hysn_forward.2} parent=1 // loop_header_branch
      %20 = sbr.rel (%p18) target = $region8
    $region5: #{hysn_forward.2} parent=1 // loop_body
      %s22 = ssub.s32 %s17, 1
      %s23 = ssub.s32 %s17, 2
      %s24 = sadd.s32 %s17, 1
      %s25 = ssub.s32 %s17, %s24
      %p26 = scmp.eq.s32.totalorder %s25, 0
      %s28 = sadd.s32 %s27, 1
      %s29 = scalar_select %p26, %s27, %s28
      %p32 = pneg %p26
      %p33 = scmp.eq.s32.totalorder %s17, 1
      %p34 = por %p32, %p33
      %p35 = scmp.ne.s32.totalorder %s27, %s30
      %p36 = scmp.eq.s32.totalorder %s17, 0
      %p37 = por %p35, %p36
      %p38 = scmp.ne.s32.totalorder %s27, %s30
      %p39 = scmp.eq.s32.totalorder %s22, 1
      %p40 = por %p38, %p39
      %p41 = scmp.ne.s32.totalorder %s30, %s31
      %p42 = scmp.eq.s32.totalorder %s22, 0
      %p43 = por %p41, %p42
      %p44 = scmp.ne.s32.totalorder %s30, %s31
      %p45 = scmp.eq.s32.totalorder %s23, 1
      %p46 = por %p44, %p45
      %p48 = scmp.ne.s32.totalorder %s31, %s47
      %p49 = scmp.eq.s32.totalorder %s23, 0
      %p50 = por %p48, %p49
      %s52 = sadd.s32 %s51, 1
      %p55 = scmp.eq.s32.totalorder %s17, 1
      %p56 = scmp.ne.s32.totalorder %s51, %s53
      %p57 = scmp.eq.s32.totalorder %s17, 0
      %p58 = por %p56, %p57
      %p59 = scmp.ne.s32.totalorder %s51, %s53
      %p60 = scmp.eq.s32.totalorder %s22, 1
      %p61 = por %p59, %p60
      %p62 = scmp.ne.s32.totalorder %s53, %s54
      %p63 = scmp.eq.s32.totalorder %s22, 0
      %p64 = por %p62, %p63
      %p65 = scmp.ne.s32.totalorder %s53, %s54
      %p66 = scmp.eq.s32.totalorder %s23, 1
      %p67 = por %p65, %p66
      %p69 = scmp.ne.s32.totalorder %s54, %s68
      %p70 = scmp.eq.s32.totalorder %s23, 0
      %p71 = por %p69, %p70
      %s73 = sadd.s32 %s72, 1
      %p76 = scmp.eq.s32.totalorder %s17, 1
      %p77 = scmp.ne.s32.totalorder %s72, %s74
      %p78 = scmp.eq.s32.totalorder %s17, 0
      %p79 = por %p77, %p78
      %p80 = scmp.ne.s32.totalorder %s72, %s74
      %p81 = scmp.eq.s32.totalorder %s22, 1
      %p82 = por %p80, %p81
      %p83 = scmp.ne.s32.totalorder %s74, %s75
      %p84 = scmp.eq.s32.totalorder %s22, 0
      %p85 = por %p83, %p84
      %p86 = scmp.ne.s32.totalorder %s74, %s75
      %p87 = scmp.eq.s32.totalorder %s23, 1
      %p88 = por %p86, %p87
      %p90 = scmp.ne.s32.totalorder %s75, %s89
      %p91 = scmp.eq.s32.totalorder %s23, 0
      %p92 = por %p90, %p91
      %s94 = sadd.s32 %s93, 1
      %p97 = scmp.eq.s32.totalorder %s17, 1
      %p98 = scmp.ne.s32.totalorder %s93, %s95
      %p99 = scmp.eq.s32.totalorder %s17, 0
      %p100 = por %p98, %p99
      %p101 = scmp.ne.s32.totalorder %s93, %s95
      %p102 = scmp.eq.s32.totalorder %s22, 1
      %p103 = por %p101, %p102
      %p104 = scmp.ne.s32.totalorder %s95, %s96
      %p105 = scmp.eq.s32.totalorder %s22, 0
      %p106 = por %p104, %p105
      %p107 = scmp.ne.s32.totalorder %s95, %s96
      %p108 = scmp.eq.s32.totalorder %s23, 1
      %p109 = por %p107, %p108
      %p111 = scmp.ne.s32.totalorder %s96, %s110
      %p112 = scmp.eq.s32.totalorder %s23, 0
      %p113 = por %p111, %p112
      %s115 = sadd.s32 %s114, 1
      %p118 = scmp.eq.s32.totalorder %s17, 1
      %p119 = scmp.ne.s32.totalorder %s114, %s116
      %p120 = scmp.eq.s32.totalorder %s17, 0
      %p121 = por %p119, %p120
      %p122 = scmp.ne.s32.totalorder %s114, %s116
      %p123 = scmp.eq.s32.totalorder %s22, 1
      %p124 = por %p122, %p123
      %p125 = scmp.ne.s32.totalorder %s116, %s117
      %p126 = scmp.eq.s32.totalorder %s22, 0
      %p127 = por %p125, %p126
      %p128 = scmp.ne.s32.totalorder %s116, %s117
      %p129 = scmp.eq.s32.totalorder %s23, 1
      %p130 = por %p128, %p129
      %p132 = scmp.ne.s32.totalorder %s117, %s131
      %p133 = scmp.eq.s32.totalorder %s23, 0
      %p134 = por %p132, %p133
      %s136 = sadd.s32 %s135, 1
      %p139 = scmp.eq.s32.totalorder %s17, 1
      %p140 = scmp.ne.s32.totalorder %s135, %s137
      %p141 = scmp.eq.s32.totalorder %s17, 0
      %p142 = por %p140, %p141
      %p143 = scmp.ne.s32.totalorder %s135, %s137
      %p144 = scmp.eq.s32.totalorder %s22, 1
      %p145 = por %p143, %p144
      %p146 = scmp.ne.s32.totalorder %s137, %s138
      %p147 = scmp.eq.s32.totalorder %s22, 0
      %p148 = por %p146, %p147
      %p149 = scmp.ne.s32.totalorder %s137, %s138
      %p150 = scmp.eq.s32.totalorder %s23, 1
      %p151 = por %p149, %p150
      %p153 = scmp.ne.s32.totalorder %s138, %s152
      %p154 = scmp.eq.s32.totalorder %s23, 0
      %p155 = por %p153, %p154
      %s157 = sadd.s32 %s156, 1
      %p160 = scmp.eq.s32.totalorder %s17, 1
      %p161 = scmp.ne.s32.totalorder %s156, %s158
      %p162 = scmp.eq.s32.totalorder %s17, 0
      %p163 = por %p161, %p162
      %p164 = scmp.ne.s32.totalorder %s156, %s158
      %p165 = scmp.eq.s32.totalorder %s22, 1
      %p166 = por %p164, %p165
      %p167 = scmp.ne.s32.totalorder %s158, %s159
      %p168 = scmp.eq.s32.totalorder %s22, 0
      %p169 = por %p167, %p168
      %p170 = scmp.ne.s32.totalorder %s158, %s159
      %p171 = scmp.eq.s32.totalorder %s23, 1
      %p172 = por %p170, %p171
      %p174 = scmp.ne.s32.totalorder %s159, %s173
      %p175 = scmp.eq.s32.totalorder %s23, 0
      %p176 = por %p174, %p175
      %s177 = ssub.s32 %s17, %s24
      %p178 = scmp.eq.s32.totalorder %s177, 0
      %s180 = sadd.s32 %s179, 1
      %s181 = scalar_select %p178, %s179, %s180
      %p184 = pneg %p178
      %p185 = scmp.eq.s32.totalorder %s17, 1
      %p186 = por %p184, %p185
      %p187 = scmp.ne.s32.totalorder %s179, %s182
      %p188 = scmp.eq.s32.totalorder %s17, 0
      %p189 = por %p187, %p188
      %p190 = scmp.ne.s32.totalorder %s179, %s182
      %p191 = scmp.eq.s32.totalorder %s22, 1
      %p192 = por %p190, %p191
      %p193 = scmp.ne.s32.totalorder %s182, %s183
      %p194 = scmp.eq.s32.totalorder %s22, 0
      %p195 = por %p193, %p194
      %p196 = scmp.ne.s32.totalorder %s182, %s183
      %p197 = scmp.eq.s32.totalorder %s23, 1
      %p198 = por %p196, %p197
      %p200 = scmp.ne.s32.totalorder %s183, %s199
      %p201 = scmp.eq.s32.totalorder %s23, 0
      %p202 = por %p200, %p201
      %p203 = scmp.le.s32.totalorder 1, %s17
      %p204 = scmp.lt.s32.totalorder %s17, 3
      %p205 = pnand %p203, %p204
      %p206 = pneg %p205
      // Predicated region
      $region9: #{hysn_forward.2} parent=5 // pred_check
        _
      $region10: #{hysn_forward.2} parent=5 // pred_check_branch
        %208 = sbr.rel (%p205) target = $region12
      $region11: #{hysn_forward.2} parent=5 // pred_region
        %s209 = ssub.s32 %s17, 1
        // Predicated region
        $region13: #{hysn_forward.2} parent=11 // pred_check
          %p210 = pneg %p64
        $region14: #{hysn_forward.2} parent=11 // pred_check_branch
          %212 = sbr.rel (%p210) target = $region16
        $region15: #{hysn_forward.2} parent=11 // pred_region
          %s214 = ssub.s32 1152, 1152
          %215 = vsyncadd [#allocation4], %s214
          %s216 = sshll.u32 [#allocation3], 4
          %s217 = int_to_ptr.vmem [resolvable:$true] %s216
          %222 = dma.hbm_to_vmem [thread:$0]  %s1, 1152, %s217, [#allocation4], 64, 64, 4
        $region16: #{hysn_forward.2} parent=11 // pred_fallthru
          _
        // Predicated region
        $region17: #{hysn_forward.2} parent=11 // pred_check
          %p223 = pneg %p85
        $region18: #{hysn_forward.2} parent=11 // pred_check_branch
          %225 = sbr.rel (%p223) target = $region20
        $region19: #{hysn_forward.2} parent=11 // pred_region
          %s227 = ssub.s32 5760, 5760
          %228 = vsyncadd [#allocation6], %s227
          %s229 = sshll.u32 [#allocation5], 4
          %s230 = int_to_ptr.vmem [resolvable:$true] %s229
          %235 = dma.hbm_to_vmem [thread:$0]  %s2, 5760, %s230, [#allocation6], 64, 64, 4
        $region20: #{hysn_forward.2} parent=11 // pred_fallthru
          _
        // Predicated region
        $region21: #{hysn_forward.2} parent=11 // pred_check
          %p236 = pneg %p106
        $region22: #{hysn_forward.2} parent=11 // pred_check_branch
          %238 = sbr.rel (%p236) target = $region24
        $region23: #{hysn_forward.2} parent=11 // pred_region
          %s240 = ssub.s32 768, 768
          %241 = vsyncadd [#allocation6], %s240
          %s242 = sshll.u32 [#allocation7], 4
          %s243 = int_to_ptr.vmem [resolvable:$true] %s242
          %248 = dma.hbm_to_vmem [thread:$0]  %s3, 768, %s243, [#allocation6], 64, 64, 4
        $region24: #{hysn_forward.2} parent=11 // pred_fallthru
          _
        // Predicated region
        $region25: #{hysn_forward.2} parent=11 // pred_check
          %p249 = pneg %p127
        $region26: #{hysn_forward.2} parent=11 // pred_check_branch
          %251 = sbr.rel (%p249) target = $region28
        $region27: #{hysn_forward.2} parent=11 // pred_region
          %s253 = ssub.s32 16, 16
          %254 = vsyncadd [#allocation9], %s253
          %s256 = sshll.u32 [#allocation8], 4
          %s257 = int_to_ptr.vmem [resolvable:$true] %s256
          %259 = dma.hbm_to_vmem [thread:$0]  %s4, 16, %s257, [#allocation9]
        $region28: #{hysn_forward.2} parent=11 // pred_fallthru
          _
        // Predicated region
        $region29: #{hysn_forward.2} parent=11 // pred_check
          %p260 = pneg %p148
        $region30: #{hysn_forward.2} parent=11 // pred_check_branch
          %262 = sbr.rel (%p260) target = $region32
        $region31: #{hysn_forward.2} parent=11 // pred_region
          %s264 = ssub.s32 16, 16
          %265 = vsyncadd [#allocation9], %s264
          %s267 = sshll.u32 [#allocation10], 4
          %s268 = int_to_ptr.vmem [resolvable:$true] %s267
          %270 = dma.hbm_to_vmem [thread:$0]  %s5, 16, %s268, [#allocation9]
        $region32: #{hysn_forward.2} parent=11 // pred_fallthru
          _
        // Predicated region
        $region33: #{hysn_forward.2} parent=11 // pred_check
          %p271 = pneg %p169
        $region34: #{hysn_forward.2} parent=11 // pred_check_branch
          %273 = sbr.rel (%p271) target = $region36
        $region35: #{hysn_forward.2} parent=11 // pred_region
          %s275 = ssub.s32 16, 16
          %276 = vsyncadd [#allocation12], %s275
          %s278 = sshll.u32 [#allocation11], 4
          %s279 = int_to_ptr.vmem [resolvable:$true] %s278
          %281 = dma.hbm_to_vmem [thread:$0]  %s6, 16, %s279, [#allocation12]
        $region36: #{hysn_forward.2} parent=11 // pred_fallthru
          _
      $region12: #{hysn_forward.2} parent=5 // pred_fallthru
        _
      %p282 = scmp.lt.s32.totalorder %s17, 2
      // Predicated region
      $region37: #{hysn_forward.2} parent=5 // pred_check
        %p283 = pneg %p282
      $region38: #{hysn_forward.2} parent=5 // pred_check_branch
        %285 = sbr.rel (%p283) target = $region40
      $region39: #{hysn_forward.2} parent=5 // pred_region
        // Predicated region
        $region41: #{hysn_forward.2} parent=39 // pred_check
          %p286 = pneg %p37
        $region42: #{hysn_forward.2} parent=39 // pred_check_branch
          %288 = sbr.rel (%p286) target = $region44
        $region43: #{hysn_forward.2} parent=39 // pred_region
          %p289 = scmp.lt.s32.totalorder %s17, 1
          %s290 = scalar_select %p289, %s17, 1
          %s291 = smul.addr %s290, 13
          %s292 = smul.addr %s291, 8
          %s293 = scalar_lea.vmem %s0, %s292
        $region44: #{hysn_forward.2} parent=39 // pred_fallthru
          _
      $region40: #{hysn_forward.2} parent=5 // pred_fallthru
        _
      %p294 = scmp.le.s32.totalorder 1, %s17
      %p295 = scmp.lt.s32.totalorder %s17, 3
      %p296 = pnand %p294, %p295
      %p297 = pneg %p296
      // Predicated region
      $region45: #{hysn_forward.2} parent=5 // pred_check
        _
      $region46: #{hysn_forward.2} parent=5 // pred_check_branch
        %299 = sbr.rel (%p296) target = $region48
      $region47: #{hysn_forward.2} parent=5 // pred_region
        %s300 = ssub.s32 %s17, 1
        // Predicated region
        $region49: #{hysn_forward.2} parent=47 // pred_check
          %p301 = pneg %p64
        $region50: #{hysn_forward.2} parent=47 // pred_check_branch
          %303 = sbr.rel (%p301) target = $region52
        $region51: #{hysn_forward.2} parent=47 // pred_region
          %304 = dma.done [#allocation4], 1152
        $region52: #{hysn_forward.2} parent=47 // pred_fallthru
          _
        // Predicated region
        $region53: #{hysn_forward.2} parent=47 // pred_check
          %p305 = pneg %p85
        $region54: #{hysn_forward.2} parent=47 // pred_check_branch
          %307 = sbr.rel (%p305) target = $region56
        $region55: #{hysn_forward.2} parent=47 // pred_region
          %308 = dma.done [#allocation6], 5760
        $region56: #{hysn_forward.2} parent=47 // pred_fallthru
          _
        // Predicated region
        $region57: #{hysn_forward.2} parent=47 // pred_check
          %p309 = pneg %p106
        $region58: #{hysn_forward.2} parent=47 // pred_check_branch
          %311 = sbr.rel (%p309) target = $region60
        $region59: #{hysn_forward.2} parent=47 // pred_region
          %312 = dma.done [#allocation6], 768
        $region60: #{hysn_forward.2} parent=47 // pred_fallthru
          _
        // Predicated region
        $region61: #{hysn_forward.2} parent=47 // pred_check
          %p313 = pneg %p127
        $region62: #{hysn_forward.2} parent=47 // pred_check_branch
          %315 = sbr.rel (%p313) target = $region64
        $region63: #{hysn_forward.2} parent=47 // pred_region
          %316 = dma.done [#allocation9], 16
        $region64: #{hysn_forward.2} parent=47 // pred_fallthru
          _
        // Predicated region
        $region65: #{hysn_forward.2} parent=47 // pred_check
          %p317 = pneg %p148
        $region66: #{hysn_forward.2} parent=47 // pred_check_branch
          %319 = sbr.rel (%p317) target = $region68
        $region67: #{hysn_forward.2} parent=47 // pred_region
          %320 = dma.done [#allocation9], 16
        $region68: #{hysn_forward.2} parent=47 // pred_fallthru
          _
        // Predicated region
        $region69: #{hysn_forward.2} parent=47 // pred_check
          %p321 = pneg %p169
        $region70: #{hysn_forward.2} parent=47 // pred_check_branch
          %323 = sbr.rel (%p321) target = $region72
        $region71: #{hysn_forward.2} parent=47 // pred_region
          %324 = dma.done [#allocation12], 16
        $region72: #{hysn_forward.2} parent=47 // pred_fallthru
          _
        %p325 = scmp.lt.s32.totalorder %s22, 1
        %s326 = scalar_select %p325, %s22, 1
        %s327 = smul.addr %s326, 13
        %s328 = smul.addr %s327, 8
        %s329 = scalar_lea.vmem %s0, %s328
        %p330 = pneg %p43
        %p331 = pneg %p40
        %p332 = pneg %p64
        %p333 = pneg %p61
        %p334 = pneg %p85
        %p335 = pneg %p82
        %p336 = pneg %p106
        %p337 = pneg %p103
        %p338 = pneg %p127
        %p339 = pneg %p124
        %p340 = pneg %p148
        %p341 = pneg %p145
        %p342 = pneg %p169
        %p343 = pneg %p166
        %p344 = pneg %p195
        %p345 = pneg %p192
        %p346 = scmp.lt.s32.totalorder %s22, 1
        %s347 = scalar_select %p346, %s22, 1
        %s348 = smul.addr %s347, 11
        %s349 = smul.addr %s348, 8
        %s350 = scalar_lea.vmem %s7, %s349
        %p351 = scmp.lt.s32.totalorder %s22, 1
        %s352 = scalar_select %p351, %s22, 1
        %s353 = smul.addr %s352, 13
        %s354 = smul.addr %s353, 8
        %s355 = scalar_lea.vmem %s0, %s354
        %p356 = scmp.lt.s32.totalorder %s22, 1
        %s357 = scalar_select %p356, %s22, 1
        %s358 = smul.addr %s357, 11
        %s359 = smul.addr %s358, 8
        %s360 = scalar_lea.vmem %s7, %s359
        %v362 = vld [vmem:[%s355] sm:$0xff]
        %v363 = vld [vmem:[%s355 + $0x8] sm:$0xff]
        %v364 = vld [vmem:[%s355 + $0x10] sm:$0xff]
        %v365 = vld [vmem:[%s355 + $0x18] sm:$0xff]
        %v366 = vld [vmem:[%s355 + $0x20] sm:$0xff]
        %v367 = vld [vmem:[%s355 + $0x28] sm:$0xff]
        %v368 = vld [vmem:[%s355 + $0x30] sm:$0xff]
        %v369 = vld [vmem:[%s355 + $0x38] sm:$0xff]
        %v370 = vld [vmem:[%s355 + $0x40] sm:$0xff]
        %v371 = vld [vmem:[%s355 + $0x48] sm:$0xff]
        %v372 = vld [vmem:[%s355 + $0x50] sm:$0xff]
        %v373 = vld [vmem:[%s355 + $0x58] sm:$0xff]
        %v374 = vld [vmem:[%s355 + $0x60] sm:$0xff]
        %v375 = vpack.c.bf16 %v363, %v362
        %v376 = vpack.c.bf16 %v365, %v364
        %v377 = vpack.c.bf16 %v367, %v366
        %v378 = vpack.c.bf16 %v369, %v368
        %v379 = vpack.c.bf16 %v371, %v370
        %v380 = vpack.c.bf16 %v372, %v372
        %v381 = vld [vmem:[#allocation3] sm:$0xf]
        %v382 = vld [vmem:[#allocation3 + $0x4] sm:$0xf]
        %s383 = scalar_lea.vmem [#allocation3], 8
        %v384 = vld [vmem:[%s383] sm:$0xf]
        %v385 = vld [vmem:[%s383 + $0x4] sm:$0xf]
        %vm386 = vsmask.f32 7424
        %v388 = vshrl.u32 %v375, 16
        %v390 = vshll.u32 %v375, 16
        %v392 = vrot.slane %v390, 1
        %v393 = vor.u32 %v388, %v392
        %v395 = vshll.u32 %v376, 16
        %v397 = vrot.slane %v395, 1
        %v398 = vsel %vm386, %v393, %v397
        %v399 = vshrl.u32 %v376, 16
        %v401 = vor.u32 %v399, %v397
        %v403 = vshll.u32 %v377, 16
        %v405 = vrot.slane %v403, 1
        %v406 = vsel %vm386, %v401, %v405
        %v407 = vshrl.u32 %v377, 16
        %v409 = vor.u32 %v407, %v405
        %v411 = vshll.u32 %v378, 16
        %v413 = vrot.slane %v411, 1
        %v414 = vsel %vm386, %v409, %v413
        %v415 = vshrl.u32 %v378, 16
        %v417 = vor.u32 %v415, %v413
        %v419 = vshll.u32 %v379, 16
        %v421 = vrot.slane %v419, 1
        %v422 = vsel %vm386, %v417, %v421
        %v423 = vshrl.u32 %v379, 16
        %v425 = vor.u32 %v423, %v421
        %v427 = vshll.u32 %v380, 16
        %v429 = vrot.slane %v427, 1
        %v430 = vsel %vm386, %v425, %v429
        %v431 = vshrl.u32 %v380, 16
        %v435 = vunpack.c.l.b16 %v384
        %v436 = vunpack.c.l.b16 %v385
        %v437 = vpack.c.b16 %v436, %v435
        %vm439 = vcmask 130048
        %v441 = vsel %vm439, %v398, 0
        %v444 = vsel %vm439, %v406, 0
        %v447 = vsel %vm439, %v414, 0
        %v450 = vsel %vm439, %v422, 0
        %v453 = vsel %vm439, %v430, 0
        %v456 = vsel %vm439, %v431, 0
        %458 = vmatprep.subr.bf16.mxu0 0
        %459 = vmatpush1.bf16.msra.mxu0 %v437
        %460 = vmatprep.subr.bf16.mxu0 0
        %461 = vmatpush1.bf16.msra.mxu0 0
        %462 = vmatprep.subr.bf16.mxu0 0
        %463 = vmatpush1.bf16.msra.mxu0 0
        %464 = vmatprep.subr.bf16.mxu0 0
        %465 = vmatpush1.bf16.msra.mxu0 0
        %466 = vmatprep.subr.bf16.mxu0 0
        %467 = vmatpush1.bf16.msra.mxu0 0
        %468 = vmatprep.subr.bf16.mxu0 0
        %469 = vmatpush1.bf16.msra.mxu0 0
        %470 = vmatprep.subr.bf16.mxu0 0
        %471 = vmatpush1.bf16.msra.mxu0 0
        %472 = vmatprep.subr.bf16.mxu0 0
        %473 = vmatpush1.bf16.msra.mxu0 0
        %474 = vmatprep.subr.bf16.mxu0 0
        %475 = vmatpush1.bf16.msra.mxu0 0
        %476 = vmatprep.subr.bf16.mxu0 0
        %477 = vmatpush1.bf16.msra.mxu0 0
        %478 = vmatprep.subr.bf16.mxu0 0
        %479 = vmatpush1.bf16.msra.mxu0 0
        %480 = vmatprep.subr.bf16.mxu0 0
        %481 = vmatpush1.bf16.msra.mxu0 0
        %482 = vmatprep.subr.bf16.mxu0 0
        %483 = vmatpush1.bf16.msra.mxu0 0
        %484 = vmatprep.subr.bf16.mxu0 0
        %485 = vmatpush1.bf16.msra.mxu0 0
        %486 = vmatprep.subr.bf16.mxu0 0
        %487 = vmatpush1.bf16.msra.mxu0 0
        %488 = vmatprep.subr.bf16.mxu0 0
        %489 = vmatpush1.bf16.msra.mxu0 0
        %490 = vmatprep.mubr.bf16.mxu0 0
        %491 = vmatmul.mubr.bf16.gmra.mrb[0].mxu0 %v441
        %v492 = vpop.f32.mrb[0].mxu0
        %v493 = vadd.f32 0.0, %v492
        %v494 = vpop.f32.mrb[0].mxu0
        %v495 = vpop.f32.mrb[0].mxu0
        %v496 = vadd.f32 0.0, %v495
        %v497 = vpop.f32.mrb[0].mxu0
        %498 = vmatprep.mubr.bf16.mxu0 0
        %499 = vmatmul.mubr.bf16.gmra.mrb[0].mxu0 %v444
        %v500 = vpop.f32.mrb[0].mxu0
        %v501 = vadd.f32 0.0, %v500
        %v502 = vpop.f32.mrb[0].mxu0
        %v503 = vpop.f32.mrb[0].mxu0
        %v504 = vadd.f32 0.0, %v503
        %v505 = vpop.f32.mrb[0].mxu0
        %506 = vmatprep.mubr.bf16.mxu0 0
        %507 = vmatmul.mubr.bf16.gmra.mrb[0].mxu0 %v447
        %v508 = vpop.f32.mrb[0].mxu0
        %v509 = vadd.f32 0.0, %v508
        %v510 = vpop.f32.mrb[0].mxu0
        %v511 = vpop.f32.mrb[0].mxu0
        %v512 = vadd.f32 0.0, %v511
        %v513 = vpop.f32.mrb[0].mxu0
        %514 = vmatprep.mubr.bf16.mxu0 0
        %515 = vmatmul.mubr.bf16.gmra.mrb[0].mxu0 %v450
        %v516 = vpop.f32.mrb[0].mxu0
        %v517 = vadd.f32 0.0, %v516
        %v518 = vpop.f32.mrb[0].mxu0
        %v519 = vpop.f32.mrb[0].mxu0
        %v520 = vadd.f32 0.0, %v519
        %v521 = vpop.f32.mrb[0].mxu0
        %522 = vmatprep.mubr.bf16.mxu0 0
        %523 = vmatmul.mubr.bf16.gmra.mrb[0].mxu0 %v453
        %v524 = vpop.f32.mrb[0].mxu0
        %v525 = vadd.f32 0.0, %v524
        %v526 = vpop.f32.mrb[0].mxu0
        %v527 = vpop.f32.mrb[0].mxu0
        %v528 = vadd.f32 0.0, %v527
        %v529 = vpop.f32.mrb[0].mxu0
        %530 = vmatprep.mubr.bf16.mxu0 0
        %531 = vmatmul.mubr.bf16.gmra.mrb[0].mxu0 %v456
        %v532 = vpop.f32.mrb[0].mxu0
        %v533 = vadd.f32 0.0, %v532
        %v534 = vpop.f32.mrb[0].mxu0
        %v535 = vpop.f32.mrb[0].mxu0
        %v536 = vpop.f32.mrb[0].mxu0
        %537 = vdwg.mxu0
        %v540 = vunpack.c.l.b16 %v381
        %v541 = vunpack.c.l.b16 %v382
        %v542 = vpack.c.b16 %v541, %v540
        %v544 = vsel %vm439, %v375, 0
        %v546 = vsel %vm439, %v376, 0
        %v548 = vsel %vm439, %v377, 0
        %v550 = vsel %vm439, %v378, 0
        %v552 = vsel %vm439, %v379, 0
        %v554 = vsel %vm439, %v380, 0
        %556 = vmatprep.subr.bf16.mxu0 0
        %557 = vmatpush1.bf16.msra.mxu0 %v542
        %558 = vmatprep.subr.bf16.mxu0 0
        %559 = vmatpush1.bf16.msra.mxu0 0
        %560 = vmatprep.subr.bf16.mxu0 0
        %561 = vmatpush1.bf16.msra.mxu0 0
        %562 = vmatprep.subr.bf16.mxu0 0
        %563 = vmatpush1.bf16.msra.mxu0 0
        %564 = vmatprep.subr.bf16.mxu0 0
        %565 = vmatpush1.bf16.msra.mxu0 0
        %566 = vmatprep.subr.bf16.mxu0 0
        %567 = vmatpush1.bf16.msra.mxu0 0
        %568 = vmatprep.subr.bf16.mxu0 0
        %569 = vmatpush1.bf16.msra.mxu0 0
        %570 = vmatprep.subr.bf16.mxu0 0
        %571 = vmatpush1.bf16.msra.mxu0 0
        %572 = vmatprep.subr.bf16.mxu0 0
        %573 = vmatpush1.bf16.msra.mxu0 0
        %574 = vmatprep.subr.bf16.mxu0 0
        %575 = vmatpush1.bf16.msra.mxu0 0
        %576 = vmatprep.subr.bf16.mxu0 0
        %577 = vmatpush1.bf16.msra.mxu0 0
        %578 = vmatprep.subr.bf16.mxu0 0
        %579 = vmatpush1.bf16.msra.mxu0 0
        %580 = vmatprep.subr.bf16.mxu0 0
        %581 = vmatpush1.bf16.msra.mxu0 0
        %582 = vmatprep.subr.bf16.mxu0 0
        %583 = vmatpush1.bf16.msra.mxu0 0
        %584 = vmatprep.subr.bf16.mxu0 0
        %585 = vmatpush1.bf16.msra.mxu0 0
        %586 = vmatprep.subr.bf16.mxu0 0
        %587 = vmatpush1.bf16.msra.mxu0 0
        %588 = vmatprep.mubr.bf16.mxu0 0
        %589 = vmatmul.mubr.bf16.gmra.mrb[0].mxu0 %v544
        %v590 = vpop.f32.mrb[0].mxu0
        %v591 = vadd.f32 %v493, %v590
        %v592 = vpop.f32.mrb[0].mxu0
        %v593 = vpop.f32.mrb[0].mxu0
        %v594 = vadd.f32 %v496, %v593
        %v595 = vpop.f32.mrb[0].mxu0
        %596 = vmatprep.mubr.bf16.mxu0 0
        %597 = vmatmul.mubr.bf16.gmra.mrb[0].mxu0 %v546
        %v598 = vpop.f32.mrb[0].mxu0
        %v599 = vadd.f32 %v501, %v598
        %v600 = vpop.f32.mrb[0].mxu0
        %v601 = vpop.f32.mrb[0].mxu0
        %v602 = vadd.f32 %v504, %v601
        %v603 = vpop.f32.mrb[0].mxu0
        %604 = vmatprep.mubr.bf16.mxu0 0
        %605 = vmatmul.mubr.bf16.gmra.mrb[0].mxu0 %v548
        %v606 = vpop.f32.mrb[0].mxu0
        %v607 = vadd.f32 %v509, %v606
        %v608 = vpop.f32.mrb[0].mxu0
        %v609 = vpop.f32.mrb[0].mxu0
        %v610 = vadd.f32 %v512, %v609
        %v611 = vpop.f32.mrb[0].mxu0
        %612 = vmatprep.mubr.bf16.mxu0 0
        %613 = vmatmul.mubr.bf16.gmra.mrb[0].mxu0 %v550
        %v614 = vpop.f32.mrb[0].mxu0
        %v615 = vadd.f32 %v517, %v614
        %v616 = vpop.f32.mrb[0].mxu0
        %v617 = vpop.f32.mrb[0].mxu0
        %v618 = vadd.f32 %v520, %v617
        %v619 = vpop.f32.mrb[0].mxu0
        %620 = vmatprep.mubr.bf16.mxu0 0
        %621 = vmatmul.mubr.bf16.gmra.mrb[0].mxu0 %v552
        %v622 = vpop.f32.mrb[0].mxu0
        %v623 = vadd.f32 %v525, %v622
        %v624 = vpop.f32.mrb[0].mxu0
        %v625 = vpop.f32.mrb[0].mxu0
        %v626 = vadd.f32 %v528, %v625
        %v627 = vpop.f32.mrb[0].mxu0
        %628 = vmatprep.mubr.bf16.mxu0 0
        %629 = vmatmul.mubr.bf16.gmra.mrb[0].mxu0 %v554
        %v630 = vpop.f32.mrb[0].mxu0
        %v631 = vadd.f32 %v533, %v630
        %v632 = vpop.f32.mrb[0].mxu0
        %v633 = vpop.f32.mrb[0].mxu0
        %v634 = vpop.f32.mrb[0].mxu0
        %635 = vdwg.mxu0
        %s636 = scalar_lea.vmem [#allocation3], 16
        %v637 = vld [vmem:[%s636] sm:$0xf]
        %v638 = vld [vmem:[%s636 + $0x4] sm:$0xf]
        %vm645 = vcmask 1046528
        %v646 = vrot.slane %v375, 1
        %v647 = vrot.slane %v376, 1
        %v648 = vsel %vm645, %v646, %v647
        %v649 = vrot.slane %v377, 1
        %v650 = vsel %vm645, %v647, %v649
        %v651 = vrot.slane %v378, 1
        %v652 = vsel %vm645, %v649, %v651
        %v653 = vrot.slane %v379, 1
        %v654 = vsel %vm645, %v651, %v653
        %v655 = vrot.slane %v380, 1
        %v656 = vsel %vm645, %v653, %v655
        %v659 = vunpack.c.l.b16 %v637
        %v660 = vunpack.c.l.b16 %v638
        %v661 = vpack.c.b16 %v660, %v659
        %v664 = vsel %vm439, %v648, 0
        %v667 = vsel %vm439, %v650, 0
        %v670 = vsel %vm439, %v652, 0
        %v673 = vsel %vm439, %v654, 0
        %v676 = vsel %vm439, %v656, 0
        %v679 = vsel %vm439, %v655, 0
        %681 = vmatprep.subr.bf16.mxu0 0
        %682 = vmatpush1.bf16.msra.mxu0 %v661
        %683 = vmatprep.subr.bf16.mxu0 0
        %684 = vmatpush1.bf16.msra.mxu0 0
        %685 = vmatprep.subr.bf16.mxu0 0
        %686 = vmatpush1.bf16.msra.mxu0 0
        %687 = vmatprep.subr.bf16.mxu0 0
        %688 = vmatpush1.bf16.msra.mxu0 0
        %689 = vmatprep.subr.bf16.mxu0 0
        %690 = vmatpush1.bf16.msra.mxu0 0
        %691 = vmatprep.subr.bf16.mxu0 0
        %692 = vmatpush1.bf16.msra.mxu0 0
        %693 = vmatprep.subr.bf16.mxu0 0
        %694 = vmatpush1.bf16.msra.mxu0 0
        %695 = vmatprep.subr.bf16.mxu0 0
        %696 = vmatpush1.bf16.msra.mxu0 0
        %697 = vmatprep.subr.bf16.mxu0 0
        %698 = vmatpush1.bf16.msra.mxu0 0
        %699 = vmatprep.subr.bf16.mxu0 0
        %700 = vmatpush1.bf16.msra.mxu0 0
        %701 = vmatprep.subr.bf16.mxu0 0
        %702 = vmatpush1.bf16.msra.mxu0 0
        %703 = vmatprep.subr.bf16.mxu0 0
        %704 = vmatpush1.bf16.msra.mxu0 0
        %705 = vmatprep.subr.bf16.mxu0 0
        %706 = vmatpush1.bf16.msra.mxu0 0
        %707 = vmatprep.subr.bf16.mxu0 0
        %708 = vmatpush1.bf16.msra.mxu0 0
        %709 = vmatprep.subr.bf16.mxu0 0
        %710 = vmatpush1.bf16.msra.mxu0 0
        %711 = vmatprep.subr.bf16.mxu0 0
        %712 = vmatpush1.bf16.msra.mxu0 0
        %713 = vmatprep.mubr.bf16.mxu0 0
        %714 = vmatmul.mubr.bf16.gmra.mrb[0].mxu0 %v664
        %v715 = vpop.f32.mrb[0].mxu0
        %v716 = vadd.f32 0.0, %v715
        %v717 = vpop.f32.mrb[0].mxu0
        %v718 = vpop.f32.mrb[0].mxu0
        %v719 = vadd.f32 0.0, %v718
        %v720 = vpop.f32.mrb[0].mxu0
        %721 = vmatprep.mubr.bf16.mxu0 0
        %722 = vmatmul.mubr.bf16.gmra.mrb[0].mxu0 %v667
        %v723 = vpop.f32.mrb[0].mxu0
        %v724 = vadd.f32 0.0, %v723
        %v725 = vpop.f32.mrb[0].mxu0
        %v726 = vpop.f32.mrb[0].mxu0
        %v727 = vadd.f32 0.0, %v726
        %v728 = vpop.f32.mrb[0].mxu0
        %729 = vmatprep.mubr.bf16.mxu0 0
        %730 = vmatmul.mubr.bf16.gmra.mrb[0].mxu0 %v670
        %v731 = vpop.f32.mrb[0].mxu0
        %v732 = vadd.f32 0.0, %v731
        %v733 = vpop.f32.mrb[0].mxu0
        %v734 = vpop.f32.mrb[0].mxu0
        %v735 = vadd.f32 0.0, %v734
        %v736 = vpop.f32.mrb[0].mxu0
        %737 = vmatprep.mubr.bf16.mxu0 0
        %738 = vmatmul.mubr.bf16.gmra.mrb[0].mxu0 %v673
        %v739 = vpop.f32.mrb[0].mxu0
        %v740 = vadd.f32 0.0, %v739
        %v741 = vpop.f32.mrb[0].mxu0
        %v742 = vpop.f32.mrb[0].mxu0
        %v743 = vadd.f32 0.0, %v742
        %v744 = vpop.f32.mrb[0].mxu0
        %745 = vmatprep.mubr.bf16.mxu0 0
        %746 = vmatmul.mubr.bf16.gmra.mrb[0].mxu0 %v676
        %v747 = vpop.f32.mrb[0].mxu0
        %v748 = vadd.f32 0.0, %v747
        %v749 = vpop.f32.mrb[0].mxu0
        %v750 = vpop.f32.mrb[0].mxu0
        %v751 = vadd.f32 0.0, %v750
        %v752 = vpop.f32.mrb[0].mxu0
        %753 = vmatprep.mubr.bf16.mxu0 0
        %754 = vmatmul.mubr.bf16.gmra.mrb[0].mxu0 %v679
        %v755 = vpop.f32.mrb[0].mxu0
        %v756 = vadd.f32 0.0, %v755
        %v757 = vpop.f32.mrb[0].mxu0
        %v758 = vpop.f32.mrb[0].mxu0
        %v759 = vpop.f32.mrb[0].mxu0
        %760 = vdwg.mxu0
        %v761 = vadd.f32 %v591, %v716
        %v762 = vadd.f32 %v594, %v719
        %v763 = vadd.f32 %v599, %v724
        %v764 = vadd.f32 %v602, %v727
        %v765 = vadd.f32 %v607, %v732
        %v766 = vadd.f32 %v610, %v735
        %v767 = vadd.f32 %v615, %v740
        %v768 = vadd.f32 %v618, %v743
        %v769 = vadd.f32 %v623, %v748
        %v770 = vadd.f32 %v626, %v751
        %v771 = vadd.f32 %v631, %v756
        %v772 = vpack.c.bf16 %v364, %v363
        %v773 = vpack.c.bf16 %v366, %v365
        %v774 = vpack.c.bf16 %v368, %v367
        %v775 = vpack.c.bf16 %v370, %v369
        %v776 = vpack.c.bf16 %v372, %v371
        %v777 = vpack.c.bf16 %v373, %v373
        %s778 = scalar_lea.vmem [#allocation3], 24
        %v779 = vld [vmem:[%s778] sm:$0xf]
        %v780 = vld [vmem:[%s778 + $0x4] sm:$0xf]
        %v782 = vshrl.u32 %v772, 16
        %v784 = vshll.u32 %v772, 16
        %v786 = vrot.slane %v784, 1
        %v787 = vor.u32 %v782, %v786
        %v789 = vshll.u32 %v773, 16
        %v791 = vrot.slane %v789, 1
        %v792 = vsel %vm386, %v787, %v791
        %v793 = vshrl.u32 %v773, 16
        %v795 = vor.u32 %v793, %v791
        %v797 = vshll.u32 %v774, 16
        %v799 = vrot.slane %v797, 1
        %v800 = vsel %vm386, %v795, %v799
        %v801 = vshrl.u32 %v774, 16
        %v803 = vor.u32 %v801, %v799
        %v805 = vshll.u32 %v775, 16
        %v807 = vrot.slane %v805, 1
        %v808 = vsel %vm386, %v803, %v807
        %v809 = vshrl.u32 %v775, 16
        %v811 = vor.u32 %v809, %v807
        %v813 = vshll.u32 %v776, 16
        %v815 = vrot.slane %v813, 1
        %v816 = vsel %vm386, %v811, %v815
        %v817 = vshrl.u32 %v776, 16
        %v819 = vor.u32 %v817, %v815
        %v821 = vshll.u32 %v777, 16
        %v823 = vrot.slane %v821, 1
        %v824 = vsel %vm386, %v819, %v823
        %v825 = vshrl.u32 %v777, 16
        %v829 = vunpack.c.l.b16 %v779
        %v830 = vunpack.c.l.b16 %v780
        %v831 = vpack.c.b16 %v830, %v829
        %v834 = vsel %vm439, %v792, 0
        %v837 = vsel %vm439, %v800, 0
        %v840 = vsel %vm439, %v808, 0
        %v843 = vsel %vm439, %v816, 0
        %v846 = vsel %vm439, %v824, 0
        %v849 = vsel %vm439, %v825, 0
        %851 = vmatprep.subr.bf16.mxu0 0
        %852 = vmatpush1.bf16.msra.mxu0 %v831
        %853 = vmatprep.subr.bf16.mxu0 0
        %854 = vmatpush1.bf16.msra.mxu0 0
        %855 = vmatprep.subr.bf16.mxu0 0
        %856 = vmatpush1.bf16.msra.mxu0 0
        %857 = vmatprep.subr.bf16.mxu0 0
        %858 = vmatpush1.bf16.msra.mxu0 0
        %859 = vmatprep.subr.bf16.mxu0 0
        %860 = vmatpush1.bf16.msra.mxu0 0
        %861 = vmatprep.subr.bf16.mxu0 0
        %862 = vmatpush1.bf16.msra.mxu0 0
        %863 = vmatprep.subr.bf16.mxu0 0
        %864 = vmatpush1.bf16.msra.mxu0 0
        %865 = vmatprep.subr.bf16.mxu0 0
        %866 = vmatpush1.bf16.msra.mxu0 0
        %867 = vmatprep.subr.bf16.mxu0 0
        %868 = vmatpush1.bf16.msra.mxu0 0
        %869 = vmatprep.subr.bf16.mxu0 0
        %870 = vmatpush1.bf16.msra.mxu0 0
        %871 = vmatprep.subr.bf16.mxu0 0
        %872 = vmatpush1.bf16.msra.mxu0 0
        %873 = vmatprep.subr.bf16.mxu0 0
        %874 = vmatpush1.bf16.msra.mxu0 0
        %875 = vmatprep.subr.bf16.mxu0 0
        %876 = vmatpush1.bf16.msra.mxu0 0
        %877 = vmatprep.subr.bf16.mxu0 0
        %878 = vmatpush1.bf16.msra.mxu0 0
        %879 = vmatprep.subr.bf16.mxu0 0
        %880 = vmatpush1.bf16.msra.mxu0 0
        %881 = vmatprep.subr.bf16.mxu0 0
        %882 = vmatpush1.bf16.msra.mxu0 0
        %883 = vmatprep.mubr.bf16.mxu0 0
        %884 = vmatmul.mubr.bf16.gmra.mrb[0].mxu0 %v834
        %v885 = vpop.f32.mrb[0].mxu0
        %v886 = vadd.f32 0.0, %v885
        %v887 = vpop.f32.mrb[0].mxu0
        %v888 = vpop.f32.mrb[0].mxu0
        %v889 = vadd.f32 0.0, %v888
        %v890 = vpop.f32.mrb[0].mxu0
        %891 = vmatprep.mubr.bf16.mxu0 0
        %892 = vmatmul.mubr.bf16.gmra.mrb[0].mxu0 %v837
        %v893 = vpop.f32.mrb[0].mxu0
        %v894 = vadd.f32 0.0, %v893
        %v895 = vpop.f32.mrb[0].mxu0
        %v896 = vpop.f32.mrb[0].mxu0
        %v897 = vadd.f32 0.0, %v896
        %v898 = vpop.f32.mrb[0].mxu0
        %899 = vmatprep.mubr.bf16.mxu0 0
        %900 = vmatmul.mubr.bf16.gmra.mrb[0].mxu0 %v840
        %v901 = vpop.f32.mrb[0].mxu0
        %v902 = vadd.f32 0.0, %v901
        %v903 = vpop.f32.mrb[0].mxu0
        %v904 = vpop.f32.mrb[0].mxu0
        %v905 = vadd.f32 0.0, %v904
        %v906 = vpop.f32.mrb[0].mxu0
        %907 = vmatprep.mubr.bf16.mxu0 0
        %908 = vmatmul.mubr.bf16.gmra.mrb[0].mxu0 %v843
        %v909 = vpop.f32.mrb[0].mxu0
        %v910 = vadd.f32 0.0, %v909
        %v911 = vpop.f32.mrb[0].mxu0
        %v912 = vpop.f32.mrb[0].mxu0
        %v913 = vadd.f32 0.0, %v912
        %v914 = vpop.f32.mrb[0].mxu0
        %915 = vmatprep.mubr.bf16.mxu0 0
        %916 = vmatmul.mubr.bf16.gmra.mrb[0].mxu0 %v846
        %v917 = vpop.f32.mrb[0].mxu0
        %v918 = vadd.f32 0.0, %v917
        %v919 = vpop.f32.mrb[0].mxu0
        %v920 = vpop.f32.mrb[0].mxu0
        %v921 = vadd.f32 0.0, %v920
        %v922 = vpop.f32.mrb[0].mxu0
        %923 = vmatprep.mubr.bf16.mxu0 0
        %924 = vmatmul.mubr.bf16.gmra.mrb[0].mxu0 %v849
        %v925 = vpop.f32.mrb[0].mxu0
        %v926 = vadd.f32 0.0, %v925
        %v927 = vpop.f32.mrb[0].mxu0
        %v928 = vpop.f32.mrb[0].mxu0
        %v929 = vpop.f32.mrb[0].mxu0
        %930 = vdwg.mxu0
        %v931 = vadd.f32 %v761, %v886
        %v932 = vadd.f32 %v762, %v889
        %v933 = vadd.f32 %v763, %v894
        %v934 = vadd.f32 %v764, %v897
        %v935 = vadd.f32 %v765, %v902
        %v936 = vadd.f32 %v766, %v905
        %v937 = vadd.f32 %v767, %v910
        %v938 = vadd.f32 %v768, %v913
        %v939 = vadd.f32 %v769, %v918
        %v940 = vadd.f32 %v770, %v921
        %v941 = vadd.f32 %v771, %v926
        %s942 = scalar_lea.vmem [#allocation3], 32
        %v943 = vld [vmem:[%s942] sm:$0xf]
        %v944 = vld [vmem:[%s942 + $0x4] sm:$0xf]
        %v951 = vrot.slane %v772, 1
        %v952 = vrot.slane %v773, 1
        %v953 = vsel %vm645, %v951, %v952
        %v954 = vrot.slane %v774, 1
        %v955 = vsel %vm645, %v952, %v954
        %v956 = vrot.slane %v775, 1
        %v957 = vsel %vm645, %v954, %v956
        %v958 = vrot.slane %v776, 1
        %v959 = vsel %vm645, %v956, %v958
        %v960 = vrot.slane %v777, 1
        %v961 = vsel %vm645, %v958, %v960
        %v964 = vunpack.c.l.b16 %v943
        %v965 = vunpack.c.l.b16 %v944
        %v966 = vpack.c.b16 %v965, %v964
        %v969 = vsel %vm439, %v953, 0
        %v972 = vsel %vm439, %v955, 0
        %v975 = vsel %vm439, %v957, 0
        %v978 = vsel %vm439, %v959, 0
        %v981 = vsel %vm439, %v961, 0
        %v984 = vsel %vm439, %v960, 0
        %986 = vmatprep.subr.bf16.mxu0 0
        %987 = vmatpush1.bf16.msra.mxu0 %v966
        %988 = vmatprep.subr.bf16.mxu0 0
        %989 = vmatpush1.bf16.msra.mxu0 0
        %990 = vmatprep.subr.bf16.mxu0 0
        %991 = vmatpush1.bf16.msra.mxu0 0
        %992 = vmatprep.subr.bf16.mxu0 0
        %993 = vmatpush1.bf16.msra.mxu0 0
        %994 = vmatprep.subr.bf16.mxu0 0
        %995 = vmatpush1.bf16.msra.mxu0 0
        %996 = vmatprep.subr.bf16.mxu0 0
        %997 = vmatpush1.bf16.msra.mxu0 0
        %998 = vmatprep.subr.bf16.mxu0 0
        %999 = vmatpush1.bf16.msra.mxu0 0
        %1000 = vmatprep.subr.bf16.mxu0 0
        %1001 = vmatpush1.bf16.msra.mxu0 0
        %1002 = vmatprep.subr.bf16.mxu0 0
        %1003 = vmatpush1.bf16.msra.mxu0 0
        %1004 = vmatprep.subr.bf16.mxu0 0
        %1005 = vmatpush1.bf16.msra.mxu0 0
        %1006 = vmatprep.subr.bf16.mxu0 0
        %1007 = vmatpush1.bf16.msra.mxu0 0
        %1008 = vmatprep.subr.bf16.mxu0 0
        %1009 = vmatpush1.bf16.msra.mxu0 0
        %1010 = vmatprep.subr.bf16.mxu0 0
        %1011 = vmatpush1.bf16.msra.mxu0 0
        %1012 = vmatprep.subr.bf16.mxu0 0
        %1013 = vmatpush1.bf16.msra.mxu0 0
        %1014 = vmatprep.subr.bf16.mxu0 0
        %1015 = vmatpush1.bf16.msra.mxu0 0
        %1016 = vmatprep.subr.bf16.mxu0 0
        %1017 = vmatpush1.bf16.msra.mxu0 0
        %1018 = vmatprep.mubr.bf16.mxu0 0
        %1019 = vmatmul.mubr.bf16.gmra.mrb[0].mxu0 %v969
        %v1020 = vpop.f32.mrb[0].mxu0
        %v1021 = vadd.f32 0.0, %v1020
        %v1022 = vpop.f32.mrb[0].mxu0
        %v1023 = vpop.f32.mrb[0].mxu0
        %v1024 = vadd.f32 0.0, %v1023
        %v1025 = vpop.f32.mrb[0].mxu0
        %1026 = vmatprep.mubr.bf16.mxu0 0
        %1027 = vmatmul.mubr.bf16.gmra.mrb[0].mxu0 %v972
        %v1028 = vpop.f32.mrb[0].mxu0
        %v1029 = vadd.f32 0.0, %v1028
        %v1030 = vpop.f32.mrb[0].mxu0
        %v1031 = vpop.f32.mrb[0].mxu0
        %v1032 = vadd.f32 0.0, %v1031
        %v1033 = vpop.f32.mrb[0].mxu0
        %1034 = vmatprep.mubr.bf16.mxu0 0
        %1035 = vmatmul.mubr.bf16.gmra.mrb[0].mxu0 %v975
        %v1036 = vpop.f32.mrb[0].mxu0
        %v1037 = vadd.f32 0.0, %v1036
        %v1038 = vpop.f32.mrb[0].mxu0
        %v1039 = vpop.f32.mrb[0].mxu0
        %v1040 = vadd.f32 0.0, %v1039
        %v1041 = vpop.f32.mrb[0].mxu0
        %1042 = vmatprep.mubr.bf16.mxu0 0
        %1043 = vmatmul.mubr.bf16.gmra.mrb[0].mxu0 %v978
        %v1044 = vpop.f32.mrb[0].mxu0
        %v1045 = vadd.f32 0.0, %v1044
        %v1046 = vpop.f32.mrb[0].mxu0
        %v1047 = vpop.f32.mrb[0].mxu0
        %v1048 = vadd.f32 0.0, %v1047
        %v1049 = vpop.f32.mrb[0].mxu0
        %1050 = vmatprep.mubr.bf16.mxu0 0
        %1051 = vmatmul.mubr.bf16.gmra.mrb[0].mxu0 %v981
        %v1052 = vpop.f32.mrb[0].mxu0
        %v1053 = vadd.f32 0.0, %v1052
        %v1054 = vpop.f32.mrb[0].mxu0
        %v1055 = vpop.f32.mrb[0].mxu0
        %v1056 = vadd.f32 0.0, %v1055
        %v1057 = vpop.f32.mrb[0].mxu0
        %1058 = vmatprep.mubr.bf16.mxu0 0
        %1059 = vmatmul.mubr.bf16.gmra.mrb[0].mxu0 %v984
        %v1060 = vpop.f32.mrb[0].mxu0
        %v1061 = vadd.f32 0.0, %v1060
        %v1062 = vpop.f32.mrb[0].mxu0
        %v1063 = vpop.f32.mrb[0].mxu0
        %v1064 = vpop.f32.mrb[0].mxu0
        %1065 = vdwg.mxu0
        %v1066 = vadd.f32 %v931, %v1021
        %v1067 = vadd.f32 %v932, %v1024
        %v1068 = vadd.f32 %v933, %v1029
        %v1069 = vadd.f32 %v934, %v1032
        %v1070 = vadd.f32 %v935, %v1037
        %v1071 = vadd.f32 %v936, %v1040
        %v1072 = vadd.f32 %v937, %v1045
        %v1073 = vadd.f32 %v938, %v1048
        %v1074 = vadd.f32 %v939, %v1053
        %v1075 = vadd.f32 %v940, %v1056
        %v1076 = vadd.f32 %v941, %v1061
        %s1077 = scalar_lea.vmem [#allocation3], 40
        %v1078 = vld [vmem:[%s1077] sm:$0xf]
        %v1079 = vld [vmem:[%s1077 + $0x4] sm:$0xf]
        %vm1080 = vsmask.f32 6400
        %v1081 = vrot.slane %v782, 1
        %v1082 = vrot.slane %v784, 2
        %v1083 = vor.u32 %v1081, %v1082
        %v1084 = vrot.slane %v793, 1
        %v1085 = vrot.slane %v789, 2
        %v1086 = vor.u32 %v1084, %v1085
        %v1087 = vsel %vm1080, %v1083, %v1086
        %v1088 = vrot.slane %v801, 1
        %v1089 = vrot.slane %v797, 2
        %v1090 = vor.u32 %v1088, %v1089
        %v1091 = vsel %vm1080, %v1086, %v1090
        %v1092 = vrot.slane %v809, 1
        %v1093 = vrot.slane %v805, 2
        %v1094 = vor.u32 %v1092, %v1093
        %v1095 = vsel %vm1080, %v1090, %v1094
        %v1096 = vrot.slane %v817, 1
        %v1097 = vrot.slane %v813, 2
        %v1098 = vor.u32 %v1096, %v1097
        %v1099 = vsel %vm1080, %v1094, %v1098
        %v1100 = vrot.slane %v825, 1
        %v1101 = vrot.slane %v821, 2
        %v1102 = vor.u32 %v1100, %v1101
        %v1103 = vsel %vm1080, %v1098, %v1102
        %v1106 = vunpack.c.l.b16 %v1078
        %v1107 = vunpack.c.l.b16 %v1079
        %v1108 = vpack.c.b16 %v1107, %v1106
        %v1111 = vsel %vm439, %v1087, 0
        %v1114 = vsel %vm439, %v1091, 0
        %v1117 = vsel %vm439, %v1095, 0
        %v1120 = vsel %vm439, %v1099, 0
        %v1123 = vsel %vm439, %v1103, 0
        %v1126 = vsel %vm439, %v1100, 0
        %1128 = vmatprep.subr.bf16.mxu0 0
        %1129 = vmatpush1.bf16.msra.mxu0 %v1108
        %1130 = vmatprep.subr.bf16.mxu0 0
        %1131 = vmatpush1.bf16.msra.mxu0 0
        %1132 = vmatprep.subr.bf16.mxu0 0
        %1133 = vmatpush1.bf16.msra.mxu0 0
        %1134 = vmatprep.subr.bf16.mxu0 0
        %1135 = vmatpush1.bf16.msra.mxu0 0
        %1136 = vmatprep.subr.bf16.mxu0 0
        %1137 = vmatpush1.bf16.msra.mxu0 0
        %1138 = vmatprep.subr.bf16.mxu0 0
        %1139 = vmatpush1.bf16.msra.mxu0 0
        %1140 = vmatprep.subr.bf16.mxu0 0
        %1141 = vmatpush1.bf16.msra.mxu0 0
        %1142 = vmatprep.subr.bf16.mxu0 0
        %1143 = vmatpush1.bf16.msra.mxu0 0
        %1144 = vmatprep.subr.bf16.mxu0 0
        %1145 = vmatpush1.bf16.msra.mxu0 0
        %1146 = vmatprep.subr.bf16.mxu0 0
        %1147 = vmatpush1.bf16.msra.mxu0 0
        %1148 = vmatprep.subr.bf16.mxu0 0
        %1149 = vmatpush1.bf16.msra.mxu0 0
        %1150 = vmatprep.subr.bf16.mxu0 0
        %1151 = vmatpush1.bf16.msra.mxu0 0
        %1152 = vmatprep.subr.bf16.mxu0 0
        %1153 = vmatpush1.bf16.msra.mxu0 0
        %1154 = vmatprep.subr.bf16.mxu0 0
        %1155 = vmatpush1.bf16.msra.mxu0 0
        %1156 = vmatprep.subr.bf16.mxu0 0
        %1157 = vmatpush1.bf16.msra.mxu0 0
        %1158 = vmatprep.subr.bf16.mxu0 0
        %1159 = vmatpush1.bf16.msra.mxu0 0
        %1160 = vmatprep.mubr.bf16.mxu0 0
        %1161 = vmatmul.mubr.bf16.gmra.mrb[0].mxu0 %v1111
        %v1162 = vpop.f32.mrb[0].mxu0
        %v1163 = vadd.f32 0.0, %v1162
        %v1164 = vpop.f32.mrb[0].mxu0
        %v1165 = vpop.f32.mrb[0].mxu0
        %v1166 = vadd.f32 0.0, %v1165
        %v1167 = vpop.f32.mrb[0].mxu0
        %1168 = vmatprep.mubr.bf16.mxu0 0
        %1169 = vmatmul.mubr.bf16.gmra.mrb[0].mxu0 %v1114
        %v1170 = vpop.f32.mrb[0].mxu0
        %v1171 = vadd.f32 0.0, %v1170
        %v1172 = vpop.f32.mrb[0].mxu0
        %v1173 = vpop.f32.mrb[0].mxu0
        %v1174 = vadd.f32 0.0, %v1173
        %v1175 = vpop.f32.mrb[0].mxu0
        %1176 = vmatprep.mubr.bf16.mxu0 0
        %1177 = vmatmul.mubr.bf16.gmra.mrb[0].mxu0 %v1117
        %v1178 = vpop.f32.mrb[0].mxu0
        %v1179 = vadd.f32 0.0, %v1178
        %v1180 = vpop.f32.mrb[0].mxu0
        %v1181 = vpop.f32.mrb[0].mxu0
        %v1182 = vadd.f32 0.0, %v1181
        %v1183 = vpop.f32.mrb[0].mxu0
        %1184 = vmatprep.mubr.bf16.mxu0 0
        %1185 = vmatmul.mubr.bf16.gmra.mrb[0].mxu0 %v1120
        %v1186 = vpop.f32.mrb[0].mxu0
        %v1187 = vadd.f32 0.0, %v1186
        %v1188 = vpop.f32.mrb[0].mxu0
        %v1189 = vpop.f32.mrb[0].mxu0
        %v1190 = vadd.f32 0.0, %v1189
        %v1191 = vpop.f32.mrb[0].mxu0
        %1192 = vmatprep.mubr.bf16.mxu0 0
        %1193 = vmatmul.mubr.bf16.gmra.mrb[0].mxu0 %v1123
        %v1194 = vpop.f32.mrb[0].mxu0
        %v1195 = vadd.f32 0.0, %v1194
        %v1196 = vpop.f32.mrb[0].mxu0
        %v1197 = vpop.f32.mrb[0].mxu0
        %v1198 = vadd.f32 0.0, %v1197
        %v1199 = vpop.f32.mrb[0].mxu0
        %1200 = vmatprep.mubr.bf16.mxu0 0
        %1201 = vmatmul.mubr.bf16.gmra.mrb[0].mxu0 %v1126
        %v1202 = vpop.f32.mrb[0].mxu0
        %v1203 = vadd.f32 0.0, %v1202
        %v1204 = vpop.f32.mrb[0].mxu0
        %v1205 = vpop.f32.mrb[0].mxu0
        %v1206 = vpop.f32.mrb[0].mxu0
        %1207 = vdwg.mxu0
        %v1208 = vadd.f32 %v1066, %v1163
        %v1209 = vadd.f32 %v1067, %v1166
        %v1210 = vadd.f32 %v1068, %v1171
        %v1211 = vadd.f32 %v1069, %v1174
        %v1212 = vadd.f32 %v1070, %v1179
        %v1213 = vadd.f32 %v1071, %v1182
        %v1214 = vadd.f32 %v1072, %v1187
        %v1215 = vadd.f32 %v1073, %v1190
        %v1216 = vadd.f32 %v1074, %v1195
        %v1217 = vadd.f32 %v1075, %v1198
        %v1218 = vadd.f32 %v1076, %v1203
        %v1219 = vpack.c.bf16 %v373, %v372
        %v1220 = vpack.c.bf16 %v374, %v374
        %s1221 = scalar_lea.vmem [#allocation3], 48
        %v1222 = vld [vmem:[%s1221] sm:$0xf]
        %v1223 = vld [vmem:[%s1221 + $0x4] sm:$0xf]
        %v1226 = vrot.slane %v1219, 1
        %v1227 = vsel %vm645, %v653, %v1226
        %v1228 = vrot.slane %v1220, 1
        %v1229 = vsel %vm645, %v1226, %v1228
        %v1232 = vunpack.c.l.b16 %v1222
        %v1233 = vunpack.c.l.b16 %v1223
        %v1234 = vpack.c.b16 %v1233, %v1232
        %v1237 = vsel %vm439, %v1227, 0
        %v1240 = vsel %vm439, %v1229, 0
        %v1243 = vsel %vm439, %v1228, 0
        %1245 = vmatprep.subr.bf16.mxu0 0
        %1246 = vmatpush1.bf16.msra.mxu0 %v1234
        %1247 = vmatprep.subr.bf16.mxu0 0
        %1248 = vmatpush1.bf16.msra.mxu0 0
        %1249 = vmatprep.subr.bf16.mxu0 0
        %1250 = vmatpush1.bf16.msra.mxu0 0
        %1251 = vmatprep.subr.bf16.mxu0 0
        %1252 = vmatpush1.bf16.msra.mxu0 0
        %1253 = vmatprep.subr.bf16.mxu0 0
        %1254 = vmatpush1.bf16.msra.mxu0 0
        %1255 = vmatprep.subr.bf16.mxu0 0
        %1256 = vmatpush1.bf16.msra.mxu0 0
        %1257 = vmatprep.subr.bf16.mxu0 0
        %1258 = vmatpush1.bf16.msra.mxu0 0
        %1259 = vmatprep.subr.bf16.mxu0 0
        %1260 = vmatpush1.bf16.msra.mxu0 0
        %1261 = vmatprep.subr.bf16.mxu0 0
        %1262 = vmatpush1.bf16.msra.mxu0 0
        %1263 = vmatprep.subr.bf16.mxu0 0
        %1264 = vmatpush1.bf16.msra.mxu0 0
        %1265 = vmatprep.subr.bf16.mxu0 0
        %1266 = vmatpush1.bf16.msra.mxu0 0
        %1267 = vmatprep.subr.bf16.mxu0 0
        %1268 = vmatpush1.bf16.msra.mxu0 0
        %1269 = vmatprep.subr.bf16.mxu0 0
        %1270 = vmatpush1.bf16.msra.mxu0 0
        %1271 = vmatprep.subr.bf16.mxu0 0
        %1272 = vmatpush1.bf16.msra.mxu0 0
        %1273 = vmatprep.subr.bf16.mxu0 0
        %1274 = vmatpush1.bf16.msra.mxu0 0
        %1275 = vmatprep.subr.bf16.mxu0 0
        %1276 = vmatpush1.bf16.msra.mxu0 0
        %1277 = vmatprep.mubr.bf16.mxu0 0
        %1278 = vmatmul.mubr.bf16.gmra.mrb[0].mxu0 %v667
        %v1279 = vpop.f32.mrb[0].mxu0
        %v1280 = vadd.f32 0.0, %v1279
        %v1281 = vpop.f32.mrb[0].mxu0
        %v1282 = vpop.f32.mrb[0].mxu0
        %v1283 = vadd.f32 0.0, %v1282
        %v1284 = vpop.f32.mrb[0].mxu0
        %1285 = vmatprep.mubr.bf16.mxu0 0
        %1286 = vmatmul.mubr.bf16.gmra.mrb[0].mxu0 %v670
        %v1287 = vpop.f32.mrb[0].mxu0
        %v1288 = vadd.f32 0.0, %v1287
        %v1289 = vpop.f32.mrb[0].mxu0
        %v1290 = vpop.f32.mrb[0].mxu0
        %v1291 = vadd.f32 0.0, %v1290
        %v1292 = vpop.f32.mrb[0].mxu0
        %1293 = vmatprep.mubr.bf16.mxu0 0
        %1294 = vmatmul.mubr.bf16.gmra.mrb[0].mxu0 %v673
        %v1295 = vpop.f32.mrb[0].mxu0
        %v1296 = vadd.f32 0.0, %v1295
        %v1297 = vpop.f32.mrb[0].mxu0
        %v1298 = vpop.f32.mrb[0].mxu0
        %v1299 = vadd.f32 0.0, %v1298
        %v1300 = vpop.f32.mrb[0].mxu0
        %1301 = vmatprep.mubr.bf16.mxu0 0
        %1302 = vmatmul.mubr.bf16.gmra.mrb[0].mxu0 %v1237
        %v1303 = vpop.f32.mrb[0].mxu0
        %v1304 = vadd.f32 0.0, %v1303
        %v1305 = vpop.f32.mrb[0].mxu0
        %v1306 = vpop.f32.mrb[0].mxu0
        %v1307 = vadd.f32 0.0, %v1306
        %v1308 = vpop.f32.mrb[0].mxu0
        %1309 = vmatprep.mubr.bf16.mxu0 0
        %1310 = vmatmul.mubr.bf16.gmra.mrb[0].mxu0 %v1240
        %v1311 = vpop.f32.mrb[0].mxu0
        %v1312 = vadd.f32 0.0, %v1311
        %v1313 = vpop.f32.mrb[0].mxu0
        %v1314 = vpop.f32.mrb[0].mxu0
        %v1315 = vadd.f32 0.0, %v1314
        %v1316 = vpop.f32.mrb[0].mxu0
        %1317 = vmatprep.mubr.bf16.mxu0 0
        %1318 = vmatmul.mubr.bf16.gmra.mrb[0].mxu0 %v1243
        %v1319 = vpop.f32.mrb[0].mxu0
        %v1320 = vadd.f32 0.0, %v1319
        %v1321 = vpop.f32.mrb[0].mxu0
        %v1322 = vpop.f32.mrb[0].mxu0
        %v1323 = vpop.f32.mrb[0].mxu0
        %1324 = vdwg.mxu0
        %v1325 = vadd.f32 %v1208, %v1280
        %v1326 = vadd.f32 %v1209, %v1283
        %v1327 = vadd.f32 %v1210, %v1288
        %v1328 = vadd.f32 %v1211, %v1291
        %v1329 = vadd.f32 %v1212, %v1296
        %v1330 = vadd.f32 %v1213, %v1299
        %v1331 = vadd.f32 %v1214, %v1304
        %v1332 = vadd.f32 %v1215, %v1307
        %v1333 = vadd.f32 %v1216, %v1312
        %v1334 = vadd.f32 %v1217, %v1315
        %v1335 = vadd.f32 %v1218, %v1320
        %s1336 = scalar_lea.vmem [#allocation3], 56
        %v1337 = vld [vmem:[%s1336] sm:$0xf]
        %v1338 = vld [vmem:[%s1336 + $0x4] sm:$0xf]
        %v1339 = vrot.slane %v399, 1
        %v1340 = vrot.slane %v395, 2
        %v1341 = vor.u32 %v1339, %v1340
        %v1342 = vrot.slane %v407, 1
        %v1343 = vrot.slane %v403, 2
        %v1344 = vor.u32 %v1342, %v1343
        %v1345 = vsel %vm1080, %v1341, %v1344
        %v1346 = vrot.slane %v415, 1
        %v1347 = vrot.slane %v411, 2
        %v1348 = vor.u32 %v1346, %v1347
        %v1349 = vsel %vm1080, %v1344, %v1348
        %v1350 = vrot.slane %v423, 1
        %v1351 = vrot.slane %v419, 2
        %v1352 = vor.u32 %v1350, %v1351
        %v1353 = vsel %vm1080, %v1348, %v1352
        %v1355 = vshrl.u32 %v1219, 16
        %v1357 = vrot.slane %v1355, 1
        %v1358 = vshll.u32 %v1219, 16
        %v1360 = vrot.slane %v1358, 2
        %v1361 = vor.u32 %v1357, %v1360
        %v1362 = vsel %vm1080, %v1352, %v1361
        %v1364 = vshrl.u32 %v1220, 16
        %v1366 = vrot.slane %v1364, 1
        %v1367 = vshll.u32 %v1220, 16
        %v1369 = vrot.slane %v1367, 2
        %v1370 = vor.u32 %v1366, %v1369
        %v1371 = vsel %vm1080, %v1361, %v1370
        %v1374 = vunpack.c.l.b16 %v1337
        %v1375 = vunpack.c.l.b16 %v1338
        %v1376 = vpack.c.b16 %v1375, %v1374
        %v1379 = vsel %vm439, %v1345, 0
        %v1382 = vsel %vm439, %v1349, 0
        %v1385 = vsel %vm439, %v1353, 0
        %v1388 = vsel %vm439, %v1362, 0
        %v1391 = vsel %vm439, %v1371, 0
        %v1394 = vsel %vm439, %v1366, 0
        %1396 = vmatprep.subr.bf16.mxu0 0
        %1397 = vmatpush1.bf16.msra.mxu0 %v1376
        %1398 = vmatprep.subr.bf16.mxu0 0
        %1399 = vmatpush1.bf16.msra.mxu0 0
        %1400 = vmatprep.subr.bf16.mxu0 0
        %1401 = vmatpush1.bf16.msra.mxu0 0
        %1402 = vmatprep.subr.bf16.mxu0 0
        %1403 = vmatpush1.bf16.msra.mxu0 0
        %1404 = vmatprep.subr.bf16.mxu0 0
        %1405 = vmatpush1.bf16.msra.mxu0 0
        %1406 = vmatprep.subr.bf16.mxu0 0
        %1407 = vmatpush1.bf16.msra.mxu0 0
        %1408 = vmatprep.subr.bf16.mxu0 0
        %1409 = vmatpush1.bf16.msra.mxu0 0
        %1410 = vmatprep.subr.bf16.mxu0 0
        %1411 = vmatpush1.bf16.msra.mxu0 0
        %1412 = vmatprep.subr.bf16.mxu0 0
        %1413 = vmatpush1.bf16.msra.mxu0 0
        %1414 = vmatprep.subr.bf16.mxu0 0
        %1415 = vmatpush1.bf16.msra.mxu0 0
        %1416 = vmatprep.subr.bf16.mxu0 0
        %1417 = vmatpush1.bf16.msra.mxu0 0
        %1418 = vmatprep.subr.bf16.mxu0 0
        %1419 = vmatpush1.bf16.msra.mxu0 0
        %1420 = vmatprep.subr.bf16.mxu0 0
        %1421 = vmatpush1.bf16.msra.mxu0 0
        %1422 = vmatprep.subr.bf16.mxu0 0
        %1423 = vmatpush1.bf16.msra.mxu0 0
        %1424 = vmatprep.subr.bf16.mxu0 0
        %1425 = vmatpush1.bf16.msra.mxu0 0
        %1426 = vmatprep.subr.bf16.mxu0 0
        %1427 = vmatpush1.bf16.msra.mxu0 0
        %1428 = vmatprep.mubr.bf16.mxu0 0
        %1429 = vmatmul.mubr.bf16.gmra.mrb[0].mxu0 %v1379
        %v1430 = vpop.f32.mrb[0].mxu0
        %v1431 = vadd.f32 0.0, %v1430
        %v1432 = vpop.f32.mrb[0].mxu0
        %v1433 = vpop.f32.mrb[0].mxu0
        %v1434 = vadd.f32 0.0, %v1433
        %v1435 = vpop.f32.mrb[0].mxu0
        %1436 = vmatprep.mubr.bf16.mxu0 0
        %1437 = vmatmul.mubr.bf16.gmra.mrb[0].mxu0 %v1382
        %v1438 = vpop.f32.mrb[0].mxu0
        %v1439 = vadd.f32 0.0, %v1438
        %v1440 = vpop.f32.mrb[0].mxu0
        %v1441 = vpop.f32.mrb[0].mxu0
        %v1442 = vadd.f32 0.0, %v1441
        %v1443 = vpop.f32.mrb[0].mxu0
        %1444 = vmatprep.mubr.bf16.mxu0 0
        %1445 = vmatmul.mubr.bf16.gmra.mrb[0].mxu0 %v1385
        %v1446 = vpop.f32.mrb[0].mxu0
        %v1447 = vadd.f32 0.0, %v1446
        %v1448 = vpop.f32.mrb[0].mxu0
        %v1449 = vpop.f32.mrb[0].mxu0
        %v1450 = vadd.f32 0.0, %v1449
        %v1451 = vpop.f32.mrb[0].mxu0
        %1452 = vmatprep.mubr.bf16.mxu0 0
        %1453 = vmatmul.mubr.bf16.gmra.mrb[0].mxu0 %v1388
        %v1454 = vpop.f32.mrb[0].mxu0
        %v1455 = vadd.f32 0.0, %v1454
        %v1456 = vpop.f32.mrb[0].mxu0
        %v1457 = vpop.f32.mrb[0].mxu0
        %v1458 = vadd.f32 0.0, %v1457
        %v1459 = vpop.f32.mrb[0].mxu0
        %1460 = vmatprep.mubr.bf16.mxu0 0
        %1461 = vmatmul.mubr.bf16.gmra.mrb[0].mxu0 %v1391
        %v1462 = vpop.f32.mrb[0].mxu0
        %v1463 = vadd.f32 0.0, %v1462
        %v1464 = vpop.f32.mrb[0].mxu0
        %v1465 = vpop.f32.mrb[0].mxu0
        %v1466 = vadd.f32 0.0, %v1465
        %v1467 = vpop.f32.mrb[0].mxu0
        %1468 = vmatprep.mubr.bf16.mxu0 0
        %1469 = vmatmul.mubr.bf16.gmra.mrb[0].mxu0 %v1394
        %v1470 = vpop.f32.mrb[0].mxu0
        %v1471 = vadd.f32 0.0, %v1470
        %v1472 = vpop.f32.mrb[0].mxu0
        %v1473 = vpop.f32.mrb[0].mxu0
        %v1474 = vpop.f32.mrb[0].mxu0
        %1475 = vdwg.mxu0
        %v1476 = vadd.f32 %v1325, %v1431
        %v1477 = vadd.f32 %v1326, %v1434
        %v1478 = vadd.f32 %v1327, %v1439
        %v1479 = vadd.f32 %v1328, %v1442
        %v1480 = vadd.f32 %v1329, %v1447
        %v1481 = vadd.f32 %v1330, %v1450
        %v1482 = vadd.f32 %v1331, %v1455
        %v1483 = vadd.f32 %v1332, %v1458
        %v1484 = vadd.f32 %v1333, %v1463
        %v1485 = vadd.f32 %v1334, %v1466
        %v1486 = vadd.f32 %v1335, %v1471
        %s1487 = scalar_lea.vmem [#allocation3], 64
        %v1488 = vld [vmem:[%s1487] sm:$0xf]
        %v1489 = vld [vmem:[%s1487 + $0x4] sm:$0xf]
        %vm1490 = vcmask 1045504
        %v1491 = vrot.slane %v376, 2
        %v1492 = vrot.slane %v377, 2
        %v1493 = vsel %vm1490, %v1491, %v1492
        %v1494 = vrot.slane %v378, 2
        %v1495 = vsel %vm1490, %v1492, %v1494
        %v1496 = vrot.slane %v379, 2
        %v1497 = vsel %vm1490, %v1494, %v1496
        %v1498 = vrot.slane %v1219, 2
        %v1499 = vsel %vm1490, %v1496, %v1498
        %v1500 = vrot.slane %v1220, 2
        %v1501 = vsel %vm1490, %v1498, %v1500
        %v1504 = vunpack.c.l.b16 %v1488
        %v1505 = vunpack.c.l.b16 %v1489
        %v1506 = vpack.c.b16 %v1505, %v1504
        %v1509 = vsel %vm439, %v1493, 0
        %v1512 = vsel %vm439, %v1495, 0
        %v1515 = vsel %vm439, %v1497, 0
        %v1518 = vsel %vm439, %v1499, 0
        %v1521 = vsel %vm439, %v1501, 0
        %v1524 = vsel %vm439, %v1500, 0
        %1526 = vmatprep.subr.bf16.mxu0 0
        %1527 = vmatpush1.bf16.msra.mxu0 %v1506
        %1528 = vmatprep.subr.bf16.mxu0 0
        %1529 = vmatpush1.bf16.msra.mxu0 0
        %1530 = vmatprep.subr.bf16.mxu0 0
        %1531 = vmatpush1.bf16.msra.mxu0 0
        %1532 = vmatprep.subr.bf16.mxu0 0
        %1533 = vmatpush1.bf16.msra.mxu0 0
        %1534 = vmatprep.subr.bf16.mxu0 0
        %1535 = vmatpush1.bf16.msra.mxu0 0
        %1536 = vmatprep.subr.bf16.mxu0 0
        %1537 = vmatpush1.bf16.msra.mxu0 0
        %1538 = vmatprep.subr.bf16.mxu0 0
        %1539 = vmatpush1.bf16.msra.mxu0 0
        %1540 = vmatprep.subr.bf16.mxu0 0
        %1541 = vmatpush1.bf16.msra.mxu0 0
        %1542 = vmatprep.subr.bf16.mxu0 0
        %1543 = vmatpush1.bf16.msra.mxu0 0
        %1544 = vmatprep.subr.bf16.mxu0 0
        %1545 = vmatpush1.bf16.msra.mxu0 0
        %1546 = vmatprep.subr.bf16.mxu0 0
        %1547 = vmatpush1.bf16.msra.mxu0 0
        %1548 = vmatprep.subr.bf16.mxu0 0
        %1549 = vmatpush1.bf16.msra.mxu0 0
        %1550 = vmatprep.subr.bf16.mxu0 0
        %1551 = vmatpush1.bf16.msra.mxu0 0
        %1552 = vmatprep.subr.bf16.mxu0 0
        %1553 = vmatpush1.bf16.msra.mxu0 0
        %1554 = vmatprep.subr.bf16.mxu0 0
        %1555 = vmatpush1.bf16.msra.mxu0 0
        %1556 = vmatprep.subr.bf16.mxu0 0
        %1557 = vmatpush1.bf16.msra.mxu0 0
        %1558 = vmatprep.mubr.bf16.mxu0 0
        %1559 = vmatmul.mubr.bf16.gmra.mrb[0].mxu0 %v1509
        %v1560 = vpop.f32.mrb[0].mxu0
        %v1561 = vadd.f32 0.0, %v1560
        %v1562 = vpop.f32.mrb[0].mxu0
        %v1563 = vpop.f32.mrb[0].mxu0
        %v1564 = vadd.f32 0.0, %v1563
        %v1565 = vpop.f32.mrb[0].mxu0
        %1566 = vmatprep.mubr.bf16.mxu0 0
        %1567 = vmatmul.mubr.bf16.gmra.mrb[0].mxu0 %v1512
        %v1568 = vpop.f32.mrb[0].mxu0
        %v1569 = vadd.f32 0.0, %v1568
        %v1570 = vpop.f32.mrb[0].mxu0
        %v1571 = vpop.f32.mrb[0].mxu0
        %v1572 = vadd.f32 0.0, %v1571
        %v1573 = vpop.f32.mrb[0].mxu0
        %1574 = vmatprep.mubr.bf16.mxu0 0
        %1575 = vmatmul.mubr.bf16.gmra.mrb[0].mxu0 %v1515
        %v1576 = vpop.f32.mrb[0].mxu0
        %v1577 = vadd.f32 0.0, %v1576
        %v1578 = vpop.f32.mrb[0].mxu0
        %v1579 = vpop.f32.mrb[0].mxu0
        %v1580 = vadd.f32 0.0, %v1579
        %v1581 = vpop.f32.mrb[0].mxu0
        %1582 = vmatprep.mubr.bf16.mxu0 0
        %1583 = vmatmul.mubr.bf16.gmra.mrb[0].mxu0 %v1518
        %v1584 = vpop.f32.mrb[0].mxu0
        %v1585 = vadd.f32 0.0, %v1584
        %v1586 = vpop.f32.mrb[0].mxu0
        %v1587 = vpop.f32.mrb[0].mxu0
        %v1588 = vadd.f32 0.0, %v1587
        %v1589 = vpop.f32.mrb[0].mxu0
        %1590 = vmatprep.mubr.bf16.mxu0 0
        %1591 = vmatmul.mubr.bf16.gmra.mrb[0].mxu0 %v1521
        %v1592 = vpop.f32.mrb[0].mxu0
        %v1593 = vadd.f32 0.0, %v1592
        %v1594 = vpop.f32.mrb[0].mxu0
        %v1595 = vpop.f32.mrb[0].mxu0
        %v1596 = vadd.f32 0.0, %v1595
        %v1597 = vpop.f32.mrb[0].mxu0
        %1598 = vmatprep.mubr.bf16.mxu0 0
        %1599 = vmatmul.mubr.bf16.gmra.mrb[0].mxu0 %v1524
        %v1600 = vpop.f32.mrb[0].mxu0
        %v1601 = vadd.f32 0.0, %v1600
        %v1602 = vpop.f32.mrb[0].mxu0
        %v1603 = vpop.f32.mrb[0].mxu0
        %v1604 = vpop.f32.mrb[0].mxu0
        %1605 = vdwg.mxu0
        %v1606 = vadd.f32 %v1476, %v1561
        %v1607 = vadd.f32 %v1477, %v1564
        %v1608 = vadd.f32 %v1478, %v1569
        %v1609 = vadd.f32 %v1479, %v1572
        %v1610 = vadd.f32 %v1480, %v1577
        %v1611 = vadd.f32 %v1481, %v1580
        %v1612 = vadd.f32 %v1482, %v1585
        %v1613 = vadd.f32 %v1483, %v1588
        %v1614 = vadd.f32 %v1484, %v1593
        %v1615 = vadd.f32 %v1485, %v1596
        %v1616 = vadd.f32 %v1486, %v1601
        %v1617 = vld [vmem:[#allocation8] sm:$0x1]
        %v1619 = vlaneseq
        %v1620 = vshrl.u32 %v1619, 7
        %v1621 = vsub.s32 0, %v1620
        %v1622 = vrot.slane %v1617, %v1621
        %v1624 = vadd.f32 %v1606, %v1622
        %v1625 = vadd.f32 %v1607, %v1622
        %v1626 = vadd.f32 %v1608, %v1622
        %v1627 = vadd.f32 %v1609, %v1622
        %v1628 = vadd.f32 %v1610, %v1622
        %v1629 = vadd.f32 %v1611, %v1622
        %v1630 = vadd.f32 %v1612, %v1622
        %v1631 = vadd.f32 %v1613, %v1622
        %v1632 = vadd.f32 %v1614, %v1622
        %v1633 = vadd.f32 %v1615, %v1622
        %v1634 = vadd.f32 %v1616, %v1622
        %v1635 = vmax.f32 %v1624, 0.0
        %v1636 = vmax.f32 %v1625, 0.0
        %v1637 = vmax.f32 %v1626, 0.0
        %v1638 = vmax.f32 %v1627, 0.0
        %v1639 = vmax.f32 %v1628, 0.0
        %v1640 = vmax.f32 %v1629, 0.0
        %v1641 = vmax.f32 %v1630, 0.0
        %v1642 = vmax.f32 %v1631, 0.0
        %v1643 = vmax.f32 %v1632, 0.0
        %v1644 = vmax.f32 %v1633, 0.0
        %v1645 = vmax.f32 %v1634, 0.0
        %vm1646 = vcmask 654336
        %1647 = vst.msk [vmem:[#allocation2] sm:$0xff] %vm1646, %v1635
        %1648 = vst.msk [vmem:[#allocation2 + $0x8] sm:$0xff] %vm1646, %v1636
        %1649 = vst.msk [vmem:[#allocation2 + $0x10] sm:$0xff] %vm1646, %v1637
        %1650 = vst.msk [vmem:[#allocation2 + $0x18] sm:$0xff] %vm1646, %v1638
        %1651 = vst.msk [vmem:[#allocation2 + $0x20] sm:$0xff] %vm1646, %v1639
        %1652 = vst.msk [vmem:[#allocation2 + $0x28] sm:$0xff] %vm1646, %v1640
        %1653 = vst.msk [vmem:[#allocation2 + $0x30] sm:$0xff] %vm1646, %v1641
        %1654 = vst.msk [vmem:[#allocation2 + $0x38] sm:$0xff] %vm1646, %v1642
        %1655 = vst.msk [vmem:[#allocation2 + $0x40] sm:$0xff] %vm1646, %v1643
        %1656 = vst.msk [vmem:[#allocation2 + $0x48] sm:$0xff] %vm1646, %v1644
        %vm1657 = vcmask 647168
        %1658 = vst.msk [vmem:[#allocation2 + $0x50] sm:$0x1] %vm1657, %v1645
        %1659 = vst.msk [vmem:[#allocation2 + $0x51] sm:$0xff] %vm1646, 0.0
        %1660 = vst.msk [vmem:[#allocation2 + $0x59] sm:$0xff] %vm1646, 0.0
        %vm1661 = vcmask 653312
        %1662 = vst.msk [vmem:[#allocation2 + $0x61] sm:$0x7f] %vm1661, 0.0
        %v1663 = vld [vmem:[#allocation2] sm:$0xff]
        %v1664 = vld [vmem:[#allocation2 + $0x8] sm:$0xff]
        %v1665 = vld [vmem:[#allocation2 + $0x10] sm:$0xff]
        %v1666 = vld [vmem:[#allocation2 + $0x18] sm:$0xff]
        %v1667 = vld [vmem:[#allocation2 + $0x20] sm:$0xff]
        %v1668 = vld [vmem:[#allocation2 + $0x28] sm:$0xff]
        %v1669 = vld [vmem:[#allocation2 + $0x30] sm:$0xff]
        %v1670 = vld [vmem:[#allocation2 + $0x38] sm:$0xff]
        %v1671 = vld [vmem:[#allocation2 + $0x40] sm:$0xff]
        %v1672 = vld [vmem:[#allocation2 + $0x48] sm:$0xff]
        %v1673 = vld [vmem:[#allocation2 + $0x50] sm:$0x1]
        %v1674 = vpack.c.bf16 %v1664, %v1663
        %v1675 = vpack.c.bf16 %v1666, %v1665
        %v1676 = vpack.c.bf16 %v1668, %v1667
        %v1677 = vpack.c.bf16 %v1670, %v1669
        %v1678 = vpack.c.bf16 %v1672, %v1671
        %v1679 = vpack.c.bf16 %v1673, %v1673
        %v1680 = vld [vmem:[#allocation5] sm:$0xf]
        %v1681 = vld [vmem:[#allocation5 + $0x4] sm:$0xf]
        %v1682 = vld [vmem:[#allocation5 + $0x8] sm:$0xf]
        %v1683 = vld [vmem:[#allocation5 + $0xc] sm:$0xf]
        %v1684 = vld [vmem:[#allocation5 + $0x10] sm:$0xf]
        %v1685 = vld [vmem:[#allocation5 + $0x14] sm:$0xf]
        %v1686 = vld [vmem:[#allocation5 + $0x18] sm:$0xf]
        %v1687 = vld [vmem:[#allocation5 + $0x1c] sm:$0xf]
        %v1688 = vld [vmem:[#allocation5 + $0x20] sm:$0xf]
        %v1689 = vld [vmem:[#allocation5 + $0x24] sm:$0xf]
        %v1690 = vld [vmem:[#allocation2 + $0x1] sm:$0xff]
        %v1691 = vld [vmem:[#allocation2 + $0x9] sm:$0xff]
        %v1692 = vld [vmem:[#allocation2 + $0x11] sm:$0xff]
        %v1693 = vld [vmem:[#allocation2 + $0x19] sm:$0xff]
        %v1694 = vld [vmem:[#allocation2 + $0x21] sm:$0xff]
        %v1695 = vld [vmem:[#allocation2 + $0x29] sm:$0xff]
        %v1696 = vld [vmem:[#allocation2 + $0x31] sm:$0xff]
        %v1697 = vld [vmem:[#allocation2 + $0x39] sm:$0xff]
        %v1698 = vld [vmem:[#allocation2 + $0x41] sm:$0xff]
        %v1699 = vld [vmem:[#allocation2 + $0x49] sm:$0xff]
        %v1700 = vld [vmem:[#allocation2 + $0x51] sm:$0x1]
        %v1701 = vpack.c.bf16 %v1691, %v1690
        %v1702 = vpack.c.bf16 %v1693, %v1692
        %v1703 = vpack.c.bf16 %v1695, %v1694
        %v1704 = vpack.c.bf16 %v1697, %v1696
        %v1705 = vpack.c.bf16 %v1699, %v1698
        %v1706 = vpack.c.bf16 %v1700, %v1700
        %s1707 = scalar_lea.vmem [#allocation5], 40
        %v1708 = vld [vmem:[%s1707] sm:$0xf]
        %v1709 = vld [vmem:[%s1707 + $0x4] sm:$0xf]
        %v1710 = vld [vmem:[%s1707 + $0x8] sm:$0xf]
        %v1711 = vld [vmem:[%s1707 + $0xc] sm:$0xf]
        %v1712 = vld [vmem:[%s1707 + $0x10] sm:$0xf]
        %v1713 = vld [vmem:[%s1707 + $0x14] sm:$0xf]
        %v1714 = vld [vmem:[%s1707 + $0x18] sm:$0xf]
        %v1715 = vld [vmem:[%s1707 + $0x1c] sm:$0xf]
        %v1716 = vld [vmem:[%s1707 + $0x20] sm:$0xf]
        %v1717 = vld [vmem:[%s1707 + $0x24] sm:$0xf]
        %v1728 = vunpack.c.l.b16 %v1708
        %v1729 = vunpack.c.l.b16 %v1709
        %v1730 = vunpack.c.l.b16 %v1710
        %v1731 = vunpack.c.l.b16 %v1711
        %v1732 = vunpack.c.l.b16 %v1712
        %v1733 = vunpack.c.l.b16 %v1713
        %v1734 = vunpack.c.l.b16 %v1714
        %v1735 = vunpack.c.l.b16 %v1715
        %v1736 = vunpack.c.l.b16 %v1716
        %v1737 = vunpack.c.l.b16 %v1717
        %v1738 = vpack.c.b16 %v1729, %v1728
        %v1739 = vpack.c.b16 %v1731, %v1730
        %v1740 = vpack.c.b16 %v1733, %v1732
        %v1741 = vpack.c.b16 %v1735, %v1734
        %v1742 = vpack.c.b16 %v1737, %v1736
        %v1749 = vsel %vm1646, %v1701, 0
        %v1752 = vsel %vm1646, %v1702, 0
        %v1755 = vsel %vm1646, %v1703, 0
        %v1758 = vsel %vm1646, %v1704, 0
        %v1761 = vsel %vm1646, %v1705, 0
        %v1764 = vsel %vm1646, %v1706, 0
        %1766 = vmatprep.subr.bf16.mxu0 0
        %1767 = vmatpush1.bf16.msra.mxu0 %v1738
        %1768 = vmatprep.subr.bf16.mxu0 0
        %1769 = vmatpush1.bf16.msra.mxu0 %v1739
        %1770 = vmatprep.subr.bf16.mxu0 0
        %1771 = vmatpush1.bf16.msra.mxu0 %v1740
        %1772 = vmatprep.subr.bf16.mxu0 0
        %1773 = vmatpush1.bf16.msra.mxu0 %v1741
        %1774 = vmatprep.subr.bf16.mxu0 0
        %1775 = vmatpush1.bf16.msra.mxu0 %v1742
        %1776 = vmatprep.subr.bf16.mxu0 0
        %1777 = vmatpush1.bf16.msra.mxu0 0
        %1778 = vmatprep.subr.bf16.mxu0 0
        %1779 = vmatpush1.bf16.msra.mxu0 0
        %1780 = vmatprep.subr.bf16.mxu0 0
        %1781 = vmatpush1.bf16.msra.mxu0 0
        %1782 = vmatprep.subr.bf16.mxu0 0
        %1783 = vmatpush1.bf16.msra.mxu0 0
        %1784 = vmatprep.subr.bf16.mxu0 0
        %1785 = vmatpush1.bf16.msra.mxu0 0
        %1786 = vmatprep.subr.bf16.mxu0 0
        %1787 = vmatpush1.bf16.msra.mxu0 0
        %1788 = vmatprep.subr.bf16.mxu0 0
        %1789 = vmatpush1.bf16.msra.mxu0 0
        %1790 = vmatprep.subr.bf16.mxu0 0
        %1791 = vmatpush1.bf16.msra.mxu0 0
        %1792 = vmatprep.subr.bf16.mxu0 0
        %1793 = vmatpush1.bf16.msra.mxu0 0
        %1794 = vmatprep.subr.bf16.mxu0 0
        %1795 = vmatpush1.bf16.msra.mxu0 0
        %1796 = vmatprep.subr.bf16.mxu0 0
        %1797 = vmatpush1.bf16.msra.mxu0 0
        %1798 = vmatprep.mubr.bf16.mxu0 0
        %1799 = vmatmul.mubr.bf16.gmra.mrb[0].mxu0 %v1749
        %v1800 = vpop.f32.mrb[0].mxu0
        %v1801 = vadd.f32 0.0, %v1800
        %v1802 = vpop.f32.mrb[0].mxu0
        %v1803 = vpop.f32.mrb[0].mxu0
        %v1804 = vadd.f32 0.0, %v1803
        %v1805 = vpop.f32.mrb[0].mxu0
        %1806 = vmatprep.mubr.bf16.mxu0 0
        %1807 = vmatmul.mubr.bf16.gmra.mrb[0].mxu0 %v1752
        %v1808 = vpop.f32.mrb[0].mxu0
        %v1809 = vadd.f32 0.0, %v1808
        %v1810 = vpop.f32.mrb[0].mxu0
        %v1811 = vpop.f32.mrb[0].mxu0
        %v1812 = vadd.f32 0.0, %v1811
        %v1813 = vpop.f32.mrb[0].mxu0
        %1814 = vmatprep.mubr.bf16.mxu0 0
        %1815 = vmatmul.mubr.bf16.gmra.mrb[0].mxu0 %v1755
        %v1816 = vpop.f32.mrb[0].mxu0
        %v1817 = vadd.f32 0.0, %v1816
        %v1818 = vpop.f32.mrb[0].mxu0
        %v1819 = vpop.f32.mrb[0].mxu0
        %v1820 = vadd.f32 0.0, %v1819
        %v1821 = vpop.f32.mrb[0].mxu0
        %1822 = vmatprep.mubr.bf16.mxu0 0
        %1823 = vmatmul.mubr.bf16.gmra.mrb[0].mxu0 %v1758
        %v1824 = vpop.f32.mrb[0].mxu0
        %v1825 = vadd.f32 0.0, %v1824
        %v1826 = vpop.f32.mrb[0].mxu0
        %v1827 = vpop.f32.mrb[0].mxu0
        %v1828 = vadd.f32 0.0, %v1827
        %v1829 = vpop.f32.mrb[0].mxu0
        %1830 = vmatprep.mubr.bf16.mxu0 0
        %1831 = vmatmul.mubr.bf16.gmra.mrb[0].mxu0 %v1761
        %v1832 = vpop.f32.mrb[0].mxu0
        %v1833 = vadd.f32 0.0, %v1832
        %v1834 = vpop.f32.mrb[0].mxu0
        %v1835 = vpop.f32.mrb[0].mxu0
        %v1836 = vadd.f32 0.0, %v1835
        %v1837 = vpop.f32.mrb[0].mxu0
        %1838 = vmatprep.mubr.bf16.mxu0 0
        %1839 = vmatmul.mubr.bf16.gmra.mrb[0].mxu0 %v1764
        %v1840 = vpop.f32.mrb[0].mxu0
        %v1841 = vadd.f32 0.0, %v1840
        %v1842 = vpop.f32.mrb[0].mxu0
        %v1843 = vpop.f32.mrb[0].mxu0
        %v1844 = vpop.f32.mrb[0].mxu0
        %1845 = vdwg.mxu0
        %v1856 = vunpack.c.l.b16 %v1680
        %v1857 = vunpack.c.l.b16 %v1681
        %v1858 = vunpack.c.l.b16 %v1682
        %v1859 = vunpack.c.l.b16 %v1683
        %v1860 = vunpack.c.l.b16 %v1684
        %v1861 = vunpack.c.l.b16 %v1685
        %v1862 = vunpack.c.l.b16 %v1686
        %v1863 = vunpack.c.l.b16 %v1687
        %v1864 = vunpack.c.l.b16 %v1688
        %v1865 = vunpack.c.l.b16 %v1689
        %v1866 = vpack.c.b16 %v1857, %v1856
        %v1867 = vpack.c.b16 %v1859, %v1858
        %v1868 = vpack.c.b16 %v1861, %v1860
        %v1869 = vpack.c.b16 %v1863, %v1862
        %v1870 = vpack.c.b16 %v1865, %v1864
        %v1877 = vsel %vm1646, %v1674, 0
        %v1880 = vsel %vm1646, %v1675, 0
        %v1883 = vsel %vm1646, %v1676, 0
        %v1886 = vsel %vm1646, %v1677, 0
        %v1889 = vsel %vm1646, %v1678, 0
        %v1892 = vsel %vm1646, %v1679, 0
        %1894 = vmatprep.subr.bf16.mxu0 0
        %1895 = vmatpush1.bf16.msra.mxu0 %v1866
        %1896 = vmatprep.subr.bf16.mxu0 0
        %1897 = vmatpush1.bf16.msra.mxu0 %v1867
        %1898 = vmatprep.subr.bf16.mxu0 0
        %1899 = vmatpush1.bf16.msra.mxu0 %v1868
        %1900 = vmatprep.subr.bf16.mxu0 0
        %1901 = vmatpush1.bf16.msra.mxu0 %v1869
        %1902 = vmatprep.subr.bf16.mxu0 0
        %1903 = vmatpush1.bf16.msra.mxu0 %v1870
        %1904 = vmatprep.subr.bf16.mxu0 0
        %1905 = vmatpush1.bf16.msra.mxu0 0
        %1906 = vmatprep.subr.bf16.mxu0 0
        %1907 = vmatpush1.bf16.msra.mxu0 0
        %1908 = vmatprep.subr.bf16.mxu0 0
        %1909 = vmatpush1.bf16.msra.mxu0 0
        %1910 = vmatprep.subr.bf16.mxu0 0
        %1911 = vmatpush1.bf16.msra.mxu0 0
        %1912 = vmatprep.subr.bf16.mxu0 0
        %1913 = vmatpush1.bf16.msra.mxu0 0
        %1914 = vmatprep.subr.bf16.mxu0 0
        %1915 = vmatpush1.bf16.msra.mxu0 0
        %1916 = vmatprep.subr.bf16.mxu0 0
        %1917 = vmatpush1.bf16.msra.mxu0 0
        %1918 = vmatprep.subr.bf16.mxu0 0
        %1919 = vmatpush1.bf16.msra.mxu0 0
        %1920 = vmatprep.subr.bf16.mxu0 0
        %1921 = vmatpush1.bf16.msra.mxu0 0
        %1922 = vmatprep.subr.bf16.mxu0 0
        %1923 = vmatpush1.bf16.msra.mxu0 0
        %1924 = vmatprep.subr.bf16.mxu0 0
        %1925 = vmatpush1.bf16.msra.mxu0 0
        %1926 = vmatprep.mubr.bf16.mxu0 0
        %1927 = vmatmul.mubr.bf16.gmra.mrb[0].mxu0 %v1877
        %v1928 = vpop.f32.mrb[0].mxu0
        %v1929 = vadd.f32 %v1801, %v1928
        %v1930 = vpop.f32.mrb[0].mxu0
        %v1931 = vpop.f32.mrb[0].mxu0
        %v1932 = vadd.f32 %v1804, %v1931
        %v1933 = vpop.f32.mrb[0].mxu0
        %1934 = vmatprep.mubr.bf16.mxu0 0
        %1935 = vmatmul.mubr.bf16.gmra.mrb[0].mxu0 %v1880
        %v1936 = vpop.f32.mrb[0].mxu0
        %v1937 = vadd.f32 %v1809, %v1936
        %v1938 = vpop.f32.mrb[0].mxu0
        %v1939 = vpop.f32.mrb[0].mxu0
        %v1940 = vadd.f32 %v1812, %v1939
        %v1941 = vpop.f32.mrb[0].mxu0
        %1942 = vmatprep.mubr.bf16.mxu0 0
        %1943 = vmatmul.mubr.bf16.gmra.mrb[0].mxu0 %v1883
        %v1944 = vpop.f32.mrb[0].mxu0
        %v1945 = vadd.f32 %v1817, %v1944
        %v1946 = vpop.f32.mrb[0].mxu0
        %v1947 = vpop.f32.mrb[0].mxu0
        %v1948 = vadd.f32 %v1820, %v1947
        %v1949 = vpop.f32.mrb[0].mxu0
        %1950 = vmatprep.mubr.bf16.mxu0 0
        %1951 = vmatmul.mubr.bf16.gmra.mrb[0].mxu0 %v1886
        %v1952 = vpop.f32.mrb[0].mxu0
        %v1953 = vadd.f32 %v1825, %v1952
        %v1954 = vpop.f32.mrb[0].mxu0
        %v1955 = vpop.f32.mrb[0].mxu0
        %v1956 = vadd.f32 %v1828, %v1955
        %v1957 = vpop.f32.mrb[0].mxu0
        %1958 = vmatprep.mubr.bf16.mxu0 0
        %1959 = vmatmul.mubr.bf16.gmra.mrb[0].mxu0 %v1889
        %v1960 = vpop.f32.mrb[0].mxu0
        %v1961 = vadd.f32 %v1833, %v1960
        %v1962 = vpop.f32.mrb[0].mxu0
        %v1963 = vpop.f32.mrb[0].mxu0
        %v1964 = vadd.f32 %v1836, %v1963
        %v1965 = vpop.f32.mrb[0].mxu0
        %1966 = vmatprep.mubr.bf16.mxu0 0
        %1967 = vmatmul.mubr.bf16.gmra.mrb[0].mxu0 %v1892
        %v1968 = vpop.f32.mrb[0].mxu0
        %v1969 = vadd.f32 %v1841, %v1968
        %v1970 = vpop.f32.mrb[0].mxu0
        %v1971 = vpop.f32.mrb[0].mxu0
        %v1972 = vpop.f32.mrb[0].mxu0
        %1973 = vdwg.mxu0
        %v1974 = vld [vmem:[#allocation2 + $0x2] sm:$0xff]
        %v1975 = vld [vmem:[#allocation2 + $0xa] sm:$0xff]
        %v1976 = vld [vmem:[#allocation2 + $0x12] sm:$0xff]
        %v1977 = vld [vmem:[#allocation2 + $0x1a] sm:$0xff]
        %v1978 = vld [vmem:[#allocation2 + $0x22] sm:$0xff]
        %v1979 = vld [vmem:[#allocation2 + $0x2a] sm:$0xff]
        %v1980 = vld [vmem:[#allocation2 + $0x32] sm:$0xff]
        %v1981 = vld [vmem:[#allocation2 + $0x3a] sm:$0xff]
        %v1982 = vld [vmem:[#allocation2 + $0x42] sm:$0xff]
        %v1983 = vld [vmem:[#allocation2 + $0x4a] sm:$0xff]
        %v1984 = vld [vmem:[#allocation2 + $0x52] sm:$0x1]
        %v1985 = vpack.c.bf16 %v1975, %v1974
        %v1986 = vpack.c.bf16 %v1977, %v1976
        %v1987 = vpack.c.bf16 %v1979, %v1978
        %v1988 = vpack.c.bf16 %v1981, %v1980
        %v1989 = vpack.c.bf16 %v1983, %v1982
        %v1990 = vpack.c.bf16 %v1984, %v1984
        %s1991 = scalar_lea.vmem [#allocation5], 80
        %v1992 = vld [vmem:[%s1991] sm:$0xf]
        %v1993 = vld [vmem:[%s1991 + $0x4] sm:$0xf]
        %v1994 = vld [vmem:[%s1991 + $0x8] sm:$0xf]
        %v1995 = vld [vmem:[%s1991 + $0xc] sm:$0xf]
        %v1996 = vld [vmem:[%s1991 + $0x10] sm:$0xf]
        %v1997 = vld [vmem:[%s1991 + $0x14] sm:$0xf]
        %v1998 = vld [vmem:[%s1991 + $0x18] sm:$0xf]
        %v1999 = vld [vmem:[%s1991 + $0x1c] sm:$0xf]
        %v2000 = vld [vmem:[%s1991 + $0x20] sm:$0xf]
        %v2001 = vld [vmem:[%s1991 + $0x24] sm:$0xf]
        %v2012 = vunpack.c.l.b16 %v1992
        %v2013 = vunpack.c.l.b16 %v1993
        %v2014 = vunpack.c.l.b16 %v1994
        %v2015 = vunpack.c.l.b16 %v1995
        %v2016 = vunpack.c.l.b16 %v1996
        %v2017 = vunpack.c.l.b16 %v1997
        %v2018 = vunpack.c.l.b16 %v1998
        %v2019 = vunpack.c.l.b16 %v1999
        %v2020 = vunpack.c.l.b16 %v2000
        %v2021 = vunpack.c.l.b16 %v2001
        %v2022 = vpack.c.b16 %v2013, %v2012
        %v2023 = vpack.c.b16 %v2015, %v2014
        %v2024 = vpack.c.b16 %v2017, %v2016
        %v2025 = vpack.c.b16 %v2019, %v2018
        %v2026 = vpack.c.b16 %v2021, %v2020
        %v2033 = vsel %vm1646, %v1985, 0
        %v2036 = vsel %vm1646, %v1986, 0
        %v2039 = vsel %vm1646, %v1987, 0
        %v2042 = vsel %vm1646, %v1988, 0
        %v2045 = vsel %vm1646, %v1989, 0
        %v2048 = vsel %vm1646, %v1990, 0
        %2050 = vmatprep.subr.bf16.mxu0 0
        %2051 = vmatpush1.bf16.msra.mxu0 %v2022
        %2052 = vmatprep.subr.bf16.mxu0 0
        %2053 = vmatpush1.bf16.msra.mxu0 %v2023
        %2054 = vmatprep.subr.bf16.mxu0 0
        %2055 = vmatpush1.bf16.msra.mxu0 %v2024
        %2056 = vmatprep.subr.bf16.mxu0 0
        %2057 = vmatpush1.bf16.msra.mxu0 %v2025
        %2058 = vmatprep.subr.bf16.mxu0 0
        %2059 = vmatpush1.bf16.msra.mxu0 %v2026
        %2060 = vmatprep.subr.bf16.mxu0 0
        %2061 = vmatpush1.bf16.msra.mxu0 0
        %2062 = vmatprep.subr.bf16.mxu0 0
        %2063 = vmatpush1.bf16.msra.mxu0 0
        %2064 = vmatprep.subr.bf16.mxu0 0
        %2065 = vmatpush1.bf16.msra.mxu0 0
        %2066 = vmatprep.subr.bf16.mxu0 0
        %2067 = vmatpush1.bf16.msra.mxu0 0
        %2068 = vmatprep.subr.bf16.mxu0 0
        %2069 = vmatpush1.bf16.msra.mxu0 0
        %2070 = vmatprep.subr.bf16.mxu0 0
        %2071 = vmatpush1.bf16.msra.mxu0 0
        %2072 = vmatprep.subr.bf16.mxu0 0
        %2073 = vmatpush1.bf16.msra.mxu0 0
        %2074 = vmatprep.subr.bf16.mxu0 0
        %2075 = vmatpush1.bf16.msra.mxu0 0
        %2076 = vmatprep.subr.bf16.mxu0 0
        %2077 = vmatpush1.bf16.msra.mxu0 0
        %2078 = vmatprep.subr.bf16.mxu0 0
        %2079 = vmatpush1.bf16.msra.mxu0 0
        %2080 = vmatprep.subr.bf16.mxu0 0
        %2081 = vmatpush1.bf16.msra.mxu0 0
        %2082 = vmatprep.mubr.bf16.mxu0 0
        %2083 = vmatmul.mubr.bf16.gmra.mrb[0].mxu0 %v2033
        %v2084 = vpop.f32.mrb[0].mxu0
        %v2085 = vadd.f32 0.0, %v2084
        %v2086 = vpop.f32.mrb[0].mxu0
        %v2087 = vpop.f32.mrb[0].mxu0
        %v2088 = vadd.f32 0.0, %v2087
        %v2089 = vpop.f32.mrb[0].mxu0
        %2090 = vmatprep.mubr.bf16.mxu0 0
        %2091 = vmatmul.mubr.bf16.gmra.mrb[0].mxu0 %v2036
        %v2092 = vpop.f32.mrb[0].mxu0
        %v2093 = vadd.f32 0.0, %v2092
        %v2094 = vpop.f32.mrb[0].mxu0
        %v2095 = vpop.f32.mrb[0].mxu0
        %v2096 = vadd.f32 0.0, %v2095
        %v2097 = vpop.f32.mrb[0].mxu0
        %2098 = vmatprep.mubr.bf16.mxu0 0
        %2099 = vmatmul.mubr.bf16.gmra.mrb[0].mxu0 %v2039
        %v2100 = vpop.f32.mrb[0].mxu0
        %v2101 = vadd.f32 0.0, %v2100
        %v2102 = vpop.f32.mrb[0].mxu0
        %v2103 = vpop.f32.mrb[0].mxu0
        %v2104 = vadd.f32 0.0, %v2103
        %v2105 = vpop.f32.mrb[0].mxu0
        %2106 = vmatprep.mubr.bf16.mxu0 0
        %2107 = vmatmul.mubr.bf16.gmra.mrb[0].mxu0 %v2042
        %v2108 = vpop.f32.mrb[0].mxu0
        %v2109 = vadd.f32 0.0, %v2108
        %v2110 = vpop.f32.mrb[0].mxu0
        %v2111 = vpop.f32.mrb[0].mxu0
        %v2112 = vadd.f32 0.0, %v2111
        %v2113 = vpop.f32.mrb[0].mxu0
        %2114 = vmatprep.mubr.bf16.mxu0 0
        %2115 = vmatmul.mubr.bf16.gmra.mrb[0].mxu0 %v2045
        %v2116 = vpop.f32.mrb[0].mxu0
        %v2117 = vadd.f32 0.0, %v2116
        %v2118 = vpop.f32.mrb[0].mxu0
        %v2119 = vpop.f32.mrb[0].mxu0
        %v2120 = vadd.f32 0.0, %v2119
        %v2121 = vpop.f32.mrb[0].mxu0
        %2122 = vmatprep.mubr.bf16.mxu0 0
        %2123 = vmatmul.mubr.bf16.gmra.mrb[0].mxu0 %v2048
        %v2124 = vpop.f32.mrb[0].mxu0
        %v2125 = vadd.f32 0.0, %v2124
        %v2126 = vpop.f32.mrb[0].mxu0
        %v2127 = vpop.f32.mrb[0].mxu0
        %v2128 = vpop.f32.mrb[0].mxu0
        %2129 = vdwg.mxu0
        %v2130 = vadd.f32 %v1929, %v2085
        %v2131 = vadd.f32 %v1932, %v2088
        %v2132 = vadd.f32 %v1937, %v2093
        %v2133 = vadd.f32 %v1940, %v2096
        %v2134 = vadd.f32 %v1945, %v2101
        %v2135 = vadd.f32 %v1948, %v2104
        %v2136 = vadd.f32 %v1953, %v2109
        %v2137 = vadd.f32 %v1956, %v2112
        %v2138 = vadd.f32 %v1961, %v2117
        %v2139 = vadd.f32 %v1964, %v2120
        %v2140 = vadd.f32 %v1969, %v2125
        %v2141 = vld [vmem:[#allocation2 + $0x9] sm:$0xff]
        %v2142 = vld [vmem:[#allocation2 + $0x11] sm:$0xff]
        %v2143 = vld [vmem:[#allocation2 + $0x19] sm:$0xff]
        %v2144 = vld [vmem:[#allocation2 + $0x21] sm:$0xff]
        %v2145 = vld [vmem:[#allocation2 + $0x29] sm:$0xff]
        %v2146 = vld [vmem:[#allocation2 + $0x31] sm:$0xff]
        %v2147 = vld [vmem:[#allocation2 + $0x39] sm:$0xff]
        %v2148 = vld [vmem:[#allocation2 + $0x41] sm:$0xff]
        %v2149 = vld [vmem:[#allocation2 + $0x49] sm:$0xff]
        %v2150 = vld [vmem:[#allocation2 + $0x51] sm:$0xff]
        %v2151 = vld [vmem:[#allocation2 + $0x59] sm:$0x1]
        %v2152 = vpack.c.bf16 %v2142, %v2141
        %v2153 = vpack.c.bf16 %v2144, %v2143
        %v2154 = vpack.c.bf16 %v2146, %v2145
        %v2155 = vpack.c.bf16 %v2148, %v2147
        %v2156 = vpack.c.bf16 %v2150, %v2149
        %v2157 = vpack.c.bf16 %v2151, %v2151
        %s2158 = scalar_lea.vmem [#allocation5], 120
        %v2159 = vld [vmem:[%s2158] sm:$0xf]
        %v2160 = vld [vmem:[%s2158 + $0x4] sm:$0xf]
        %v2161 = vld [vmem:[%s2158 + $0x8] sm:$0xf]
        %v2162 = vld [vmem:[%s2158 + $0xc] sm:$0xf]
        %v2163 = vld [vmem:[%s2158 + $0x10] sm:$0xf]
        %v2164 = vld [vmem:[%s2158 + $0x14] sm:$0xf]
        %v2165 = vld [vmem:[%s2158 + $0x18] sm:$0xf]
        %v2166 = vld [vmem:[%s2158 + $0x1c] sm:$0xf]
        %v2167 = vld [vmem:[%s2158 + $0x20] sm:$0xf]
        %v2168 = vld [vmem:[%s2158 + $0x24] sm:$0xf]
        %v2179 = vunpack.c.l.b16 %v2159
        %v2180 = vunpack.c.l.b16 %v2160
        %v2181 = vunpack.c.l.b16 %v2161
        %v2182 = vunpack.c.l.b16 %v2162
        %v2183 = vunpack.c.l.b16 %v2163
        %v2184 = vunpack.c.l.b16 %v2164
        %v2185 = vunpack.c.l.b16 %v2165
        %v2186 = vunpack.c.l.b16 %v2166
        %v2187 = vunpack.c.l.b16 %v2167
        %v2188 = vunpack.c.l.b16 %v2168
        %v2189 = vpack.c.b16 %v2180, %v2179
        %v2190 = vpack.c.b16 %v2182, %v2181
        %v2191 = vpack.c.b16 %v2184, %v2183
        %v2192 = vpack.c.b16 %v2186, %v2185
        %v2193 = vpack.c.b16 %v2188, %v2187
        %v2200 = vsel %vm1646, %v2152, 0
        %v2203 = vsel %vm1646, %v2153, 0
        %v2206 = vsel %vm1646, %v2154, 0
        %v2209 = vsel %vm1646, %v2155, 0
        %v2212 = vsel %vm1646, %v2156, 0
        %v2215 = vsel %vm1646, %v2157, 0
        %2217 = vmatprep.subr.bf16.mxu0 0
        %2218 = vmatpush1.bf16.msra.mxu0 %v2189
        %2219 = vmatprep.subr.bf16.mxu0 0
        %2220 = vmatpush1.bf16.msra.mxu0 %v2190
        %2221 = vmatprep.subr.bf16.mxu0 0
        %2222 = vmatpush1.bf16.msra.mxu0 %v2191
        %2223 = vmatprep.subr.bf16.mxu0 0
        %2224 = vmatpush1.bf16.msra.mxu0 %v2192
        %2225 = vmatprep.subr.bf16.mxu0 0
        %2226 = vmatpush1.bf16.msra.mxu0 %v2193
        %2227 = vmatprep.subr.bf16.mxu0 0
        %2228 = vmatpush1.bf16.msra.mxu0 0
        %2229 = vmatprep.subr.bf16.mxu0 0
        %2230 = vmatpush1.bf16.msra.mxu0 0
        %2231 = vmatprep.subr.bf16.mxu0 0
        %2232 = vmatpush1.bf16.msra.mxu0 0
        %2233 = vmatprep.subr.bf16.mxu0 0
        %2234 = vmatpush1.bf16.msra.mxu0 0
        %2235 = vmatprep.subr.bf16.mxu0 0
        %2236 = vmatpush1.bf16.msra.mxu0 0
        %2237 = vmatprep.subr.bf16.mxu0 0
        %2238 = vmatpush1.bf16.msra.mxu0 0
        %2239 = vmatprep.subr.bf16.mxu0 0
        %2240 = vmatpush1.bf16.msra.mxu0 0
        %2241 = vmatprep.subr.bf16.mxu0 0
        %2242 = vmatpush1.bf16.msra.mxu0 0
        %2243 = vmatprep.subr.bf16.mxu0 0
        %2244 = vmatpush1.bf16.msra.mxu0 0
        %2245 = vmatprep.subr.bf16.mxu0 0
        %2246 = vmatpush1.bf16.msra.mxu0 0
        %2247 = vmatprep.subr.bf16.mxu0 0
        %2248 = vmatpush1.bf16.msra.mxu0 0
        %2249 = vmatprep.mubr.bf16.mxu0 0
        %2250 = vmatmul.mubr.bf16.gmra.mrb[0].mxu0 %v2200
        %v2251 = vpop.f32.mrb[0].mxu0
        %v2252 = vadd.f32 0.0, %v2251
        %v2253 = vpop.f32.mrb[0].mxu0
        %v2254 = vpop.f32.mrb[0].mxu0
        %v2255 = vadd.f32 0.0, %v2254
        %v2256 = vpop.f32.mrb[0].mxu0
        %2257 = vmatprep.mubr.bf16.mxu0 0
        %2258 = vmatmul.mubr.bf16.gmra.mrb[0].mxu0 %v2203
        %v2259 = vpop.f32.mrb[0].mxu0
        %v2260 = vadd.f32 0.0, %v2259
        %v2261 = vpop.f32.mrb[0].mxu0
        %v2262 = vpop.f32.mrb[0].mxu0
        %v2263 = vadd.f32 0.0, %v2262
        %v2264 = vpop.f32.mrb[0].mxu0
        %2265 = vmatprep.mubr.bf16.mxu0 0
        %2266 = vmatmul.mubr.bf16.gmra.mrb[0].mxu0 %v2206
        %v2267 = vpop.f32.mrb[0].mxu0
        %v2268 = vadd.f32 0.0, %v2267
        %v2269 = vpop.f32.mrb[0].mxu0
        %v2270 = vpop.f32.mrb[0].mxu0
        %v2271 = vadd.f32 0.0, %v2270
        %v2272 = vpop.f32.mrb[0].mxu0
        %2273 = vmatprep.mubr.bf16.mxu0 0
        %2274 = vmatmul.mubr.bf16.gmra.mrb[0].mxu0 %v2209
        %v2275 = vpop.f32.mrb[0].mxu0
        %v2276 = vadd.f32 0.0, %v2275
        %v2277 = vpop.f32.mrb[0].mxu0
        %v2278 = vpop.f32.mrb[0].mxu0
        %v2279 = vadd.f32 0.0, %v2278
        %v2280 = vpop.f32.mrb[0].mxu0
        %2281 = vmatprep.mubr.bf16.mxu0 0
        %2282 = vmatmul.mubr.bf16.gmra.mrb[0].mxu0 %v2212
        %v2283 = vpop.f32.mrb[0].mxu0
        %v2284 = vadd.f32 0.0, %v2283
        %v2285 = vpop.f32.mrb[0].mxu0
        %v2286 = vpop.f32.mrb[0].mxu0
        %v2287 = vadd.f32 0.0, %v2286
        %v2288 = vpop.f32.mrb[0].mxu0
        %2289 = vmatprep.mubr.bf16.mxu0 0
        %2290 = vmatmul.mubr.bf16.gmra.mrb[0].mxu0 %v2215
        %v2291 = vpop.f32.mrb[0].mxu0
        %v2292 = vadd.f32 0.0, %v2291
        %v2293 = vpop.f32.mrb[0].mxu0
        %v2294 = vpop.f32.mrb[0].mxu0
        %v2295 = vpop.f32.mrb[0].mxu0
        %2296 = vdwg.mxu0
        %v2297 = vadd.f32 %v2130, %v2252
        %v2298 = vadd.f32 %v2131, %v2255
        %v2299 = vadd.f32 %v2132, %v2260
        %v2300 = vadd.f32 %v2133, %v2263
        %v2301 = vadd.f32 %v2134, %v2268
        %v2302 = vadd.f32 %v2135, %v2271
        %v2303 = vadd.f32 %v2136, %v2276
        %v2304 = vadd.f32 %v2137, %v2279
        %v2305 = vadd.f32 %v2138, %v2284
        %v2306 = vadd.f32 %v2139, %v2287
        %v2307 = vadd.f32 %v2140, %v2292
        %v2308 = vld [vmem:[#allocation2 + $0xa] sm:$0xff]
        %v2309 = vld [vmem:[#allocation2 + $0x12] sm:$0xff]
        %v2310 = vld [vmem:[#allocation2 + $0x1a] sm:$0xff]
        %v2311 = vld [vmem:[#allocation2 + $0x22] sm:$0xff]
        %v2312 = vld [vmem:[#allocation2 + $0x2a] sm:$0xff]
        %v2313 = vld [vmem:[#allocation2 + $0x32] sm:$0xff]
        %v2314 = vld [vmem:[#allocation2 + $0x3a] sm:$0xff]
        %v2315 = vld [vmem:[#allocation2 + $0x42] sm:$0xff]
        %v2316 = vld [vmem:[#allocation2 + $0x4a] sm:$0xff]
        %v2317 = vld [vmem:[#allocation2 + $0x52] sm:$0xff]
        %v2318 = vld [vmem:[#allocation2 + $0x5a] sm:$0x1]
        %v2319 = vpack.c.bf16 %v2309, %v2308
        %v2320 = vpack.c.bf16 %v2311, %v2310
        %v2321 = vpack.c.bf16 %v2313, %v2312
        %v2322 = vpack.c.bf16 %v2315, %v2314
        %v2323 = vpack.c.bf16 %v2317, %v2316
        %v2324 = vpack.c.bf16 %v2318, %v2318
        %s2325 = scalar_lea.vmem [#allocation5], 160
        %v2326 = vld [vmem:[%s2325] sm:$0xf]
        %v2327 = vld [vmem:[%s2325 + $0x4] sm:$0xf]
        %v2328 = vld [vmem:[%s2325 + $0x8] sm:$0xf]
        %v2329 = vld [vmem:[%s2325 + $0xc] sm:$0xf]
        %v2330 = vld [vmem:[%s2325 + $0x10] sm:$0xf]
        %v2331 = vld [vmem:[%s2325 + $0x14] sm:$0xf]
        %v2332 = vld [vmem:[%s2325 + $0x18] sm:$0xf]
        %v2333 = vld [vmem:[%s2325 + $0x1c] sm:$0xf]
        %v2334 = vld [vmem:[%s2325 + $0x20] sm:$0xf]
        %v2335 = vld [vmem:[%s2325 + $0x24] sm:$0xf]
        %v2346 = vunpack.c.l.b16 %v2326
        %v2347 = vunpack.c.l.b16 %v2327
        %v2348 = vunpack.c.l.b16 %v2328
        %v2349 = vunpack.c.l.b16 %v2329
        %v2350 = vunpack.c.l.b16 %v2330
        %v2351 = vunpack.c.l.b16 %v2331
        %v2352 = vunpack.c.l.b16 %v2332
        %v2353 = vunpack.c.l.b16 %v2333
        %v2354 = vunpack.c.l.b16 %v2334
        %v2355 = vunpack.c.l.b16 %v2335
        %v2356 = vpack.c.b16 %v2347, %v2346
        %v2357 = vpack.c.b16 %v2349, %v2348
        %v2358 = vpack.c.b16 %v2351, %v2350
        %v2359 = vpack.c.b16 %v2353, %v2352
        %v2360 = vpack.c.b16 %v2355, %v2354
        %v2367 = vsel %vm1646, %v2319, 0
        %v2370 = vsel %vm1646, %v2320, 0
        %v2373 = vsel %vm1646, %v2321, 0
        %v2376 = vsel %vm1646, %v2322, 0
        %v2379 = vsel %vm1646, %v2323, 0
        %v2382 = vsel %vm1646, %v2324, 0
        %2384 = vmatprep.subr.bf16.mxu0 0
        %2385 = vmatpush1.bf16.msra.mxu0 %v2356
        %2386 = vmatprep.subr.bf16.mxu0 0
        %2387 = vmatpush1.bf16.msra.mxu0 %v2357
        %2388 = vmatprep.subr.bf16.mxu0 0
        %2389 = vmatpush1.bf16.msra.mxu0 %v2358
        %2390 = vmatprep.subr.bf16.mxu0 0
        %2391 = vmatpush1.bf16.msra.mxu0 %v2359
        %2392 = vmatprep.subr.bf16.mxu0 0
        %2393 = vmatpush1.bf16.msra.mxu0 %v2360
        %2394 = vmatprep.subr.bf16.mxu0 0
        %2395 = vmatpush1.bf16.msra.mxu0 0
        %2396 = vmatprep.subr.bf16.mxu0 0
        %2397 = vmatpush1.bf16.msra.mxu0 0
        %2398 = vmatprep.subr.bf16.mxu0 0
        %2399 = vmatpush1.bf16.msra.mxu0 0
        %2400 = vmatprep.subr.bf16.mxu0 0
        %2401 = vmatpush1.bf16.msra.mxu0 0
        %2402 = vmatprep.subr.bf16.mxu0 0
        %2403 = vmatpush1.bf16.msra.mxu0 0
        %2404 = vmatprep.subr.bf16.mxu0 0
        %2405 = vmatpush1.bf16.msra.mxu0 0
        %2406 = vmatprep.subr.bf16.mxu0 0
        %2407 = vmatpush1.bf16.msra.mxu0 0
        %2408 = vmatprep.subr.bf16.mxu0 0
        %2409 = vmatpush1.bf16.msra.mxu0 0
        %2410 = vmatprep.subr.bf16.mxu0 0
        %2411 = vmatpush1.bf16.msra.mxu0 0
        %2412 = vmatprep.subr.bf16.mxu0 0
        %2413 = vmatpush1.bf16.msra.mxu0 0
        %2414 = vmatprep.subr.bf16.mxu0 0
        %2415 = vmatpush1.bf16.msra.mxu0 0
        %2416 = vmatprep.mubr.bf16.mxu0 0
        %2417 = vmatmul.mubr.bf16.gmra.mrb[0].mxu0 %v2367
        %v2418 = vpop.f32.mrb[0].mxu0
        %v2419 = vadd.f32 0.0, %v2418
        %v2420 = vpop.f32.mrb[0].mxu0
        %v2421 = vpop.f32.mrb[0].mxu0
        %v2422 = vadd.f32 0.0, %v2421
        %v2423 = vpop.f32.mrb[0].mxu0
        %2424 = vmatprep.mubr.bf16.mxu0 0
        %2425 = vmatmul.mubr.bf16.gmra.mrb[0].mxu0 %v2370
        %v2426 = vpop.f32.mrb[0].mxu0
        %v2427 = vadd.f32 0.0, %v2426
        %v2428 = vpop.f32.mrb[0].mxu0
        %v2429 = vpop.f32.mrb[0].mxu0
        %v2430 = vadd.f32 0.0, %v2429
        %v2431 = vpop.f32.mrb[0].mxu0
        %2432 = vmatprep.mubr.bf16.mxu0 0
        %2433 = vmatmul.mubr.bf16.gmra.mrb[0].mxu0 %v2373
        %v2434 = vpop.f32.mrb[0].mxu0
        %v2435 = vadd.f32 0.0, %v2434
        %v2436 = vpop.f32.mrb[0].mxu0
        %v2437 = vpop.f32.mrb[0].mxu0
        %v2438 = vadd.f32 0.0, %v2437
        %v2439 = vpop.f32.mrb[0].mxu0
        %2440 = vmatprep.mubr.bf16.mxu0 0
        %2441 = vmatmul.mubr.bf16.gmra.mrb[0].mxu0 %v2376
        %v2442 = vpop.f32.mrb[0].mxu0
        %v2443 = vadd.f32 0.0, %v2442
        %v2444 = vpop.f32.mrb[0].mxu0
        %v2445 = vpop.f32.mrb[0].mxu0
        %v2446 = vadd.f32 0.0, %v2445
        %v2447 = vpop.f32.mrb[0].mxu0
        %2448 = vmatprep.mubr.bf16.mxu0 0
        %2449 = vmatmul.mubr.bf16.gmra.mrb[0].mxu0 %v2379
        %v2450 = vpop.f32.mrb[0].mxu0
        %v2451 = vadd.f32 0.0, %v2450
        %v2452 = vpop.f32.mrb[0].mxu0
        %v2453 = vpop.f32.mrb[0].mxu0
        %v2454 = vadd.f32 0.0, %v2453
        %v2455 = vpop.f32.mrb[0].mxu0
        %2456 = vmatprep.mubr.bf16.mxu0 0
        %2457 = vmatmul.mubr.bf16.gmra.mrb[0].mxu0 %v2382
        %v2458 = vpop.f32.mrb[0].mxu0
        %v2459 = vadd.f32 0.0, %v2458
        %v2460 = vpop.f32.mrb[0].mxu0
        %v2461 = vpop.f32.mrb[0].mxu0
        %v2462 = vpop.f32.mrb[0].mxu0
        %2463 = vdwg.mxu0
        %v2464 = vadd.f32 %v2297, %v2419
        %v2465 = vadd.f32 %v2298, %v2422
        %v2466 = vadd.f32 %v2299, %v2427
        %v2467 = vadd.f32 %v2300, %v2430
        %v2468 = vadd.f32 %v2301, %v2435
        %v2469 = vadd.f32 %v2302, %v2438
        %v2470 = vadd.f32 %v2303, %v2443
        %v2471 = vadd.f32 %v2304, %v2446
        %v2472 = vadd.f32 %v2305, %v2451
        %v2473 = vadd.f32 %v2306, %v2454
        %v2474 = vadd.f32 %v2307, %v2459
        %v2475 = vld [vmem:[#allocation2 + $0xb] sm:$0xff]
        %v2476 = vld [vmem:[#allocation2 + $0x13] sm:$0xff]
        %v2477 = vld [vmem:[#allocation2 + $0x1b] sm:$0xff]
        %v2478 = vld [vmem:[#allocation2 + $0x23] sm:$0xff]
        %v2479 = vld [vmem:[#allocation2 + $0x2b] sm:$0xff]
        %v2480 = vld [vmem:[#allocation2 + $0x33] sm:$0xff]
        %v2481 = vld [vmem:[#allocation2 + $0x3b] sm:$0xff]
        %v2482 = vld [vmem:[#allocation2 + $0x43] sm:$0xff]
        %v2483 = vld [vmem:[#allocation2 + $0x4b] sm:$0xff]
        %v2484 = vld [vmem:[#allocation2 + $0x53] sm:$0xff]
        %v2485 = vld [vmem:[#allocation2 + $0x5b] sm:$0x1]
        %v2486 = vpack.c.bf16 %v2476, %v2475
        %v2487 = vpack.c.bf16 %v2478, %v2477
        %v2488 = vpack.c.bf16 %v2480, %v2479
        %v2489 = vpack.c.bf16 %v2482, %v2481
        %v2490 = vpack.c.bf16 %v2484, %v2483
        %v2491 = vpack.c.bf16 %v2485, %v2485
        %s2492 = scalar_lea.vmem [#allocation5], 200
        %v2493 = vld [vmem:[%s2492] sm:$0xf]
        %v2494 = vld [vmem:[%s2492 + $0x4] sm:$0xf]
        %v2495 = vld [vmem:[%s2492 + $0x8] sm:$0xf]
        %v2496 = vld [vmem:[%s2492 + $0xc] sm:$0xf]
        %v2497 = vld [vmem:[%s2492 + $0x10] sm:$0xf]
        %v2498 = vld [vmem:[%s2492 + $0x14] sm:$0xf]
        %v2499 = vld [vmem:[%s2492 + $0x18] sm:$0xf]
        %v2500 = vld [vmem:[%s2492 + $0x1c] sm:$0xf]
        %v2501 = vld [vmem:[%s2492 + $0x20] sm:$0xf]
        %v2502 = vld [vmem:[%s2492 + $0x24] sm:$0xf]
        %v2513 = vunpack.c.l.b16 %v2493
        %v2514 = vunpack.c.l.b16 %v2494
        %v2515 = vunpack.c.l.b16 %v2495
        %v2516 = vunpack.c.l.b16 %v2496
        %v2517 = vunpack.c.l.b16 %v2497
        %v2518 = vunpack.c.l.b16 %v2498
        %v2519 = vunpack.c.l.b16 %v2499
        %v2520 = vunpack.c.l.b16 %v2500
        %v2521 = vunpack.c.l.b16 %v2501
        %v2522 = vunpack.c.l.b16 %v2502
        %v2523 = vpack.c.b16 %v2514, %v2513
        %v2524 = vpack.c.b16 %v2516, %v2515
        %v2525 = vpack.c.b16 %v2518, %v2517
        %v2526 = vpack.c.b16 %v2520, %v2519
        %v2527 = vpack.c.b16 %v2522, %v2521
        %v2534 = vsel %vm1646, %v2486, 0
        %v2537 = vsel %vm1646, %v2487, 0
        %v2540 = vsel %vm1646, %v2488, 0
        %v2543 = vsel %vm1646, %v2489, 0
        %v2546 = vsel %vm1646, %v2490, 0
        %v2549 = vsel %vm1646, %v2491, 0
        %2551 = vmatprep.subr.bf16.mxu0 0
        %2552 = vmatpush1.bf16.msra.mxu0 %v2523
        %2553 = vmatprep.subr.bf16.mxu0 0
        %2554 = vmatpush1.bf16.msra.mxu0 %v2524
        %2555 = vmatprep.subr.bf16.mxu0 0
        %2556 = vmatpush1.bf16.msra.mxu0 %v2525
        %2557 = vmatprep.subr.bf16.mxu0 0
        %2558 = vmatpush1.bf16.msra.mxu0 %v2526
        %2559 = vmatprep.subr.bf16.mxu0 0
        %2560 = vmatpush1.bf16.msra.mxu0 %v2527
        %2561 = vmatprep.subr.bf16.mxu0 0
        %2562 = vmatpush1.bf16.msra.mxu0 0
        %2563 = vmatprep.subr.bf16.mxu0 0
        %2564 = vmatpush1.bf16.msra.mxu0 0
        %2565 = vmatprep.subr.bf16.mxu0 0
        %2566 = vmatpush1.bf16.msra.mxu0 0
        %2567 = vmatprep.subr.bf16.mxu0 0
        %2568 = vmatpush1.bf16.msra.mxu0 0
        %2569 = vmatprep.subr.bf16.mxu0 0
        %2570 = vmatpush1.bf16.msra.mxu0 0
        %2571 = vmatprep.subr.bf16.mxu0 0
        %2572 = vmatpush1.bf16.msra.mxu0 0
        %2573 = vmatprep.subr.bf16.mxu0 0
        %2574 = vmatpush1.bf16.msra.mxu0 0
        %2575 = vmatprep.subr.bf16.mxu0 0
        %2576 = vmatpush1.bf16.msra.mxu0 0
        %2577 = vmatprep.subr.bf16.mxu0 0
        %2578 = vmatpush1.bf16.msra.mxu0 0
        %2579 = vmatprep.subr.bf16.mxu0 0
        %2580 = vmatpush1.bf16.msra.mxu0 0
        %2581 = vmatprep.subr.bf16.mxu0 0
        %2582 = vmatpush1.bf16.msra.mxu0 0
        %2583 = vmatprep.mubr.bf16.mxu0 0
        %2584 = vmatmul.mubr.bf16.gmra.mrb[0].mxu0 %v2534
        %v2585 = vpop.f32.mrb[0].mxu0
        %v2586 = vadd.f32 0.0, %v2585
        %v2587 = vpop.f32.mrb[0].mxu0
        %v2588 = vpop.f32.mrb[0].mxu0
        %v2589 = vadd.f32 0.0, %v2588
        %v2590 = vpop.f32.mrb[0].mxu0
        %2591 = vmatprep.mubr.bf16.mxu0 0
        %2592 = vmatmul.mubr.bf16.gmra.mrb[0].mxu0 %v2537
        %v2593 = vpop.f32.mrb[0].mxu0
        %v2594 = vadd.f32 0.0, %v2593
        %v2595 = vpop.f32.mrb[0].mxu0
        %v2596 = vpop.f32.mrb[0].mxu0
        %v2597 = vadd.f32 0.0, %v2596
        %v2598 = vpop.f32.mrb[0].mxu0
        %2599 = vmatprep.mubr.bf16.mxu0 0
        %2600 = vmatmul.mubr.bf16.gmra.mrb[0].mxu0 %v2540
        %v2601 = vpop.f32.mrb[0].mxu0
        %v2602 = vadd.f32 0.0, %v2601
        %v2603 = vpop.f32.mrb[0].mxu0
        %v2604 = vpop.f32.mrb[0].mxu0
        %v2605 = vadd.f32 0.0, %v2604
        %v2606 = vpop.f32.mrb[0].mxu0
        %2607 = vmatprep.mubr.bf16.mxu0 0
        %2608 = vmatmul.mubr.bf16.gmra.mrb[0].mxu0 %v2543
        %v2609 = vpop.f32.mrb[0].mxu0
        %v2610 = vadd.f32 0.0, %v2609
        %v2611 = vpop.f32.mrb[0].mxu0
        %v2612 = vpop.f32.mrb[0].mxu0
        %v2613 = vadd.f32 0.0, %v2612
        %v2614 = vpop.f32.mrb[0].mxu0
        %2615 = vmatprep.mubr.bf16.mxu0 0
        %2616 = vmatmul.mubr.bf16.gmra.mrb[0].mxu0 %v2546
        %v2617 = vpop.f32.mrb[0].mxu0
        %v2618 = vadd.f32 0.0, %v2617
        %v2619 = vpop.f32.mrb[0].mxu0
        %v2620 = vpop.f32.mrb[0].mxu0
        %v2621 = vadd.f32 0.0, %v2620
        %v2622 = vpop.f32.mrb[0].mxu0
        %2623 = vmatprep.mubr.bf16.mxu0 0
        %2624 = vmatmul.mubr.bf16.gmra.mrb[0].mxu0 %v2549
        %v2625 = vpop.f32.mrb[0].mxu0
        %v2626 = vadd.f32 0.0, %v2625
        %v2627 = vpop.f32.mrb[0].mxu0
        %v2628 = vpop.f32.mrb[0].mxu0
        %v2629 = vpop.f32.mrb[0].mxu0
        %2630 = vdwg.mxu0
        %v2631 = vadd.f32 %v2464, %v2586
        %v2632 = vadd.f32 %v2465, %v2589
        %v2633 = vadd.f32 %v2466, %v2594
        %v2634 = vadd.f32 %v2467, %v2597
        %v2635 = vadd.f32 %v2468, %v2602
        %v2636 = vadd.f32 %v2469, %v2605
        %v2637 = vadd.f32 %v2470, %v2610
        %v2638 = vadd.f32 %v2471, %v2613
        %v2639 = vadd.f32 %v2472, %v2618
        %v2640 = vadd.f32 %v2473, %v2621
        %v2641 = vadd.f32 %v2474, %v2626
        %v2642 = vld [vmem:[#allocation2 + $0x12] sm:$0xff]
        %v2643 = vld [vmem:[#allocation2 + $0x1a] sm:$0xff]
        %v2644 = vld [vmem:[#allocation2 + $0x22] sm:$0xff]
        %v2645 = vld [vmem:[#allocation2 + $0x2a] sm:$0xff]
        %v2646 = vld [vmem:[#allocation2 + $0x32] sm:$0xff]
        %v2647 = vld [vmem:[#allocation2 + $0x3a] sm:$0xff]
        %v2648 = vld [vmem:[#allocation2 + $0x42] sm:$0xff]
        %v2649 = vld [vmem:[#allocation2 + $0x4a] sm:$0xff]
        %v2650 = vld [vmem:[#allocation2 + $0x52] sm:$0xff]
        %v2651 = vld [vmem:[#allocation2 + $0x5a] sm:$0xff]
        %v2652 = vld [vmem:[#allocation2 + $0x62] sm:$0x1]
        %v2653 = vpack.c.bf16 %v2643, %v2642
        %v2654 = vpack.c.bf16 %v2645, %v2644
        %v2655 = vpack.c.bf16 %v2647, %v2646
        %v2656 = vpack.c.bf16 %v2649, %v2648
        %v2657 = vpack.c.bf16 %v2651, %v2650
        %v2658 = vpack.c.bf16 %v2652, %v2652
        %s2659 = scalar_lea.vmem [#allocation5], 240
        %v2660 = vld [vmem:[%s2659] sm:$0xf]
        %v2661 = vld [vmem:[%s2659 + $0x4] sm:$0xf]
        %v2662 = vld [vmem:[%s2659 + $0x8] sm:$0xf]
        %v2663 = vld [vmem:[%s2659 + $0xc] sm:$0xf]
        %v2664 = vld [vmem:[%s2659 + $0x10] sm:$0xf]
        %v2665 = vld [vmem:[%s2659 + $0x14] sm:$0xf]
        %v2666 = vld [vmem:[%s2659 + $0x18] sm:$0xf]
        %v2667 = vld [vmem:[%s2659 + $0x1c] sm:$0xf]
        %v2668 = vld [vmem:[%s2659 + $0x20] sm:$0xf]
        %v2669 = vld [vmem:[%s2659 + $0x24] sm:$0xf]
        %v2680 = vunpack.c.l.b16 %v2660
        %v2681 = vunpack.c.l.b16 %v2661
        %v2682 = vunpack.c.l.b16 %v2662
        %v2683 = vunpack.c.l.b16 %v2663
        %v2684 = vunpack.c.l.b16 %v2664
        %v2685 = vunpack.c.l.b16 %v2665
        %v2686 = vunpack.c.l.b16 %v2666
        %v2687 = vunpack.c.l.b16 %v2667
        %v2688 = vunpack.c.l.b16 %v2668
        %v2689 = vunpack.c.l.b16 %v2669
        %v2690 = vpack.c.b16 %v2681, %v2680
        %v2691 = vpack.c.b16 %v2683, %v2682
        %v2692 = vpack.c.b16 %v2685, %v2684
        %v2693 = vpack.c.b16 %v2687, %v2686
        %v2694 = vpack.c.b16 %v2689, %v2688
        %v2701 = vsel %vm1646, %v2653, 0
        %v2704 = vsel %vm1646, %v2654, 0
        %v2707 = vsel %vm1646, %v2655, 0
        %v2710 = vsel %vm1646, %v2656, 0
        %v2713 = vsel %vm1646, %v2657, 0
        %v2716 = vsel %vm1646, %v2658, 0
        %2718 = vmatprep.subr.bf16.mxu0 0
        %2719 = vmatpush1.bf16.msra.mxu0 %v2690
        %2720 = vmatprep.subr.bf16.mxu0 0
        %2721 = vmatpush1.bf16.msra.mxu0 %v2691
        %2722 = vmatprep.subr.bf16.mxu0 0
        %2723 = vmatpush1.bf16.msra.mxu0 %v2692
        %2724 = vmatprep.subr.bf16.mxu0 0
        %2725 = vmatpush1.bf16.msra.mxu0 %v2693
        %2726 = vmatprep.subr.bf16.mxu0 0
        %2727 = vmatpush1.bf16.msra.mxu0 %v2694
        %2728 = vmatprep.subr.bf16.mxu0 0
        %2729 = vmatpush1.bf16.msra.mxu0 0
        %2730 = vmatprep.subr.bf16.mxu0 0
        %2731 = vmatpush1.bf16.msra.mxu0 0
        %2732 = vmatprep.subr.bf16.mxu0 0
        %2733 = vmatpush1.bf16.msra.mxu0 0
        %2734 = vmatprep.subr.bf16.mxu0 0
        %2735 = vmatpush1.bf16.msra.mxu0 0
        %2736 = vmatprep.subr.bf16.mxu0 0
        %2737 = vmatpush1.bf16.msra.mxu0 0
        %2738 = vmatprep.subr.bf16.mxu0 0
        %2739 = vmatpush1.bf16.msra.mxu0 0
        %2740 = vmatprep.subr.bf16.mxu0 0
        %2741 = vmatpush1.bf16.msra.mxu0 0
        %2742 = vmatprep.subr.bf16.mxu0 0
        %2743 = vmatpush1.bf16.msra.mxu0 0
        %2744 = vmatprep.subr.bf16.mxu0 0
        %2745 = vmatpush1.bf16.msra.mxu0 0
        %2746 = vmatprep.subr.bf16.mxu0 0
        %2747 = vmatpush1.bf16.msra.mxu0 0
        %2748 = vmatprep.subr.bf16.mxu0 0
        %2749 = vmatpush1.bf16.msra.mxu0 0
        %2750 = vmatprep.mubr.bf16.mxu0 0
        %2751 = vmatmul.mubr.bf16.gmra.mrb[0].mxu0 %v2701
        %v2752 = vpop.f32.mrb[0].mxu0
        %v2753 = vadd.f32 0.0, %v2752
        %v2754 = vpop.f32.mrb[0].mxu0
        %v2755 = vpop.f32.mrb[0].mxu0
        %v2756 = vadd.f32 0.0, %v2755
        %v2757 = vpop.f32.mrb[0].mxu0
        %2758 = vmatprep.mubr.bf16.mxu0 0
        %2759 = vmatmul.mubr.bf16.gmra.mrb[0].mxu0 %v2704
        %v2760 = vpop.f32.mrb[0].mxu0
        %v2761 = vadd.f32 0.0, %v2760
        %v2762 = vpop.f32.mrb[0].mxu0
        %v2763 = vpop.f32.mrb[0].mxu0
        %v2764 = vadd.f32 0.0, %v2763
        %v2765 = vpop.f32.mrb[0].mxu0
        %2766 = vmatprep.mubr.bf16.mxu0 0
        %2767 = vmatmul.mubr.bf16.gmra.mrb[0].mxu0 %v2707
        %v2768 = vpop.f32.mrb[0].mxu0
        %v2769 = vadd.f32 0.0, %v2768
        %v2770 = vpop.f32.mrb[0].mxu0
        %v2771 = vpop.f32.mrb[0].mxu0
        %v2772 = vadd.f32 0.0, %v2771
        %v2773 = vpop.f32.mrb[0].mxu0
        %2774 = vmatprep.mubr.bf16.mxu0 0
        %2775 = vmatmul.mubr.bf16.gmra.mrb[0].mxu0 %v2710
        %v2776 = vpop.f32.mrb[0].mxu0
        %v2777 = vadd.f32 0.0, %v2776
        %v2778 = vpop.f32.mrb[0].mxu0
        %v2779 = vpop.f32.mrb[0].mxu0
        %v2780 = vadd.f32 0.0, %v2779
        %v2781 = vpop.f32.mrb[0].mxu0
        %2782 = vmatprep.mubr.bf16.mxu0 0
        %2783 = vmatmul.mubr.bf16.gmra.mrb[0].mxu0 %v2713
        %v2784 = vpop.f32.mrb[0].mxu0
        %v2785 = vadd.f32 0.0, %v2784
        %v2786 = vpop.f32.mrb[0].mxu0
        %v2787 = vpop.f32.mrb[0].mxu0
        %v2788 = vadd.f32 0.0, %v2787
        %v2789 = vpop.f32.mrb[0].mxu0
        %2790 = vmatprep.mubr.bf16.mxu0 0
        %2791 = vmatmul.mubr.bf16.gmra.mrb[0].mxu0 %v2716
        %v2792 = vpop.f32.mrb[0].mxu0
        %v2793 = vadd.f32 0.0, %v2792
        %v2794 = vpop.f32.mrb[0].mxu0
        %v2795 = vpop.f32.mrb[0].mxu0
        %v2796 = vpop.f32.mrb[0].mxu0
        %2797 = vdwg.mxu0
        %v2798 = vadd.f32 %v2631, %v2753
        %v2799 = vadd.f32 %v2632, %v2756
        %v2800 = vadd.f32 %v2633, %v2761
        %v2801 = vadd.f32 %v2634, %v2764
        %v2802 = vadd.f32 %v2635, %v2769
        %v2803 = vadd.f32 %v2636, %v2772
        %v2804 = vadd.f32 %v2637, %v2777
        %v2805 = vadd.f32 %v2638, %v2780
        %v2806 = vadd.f32 %v2639, %v2785
        %v2807 = vadd.f32 %v2640, %v2788
        %v2808 = vadd.f32 %v2641, %v2793
        %v2809 = vld [vmem:[#allocation2 + $0x13] sm:$0xff]
        %v2810 = vld [vmem:[#allocation2 + $0x1b] sm:$0xff]
        %v2811 = vld [vmem:[#allocation2 + $0x23] sm:$0xff]
        %v2812 = vld [vmem:[#allocation2 + $0x2b] sm:$0xff]
        %v2813 = vld [vmem:[#allocation2 + $0x33] sm:$0xff]
        %v2814 = vld [vmem:[#allocation2 + $0x3b] sm:$0xff]
        %v2815 = vld [vmem:[#allocation2 + $0x43] sm:$0xff]
        %v2816 = vld [vmem:[#allocation2 + $0x4b] sm:$0xff]
        %v2817 = vld [vmem:[#allocation2 + $0x53] sm:$0xff]
        %v2818 = vld [vmem:[#allocation2 + $0x5b] sm:$0xff]
        %v2819 = vld [vmem:[#allocation2 + $0x63] sm:$0x1]
        %v2820 = vpack.c.bf16 %v2810, %v2809
        %v2821 = vpack.c.bf16 %v2812, %v2811
        %v2822 = vpack.c.bf16 %v2814, %v2813
        %v2823 = vpack.c.bf16 %v2816, %v2815
        %v2824 = vpack.c.bf16 %v2818, %v2817
        %v2825 = vpack.c.bf16 %v2819, %v2819
        %s2826 = scalar_lea.vmem [#allocation5], 280
        %v2827 = vld [vmem:[%s2826] sm:$0xf]
        %v2828 = vld [vmem:[%s2826 + $0x4] sm:$0xf]
        %v2829 = vld [vmem:[%s2826 + $0x8] sm:$0xf]
        %v2830 = vld [vmem:[%s2826 + $0xc] sm:$0xf]
        %v2831 = vld [vmem:[%s2826 + $0x10] sm:$0xf]
        %v2832 = vld [vmem:[%s2826 + $0x14] sm:$0xf]
        %v2833 = vld [vmem:[%s2826 + $0x18] sm:$0xf]
        %v2834 = vld [vmem:[%s2826 + $0x1c] sm:$0xf]
        %v2835 = vld [vmem:[%s2826 + $0x20] sm:$0xf]
        %v2836 = vld [vmem:[%s2826 + $0x24] sm:$0xf]
        %v2847 = vunpack.c.l.b16 %v2827
        %v2848 = vunpack.c.l.b16 %v2828
        %v2849 = vunpack.c.l.b16 %v2829
        %v2850 = vunpack.c.l.b16 %v2830
        %v2851 = vunpack.c.l.b16 %v2831
        %v2852 = vunpack.c.l.b16 %v2832
        %v2853 = vunpack.c.l.b16 %v2833
        %v2854 = vunpack.c.l.b16 %v2834
        %v2855 = vunpack.c.l.b16 %v2835
        %v2856 = vunpack.c.l.b16 %v2836
        %v2857 = vpack.c.b16 %v2848, %v2847
        %v2858 = vpack.c.b16 %v2850, %v2849
        %v2859 = vpack.c.b16 %v2852, %v2851
        %v2860 = vpack.c.b16 %v2854, %v2853
        %v2861 = vpack.c.b16 %v2856, %v2855
        %v2868 = vsel %vm1646, %v2820, 0
        %v2871 = vsel %vm1646, %v2821, 0
        %v2874 = vsel %vm1646, %v2822, 0
        %v2877 = vsel %vm1646, %v2823, 0
        %v2880 = vsel %vm1646, %v2824, 0
        %v2883 = vsel %vm1646, %v2825, 0
        %2885 = vmatprep.subr.bf16.mxu0 0
        %2886 = vmatpush1.bf16.msra.mxu0 %v2857
        %2887 = vmatprep.subr.bf16.mxu0 0
        %2888 = vmatpush1.bf16.msra.mxu0 %v2858
        %2889 = vmatprep.subr.bf16.mxu0 0
        %2890 = vmatpush1.bf16.msra.mxu0 %v2859
        %2891 = vmatprep.subr.bf16.mxu0 0
        %2892 = vmatpush1.bf16.msra.mxu0 %v2860
        %2893 = vmatprep.subr.bf16.mxu0 0
        %2894 = vmatpush1.bf16.msra.mxu0 %v2861
        %2895 = vmatprep.subr.bf16.mxu0 0
        %2896 = vmatpush1.bf16.msra.mxu0 0
        %2897 = vmatprep.subr.bf16.mxu0 0
        %2898 = vmatpush1.bf16.msra.mxu0 0
        %2899 = vmatprep.subr.bf16.mxu0 0
        %2900 = vmatpush1.bf16.msra.mxu0 0
        %2901 = vmatprep.subr.bf16.mxu0 0
        %2902 = vmatpush1.bf16.msra.mxu0 0
        %2903 = vmatprep.subr.bf16.mxu0 0
        %2904 = vmatpush1.bf16.msra.mxu0 0
        %2905 = vmatprep.subr.bf16.mxu0 0
        %2906 = vmatpush1.bf16.msra.mxu0 0
        %2907 = vmatprep.subr.bf16.mxu0 0
        %2908 = vmatpush1.bf16.msra.mxu0 0
        %2909 = vmatprep.subr.bf16.mxu0 0
        %2910 = vmatpush1.bf16.msra.mxu0 0
        %2911 = vmatprep.subr.bf16.mxu0 0
        %2912 = vmatpush1.bf16.msra.mxu0 0
        %2913 = vmatprep.subr.bf16.mxu0 0
        %2914 = vmatpush1.bf16.msra.mxu0 0
        %2915 = vmatprep.subr.bf16.mxu0 0
        %2916 = vmatpush1.bf16.msra.mxu0 0
        %2917 = vmatprep.mubr.bf16.mxu0 0
        %2918 = vmatmul.mubr.bf16.gmra.mrb[0].mxu0 %v2868
        %v2919 = vpop.f32.mrb[0].mxu0
        %v2920 = vadd.f32 0.0, %v2919
        %v2921 = vpop.f32.mrb[0].mxu0
        %v2922 = vpop.f32.mrb[0].mxu0
        %v2923 = vadd.f32 0.0, %v2922
        %v2924 = vpop.f32.mrb[0].mxu0
        %2925 = vmatprep.mubr.bf16.mxu0 0
        %2926 = vmatmul.mubr.bf16.gmra.mrb[0].mxu0 %v2871
        %v2927 = vpop.f32.mrb[0].mxu0
        %v2928 = vadd.f32 0.0, %v2927
        %v2929 = vpop.f32.mrb[0].mxu0
        %v2930 = vpop.f32.mrb[0].mxu0
        %v2931 = vadd.f32 0.0, %v2930
        %v2932 = vpop.f32.mrb[0].mxu0
        %2933 = vmatprep.mubr.bf16.mxu0 0
        %2934 = vmatmul.mubr.bf16.gmra.mrb[0].mxu0 %v2874
        %v2935 = vpop.f32.mrb[0].mxu0
        %v2936 = vadd.f32 0.0, %v2935
        %v2937 = vpop.f32.mrb[0].mxu0
        %v2938 = vpop.f32.mrb[0].mxu0
        %v2939 = vadd.f32 0.0, %v2938
        %v2940 = vpop.f32.mrb[0].mxu0
        %2941 = vmatprep.mubr.bf16.mxu0 0
        %2942 = vmatmul.mubr.bf16.gmra.mrb[0].mxu0 %v2877
        %v2943 = vpop.f32.mrb[0].mxu0
        %v2944 = vadd.f32 0.0, %v2943
        %v2945 = vpop.f32.mrb[0].mxu0
        %v2946 = vpop.f32.mrb[0].mxu0
        %v2947 = vadd.f32 0.0, %v2946
        %v2948 = vpop.f32.mrb[0].mxu0
        %2949 = vmatprep.mubr.bf16.mxu0 0
        %2950 = vmatmul.mubr.bf16.gmra.mrb[0].mxu0 %v2880
        %v2951 = vpop.f32.mrb[0].mxu0
        %v2952 = vadd.f32 0.0, %v2951
        %v2953 = vpop.f32.mrb[0].mxu0
        %v2954 = vpop.f32.mrb[0].mxu0
        %v2955 = vadd.f32 0.0, %v2954
        %v2956 = vpop.f32.mrb[0].mxu0
        %2957 = vmatprep.mubr.bf16.mxu0 0
        %2958 = vmatmul.mubr.bf16.gmra.mrb[0].mxu0 %v2883
        %v2959 = vpop.f32.mrb[0].mxu0
        %v2960 = vadd.f32 0.0, %v2959
        %v2961 = vpop.f32.mrb[0].mxu0
        %v2962 = vpop.f32.mrb[0].mxu0
        %v2963 = vpop.f32.mrb[0].mxu0
        %2964 = vdwg.mxu0
        %v2965 = vadd.f32 %v2798, %v2920
        %v2966 = vadd.f32 %v2799, %v2923
        %v2967 = vadd.f32 %v2800, %v2928
        %v2968 = vadd.f32 %v2801, %v2931
        %v2969 = vadd.f32 %v2802, %v2936
        %v2970 = vadd.f32 %v2803, %v2939
        %v2971 = vadd.f32 %v2804, %v2944
        %v2972 = vadd.f32 %v2805, %v2947
        %v2973 = vadd.f32 %v2806, %v2952
        %v2974 = vadd.f32 %v2807, %v2955
        %v2975 = vadd.f32 %v2808, %v2960
        %v2976 = vld [vmem:[#allocation2 + $0x14] sm:$0xff]
        %v2977 = vld [vmem:[#allocation2 + $0x1c] sm:$0xff]
        %v2978 = vld [vmem:[#allocation2 + $0x24] sm:$0xff]
        %v2979 = vld [vmem:[#allocation2 + $0x2c] sm:$0xff]
        %v2980 = vld [vmem:[#allocation2 + $0x34] sm:$0xff]
        %v2981 = vld [vmem:[#allocation2 + $0x3c] sm:$0xff]
        %v2982 = vld [vmem:[#allocation2 + $0x44] sm:$0xff]
        %v2983 = vld [vmem:[#allocation2 + $0x4c] sm:$0xff]
        %v2984 = vld [vmem:[#allocation2 + $0x54] sm:$0xff]
        %v2985 = vld [vmem:[#allocation2 + $0x5c] sm:$0xff]
        %v2986 = vld [vmem:[#allocation2 + $0x64] sm:$0x1]
        %v2987 = vpack.c.bf16 %v2977, %v2976
        %v2988 = vpack.c.bf16 %v2979, %v2978
        %v2989 = vpack.c.bf16 %v2981, %v2980
        %v2990 = vpack.c.bf16 %v2983, %v2982
        %v2991 = vpack.c.bf16 %v2985, %v2984
        %v2992 = vpack.c.bf16 %v2986, %v2986
        %s2993 = scalar_lea.vmem [#allocation5], 320
        %v2994 = vld [vmem:[%s2993] sm:$0xf]
        %v2995 = vld [vmem:[%s2993 + $0x4] sm:$0xf]
        %v2996 = vld [vmem:[%s2993 + $0x8] sm:$0xf]
        %v2997 = vld [vmem:[%s2993 + $0xc] sm:$0xf]
        %v2998 = vld [vmem:[%s2993 + $0x10] sm:$0xf]
        %v2999 = vld [vmem:[%s2993 + $0x14] sm:$0xf]
        %v3000 = vld [vmem:[%s2993 + $0x18] sm:$0xf]
        %v3001 = vld [vmem:[%s2993 + $0x1c] sm:$0xf]
        %v3002 = vld [vmem:[%s2993 + $0x20] sm:$0xf]
        %v3003 = vld [vmem:[%s2993 + $0x24] sm:$0xf]
        %v3014 = vunpack.c.l.b16 %v2994
        %v3015 = vunpack.c.l.b16 %v2995
        %v3016 = vunpack.c.l.b16 %v2996
        %v3017 = vunpack.c.l.b16 %v2997
        %v3018 = vunpack.c.l.b16 %v2998
        %v3019 = vunpack.c.l.b16 %v2999
        %v3020 = vunpack.c.l.b16 %v3000
        %v3021 = vunpack.c.l.b16 %v3001
        %v3022 = vunpack.c.l.b16 %v3002
        %v3023 = vunpack.c.l.b16 %v3003
        %v3024 = vpack.c.b16 %v3015, %v3014
        %v3025 = vpack.c.b16 %v3017, %v3016
        %v3026 = vpack.c.b16 %v3019, %v3018
        %v3027 = vpack.c.b16 %v3021, %v3020
        %v3028 = vpack.c.b16 %v3023, %v3022
        %v3035 = vsel %vm1646, %v2987, 0
        %v3038 = vsel %vm1646, %v2988, 0
        %v3041 = vsel %vm1646, %v2989, 0
        %v3044 = vsel %vm1646, %v2990, 0
        %v3047 = vsel %vm1646, %v2991, 0
        %v3050 = vsel %vm1646, %v2992, 0
        %3052 = vmatprep.subr.bf16.mxu0 0
        %3053 = vmatpush1.bf16.msra.mxu0 %v3024
        %3054 = vmatprep.subr.bf16.mxu0 0
        %3055 = vmatpush1.bf16.msra.mxu0 %v3025
        %3056 = vmatprep.subr.bf16.mxu0 0
        %3057 = vmatpush1.bf16.msra.mxu0 %v3026
        %3058 = vmatprep.subr.bf16.mxu0 0
        %3059 = vmatpush1.bf16.msra.mxu0 %v3027
        %3060 = vmatprep.subr.bf16.mxu0 0
        %3061 = vmatpush1.bf16.msra.mxu0 %v3028
        %3062 = vmatprep.subr.bf16.mxu0 0
        %3063 = vmatpush1.bf16.msra.mxu0 0
        %3064 = vmatprep.subr.bf16.mxu0 0
        %3065 = vmatpush1.bf16.msra.mxu0 0
        %3066 = vmatprep.subr.bf16.mxu0 0
        %3067 = vmatpush1.bf16.msra.mxu0 0
        %3068 = vmatprep.subr.bf16.mxu0 0
        %3069 = vmatpush1.bf16.msra.mxu0 0
        %3070 = vmatprep.subr.bf16.mxu0 0
        %3071 = vmatpush1.bf16.msra.mxu0 0
        %3072 = vmatprep.subr.bf16.mxu0 0
        %3073 = vmatpush1.bf16.msra.mxu0 0
        %3074 = vmatprep.subr.bf16.mxu0 0
        %3075 = vmatpush1.bf16.msra.mxu0 0
        %3076 = vmatprep.subr.bf16.mxu0 0
        %3077 = vmatpush1.bf16.msra.mxu0 0
        %3078 = vmatprep.subr.bf16.mxu0 0
        %3079 = vmatpush1.bf16.msra.mxu0 0
        %3080 = vmatprep.subr.bf16.mxu0 0
        %3081 = vmatpush1.bf16.msra.mxu0 0
        %3082 = vmatprep.subr.bf16.mxu0 0
        %3083 = vmatpush1.bf16.msra.mxu0 0
        %3084 = vmatprep.mubr.bf16.mxu0 0
        %3085 = vmatmul.mubr.bf16.gmra.mrb[0].mxu0 %v3035
        %v3086 = vpop.f32.mrb[0].mxu0
        %v3087 = vadd.f32 0.0, %v3086
        %v3088 = vpop.f32.mrb[0].mxu0
        %v3089 = vpop.f32.mrb[0].mxu0
        %v3090 = vadd.f32 0.0, %v3089
        %v3091 = vpop.f32.mrb[0].mxu0
        %3092 = vmatprep.mubr.bf16.mxu0 0
        %3093 = vmatmul.mubr.bf16.gmra.mrb[0].mxu0 %v3038
        %v3094 = vpop.f32.mrb[0].mxu0
        %v3095 = vadd.f32 0.0, %v3094
        %v3096 = vpop.f32.mrb[0].mxu0
        %v3097 = vpop.f32.mrb[0].mxu0
        %v3098 = vadd.f32 0.0, %v3097
        %v3099 = vpop.f32.mrb[0].mxu0
        %3100 = vmatprep.mubr.bf16.mxu0 0
        %3101 = vmatmul.mubr.bf16.gmra.mrb[0].mxu0 %v3041
        %v3102 = vpop.f32.mrb[0].mxu0
        %v3103 = vadd.f32 0.0, %v3102
        %v3104 = vpop.f32.mrb[0].mxu0
        %v3105 = vpop.f32.mrb[0].mxu0
        %v3106 = vadd.f32 0.0, %v3105
        %v3107 = vpop.f32.mrb[0].mxu0
        %3108 = vmatprep.mubr.bf16.mxu0 0
        %3109 = vmatmul.mubr.bf16.gmra.mrb[0].mxu0 %v3044
        %v3110 = vpop.f32.mrb[0].mxu0
        %v3111 = vadd.f32 0.0, %v3110
        %v3112 = vpop.f32.mrb[0].mxu0
        %v3113 = vpop.f32.mrb[0].mxu0
        %v3114 = vadd.f32 0.0, %v3113
        %v3115 = vpop.f32.mrb[0].mxu0
        %3116 = vmatprep.mubr.bf16.mxu0 0
        %3117 = vmatmul.mubr.bf16.gmra.mrb[0].mxu0 %v3047
        %v3118 = vpop.f32.mrb[0].mxu0
        %v3119 = vadd.f32 0.0, %v3118
        %v3120 = vpop.f32.mrb[0].mxu0
        %v3121 = vpop.f32.mrb[0].mxu0
        %v3122 = vadd.f32 0.0, %v3121
        %v3123 = vpop.f32.mrb[0].mxu0
        %3124 = vmatprep.mubr.bf16.mxu0 0
        %3125 = vmatmul.mubr.bf16.gmra.mrb[0].mxu0 %v3050
        %v3126 = vpop.f32.mrb[0].mxu0
        %v3127 = vadd.f32 0.0, %v3126
        %v3128 = vpop.f32.mrb[0].mxu0
        %v3129 = vpop.f32.mrb[0].mxu0
        %v3130 = vpop.f32.mrb[0].mxu0
        %3131 = vdwg.mxu0
        %v3132 = vadd.f32 %v2965, %v3087
        %v3133 = vadd.f32 %v2966, %v3090
        %v3134 = vadd.f32 %v2967, %v3095
        %v3135 = vadd.f32 %v2968, %v3098
        %v3136 = vadd.f32 %v2969, %v3103
        %v3137 = vadd.f32 %v2970, %v3106
        %v3138 = vadd.f32 %v2971, %v3111
        %v3139 = vadd.f32 %v2972, %v3114
        %v3140 = vadd.f32 %v2973, %v3119
        %v3141 = vadd.f32 %v2974, %v3122
        %v3142 = vadd.f32 %v2975, %v3127
        %v3143 = vld [vmem:[#allocation10] sm:$0x1]
        %v3145 = vlaneseq
        %v3146 = vshrl.u32 %v3145, 7
        %v3147 = vsub.s32 0, %v3146
        %v3148 = vrot.slane %v3143, %v3147
        %v3150 = vadd.f32 %v3132, %v3148
        %v3151 = vadd.f32 %v3133, %v3148
        %v3152 = vadd.f32 %v3134, %v3148
        %v3153 = vadd.f32 %v3135, %v3148
        %v3154 = vadd.f32 %v3136, %v3148
        %v3155 = vadd.f32 %v3137, %v3148
        %v3156 = vadd.f32 %v3138, %v3148
        %v3157 = vadd.f32 %v3139, %v3148
        %v3158 = vadd.f32 %v3140, %v3148
        %v3159 = vadd.f32 %v3141, %v3148
        %v3160 = vadd.f32 %v3142, %v3148
        %v3161 = vmax.f32 %v3150, 0.0
        %v3162 = vmax.f32 %v3151, 0.0
        %v3163 = vmax.f32 %v3152, 0.0
        %v3164 = vmax.f32 %v3153, 0.0
        %v3165 = vmax.f32 %v3154, 0.0
        %v3166 = vmax.f32 %v3155, 0.0
        %v3167 = vmax.f32 %v3156, 0.0
        %v3168 = vmax.f32 %v3157, 0.0
        %v3169 = vmax.f32 %v3158, 0.0
        %v3170 = vmax.f32 %v3159, 0.0
        %v3171 = vmax.f32 %v3160, 0.0
        %v3172 = vpack.c.bf16 %v3162, %v3161
        %v3173 = vpack.c.bf16 %v3164, %v3163
        %v3174 = vpack.c.bf16 %v3166, %v3165
        %v3175 = vpack.c.bf16 %v3168, %v3167
        %v3176 = vpack.c.bf16 %v3170, %v3169
        %v3177 = vpack.c.bf16 %v3171, %v3171
        %v3178 = vld [vmem:[#allocation7] sm:$0xf]
        %v3179 = vld [vmem:[#allocation7 + $0x4] sm:$0xf]
        %v3180 = vld [vmem:[#allocation7 + $0x8] sm:$0xf]
        %v3181 = vld [vmem:[#allocation7 + $0xc] sm:$0xf]
        %v3182 = vld [vmem:[#allocation7 + $0x10] sm:$0xf]
        %v3183 = vld [vmem:[#allocation7 + $0x14] sm:$0xf]
        %v3184 = vld [vmem:[#allocation7 + $0x18] sm:$0xf]
        %v3185 = vld [vmem:[#allocation7 + $0x1c] sm:$0xf]
        %v3186 = vld [vmem:[#allocation7 + $0x20] sm:$0xf]
        %v3187 = vld [vmem:[#allocation7 + $0x24] sm:$0xf]
        %v3188 = vld [vmem:[#allocation7 + $0x28] sm:$0xf]
        %v3189 = vld [vmem:[#allocation7 + $0x2c] sm:$0xf]
        %v3190 = vld [vmem:[#allocation11] sm:$0x1]
        %v3192 = vlaneseq
        %v3193 = vshrl.u32 %v3192, 7
        %v3194 = vsub.s32 0, %v3193
        %v3195 = vrot.slane %v3190, %v3194
        %v3209 = vunpack.c.l.b16 %v3178
        %v3210 = vunpack.c.l.b16 %v3179
        %v3211 = vunpack.c.l.b16 %v3180
        %v3212 = vunpack.c.l.b16 %v3181
        %v3213 = vunpack.c.l.b16 %v3182
        %v3214 = vunpack.c.l.b16 %v3183
        %v3215 = vunpack.c.l.b16 %v3184
        %v3216 = vunpack.c.l.b16 %v3185
        %v3217 = vunpack.c.l.b16 %v3186
        %v3218 = vunpack.c.l.b16 %v3187
        %v3219 = vunpack.c.l.b16 %v3188
        %v3220 = vunpack.c.l.b16 %v3189
        %v3221 = vpack.c.b16 %v3210, %v3209
        %v3222 = vpack.c.b16 %v3212, %v3211
        %v3223 = vpack.c.b16 %v3214, %v3213
        %v3224 = vpack.c.b16 %v3216, %v3215
        %v3225 = vpack.c.b16 %v3218, %v3217
        %v3226 = vpack.c.b16 %v3220, %v3219
        %vm3233 = vcmask 785408
        %v3235 = vsel %vm3233, %v3172, 0
        %v3238 = vsel %vm3233, %v3173, 0
        %v3241 = vsel %vm3233, %v3174, 0
        %v3244 = vsel %vm3233, %v3175, 0
        %v3247 = vsel %vm3233, %v3176, 0
        %v3250 = vsel %vm3233, %v3177, 0
        %3252 = vmatprep.subr.bf16.mxu0 0
        %3253 = vmatpush1.bf16.msra.mxu0 %v3221
        %3254 = vmatprep.subr.bf16.mxu0 0
        %3255 = vmatpush1.bf16.msra.mxu0 %v3222
        %3256 = vmatprep.subr.bf16.mxu0 0
        %3257 = vmatpush1.bf16.msra.mxu0 %v3223
        %3258 = vmatprep.subr.bf16.mxu0 0
        %3259 = vmatpush1.bf16.msra.mxu0 %v3224
        %3260 = vmatprep.subr.bf16.mxu0 0
        %3261 = vmatpush1.bf16.msra.mxu0 %v3225
        %3262 = vmatprep.subr.bf16.mxu0 0
        %3263 = vmatpush1.bf16.msra.mxu0 %v3226
        %3264 = vmatprep.subr.bf16.mxu0 0
        %3265 = vmatpush1.bf16.msra.mxu0 0
        %3266 = vmatprep.subr.bf16.mxu0 0
        %3267 = vmatpush1.bf16.msra.mxu0 0
        %3268 = vmatprep.subr.bf16.mxu0 0
        %3269 = vmatpush1.bf16.msra.mxu0 0
        %3270 = vmatprep.subr.bf16.mxu0 0
        %3271 = vmatpush1.bf16.msra.mxu0 0
        %3272 = vmatprep.subr.bf16.mxu0 0
        %3273 = vmatpush1.bf16.msra.mxu0 0
        %3274 = vmatprep.subr.bf16.mxu0 0
        %3275 = vmatpush1.bf16.msra.mxu0 0
        %3276 = vmatprep.subr.bf16.mxu0 0
        %3277 = vmatpush1.bf16.msra.mxu0 0
        %3278 = vmatprep.subr.bf16.mxu0 0
        %3279 = vmatpush1.bf16.msra.mxu0 0
        %3280 = vmatprep.subr.bf16.mxu0 0
        %3281 = vmatpush1.bf16.msra.mxu0 0
        %3282 = vmatprep.subr.bf16.mxu0 0
        %3283 = vmatpush1.bf16.msra.mxu0 0
        %3284 = vmatprep.mubr.bf16.mxu0 0
        %3285 = vmatmul.mubr.bf16.gmra.mrb[0].mxu0 %v3235
        %v3286 = vpop.f32.mrb[0].mxu0
        %v3287 = vadd.f32 %v3195, %v3286
        %v3288 = vpop.f32.mrb[0].mxu0
        %v3289 = vpop.f32.mrb[0].mxu0
        %v3290 = vadd.f32 %v3195, %v3289
        %v3291 = vpop.f32.mrb[0].mxu0
        %3292 = vmatprep.mubr.bf16.mxu0 0
        %3293 = vmatmul.mubr.bf16.gmra.mrb[0].mxu0 %v3238
        %v3294 = vpop.f32.mrb[0].mxu0
        %v3295 = vadd.f32 %v3195, %v3294
        %v3296 = vpop.f32.mrb[0].mxu0
        %v3297 = vpop.f32.mrb[0].mxu0
        %v3298 = vadd.f32 %v3195, %v3297
        %v3299 = vpop.f32.mrb[0].mxu0
        %3300 = vmatprep.mubr.bf16.mxu0 0
        %3301 = vmatmul.mubr.bf16.gmra.mrb[0].mxu0 %v3241
        %v3302 = vpop.f32.mrb[0].mxu0
        %v3303 = vadd.f32 %v3195, %v3302
        %v3304 = vpop.f32.mrb[0].mxu0
        %v3305 = vpop.f32.mrb[0].mxu0
        %v3306 = vadd.f32 %v3195, %v3305
        %v3307 = vpop.f32.mrb[0].mxu0
        %3308 = vmatprep.mubr.bf16.mxu0 0
        %3309 = vmatmul.mubr.bf16.gmra.mrb[0].mxu0 %v3244
        %v3310 = vpop.f32.mrb[0].mxu0
        %v3311 = vadd.f32 %v3195, %v3310
        %v3312 = vpop.f32.mrb[0].mxu0
        %v3313 = vpop.f32.mrb[0].mxu0
        %v3314 = vadd.f32 %v3195, %v3313
        %v3315 = vpop.f32.mrb[0].mxu0
        %3316 = vmatprep.mubr.bf16.mxu0 0
        %3317 = vmatmul.mubr.bf16.gmra.mrb[0].mxu0 %v3247
        %v3318 = vpop.f32.mrb[0].mxu0
        %v3319 = vadd.f32 %v3195, %v3318
        %v3320 = vpop.f32.mrb[0].mxu0
        %v3321 = vpop.f32.mrb[0].mxu0
        %v3322 = vadd.f32 %v3195, %v3321
        %v3323 = vpop.f32.mrb[0].mxu0
        %3324 = vmatprep.mubr.bf16.mxu0 0
        %3325 = vmatmul.mubr.bf16.gmra.mrb[0].mxu0 %v3250
        %v3326 = vpop.f32.mrb[0].mxu0
        %v3327 = vadd.f32 %v3195, %v3326
        %v3328 = vpop.f32.mrb[0].mxu0
        %v3329 = vpop.f32.mrb[0].mxu0
        %v3330 = vpop.f32.mrb[0].mxu0
        %3331 = vdwg.mxu0
        %v3332 = vmax.f32 %v3287, 0.0
        %v3333 = vmax.f32 %v3290, 0.0
        %v3334 = vmax.f32 %v3295, 0.0
        %v3335 = vmax.f32 %v3298, 0.0
        %v3336 = vmax.f32 %v3303, 0.0
        %v3337 = vmax.f32 %v3306, 0.0
        %v3338 = vmax.f32 %v3311, 0.0
        %v3339 = vmax.f32 %v3314, 0.0
        %v3340 = vmax.f32 %v3319, 0.0
        %v3341 = vmax.f32 %v3322, 0.0
        %v3342 = vmax.f32 %v3327, 0.0
        %3343 = vst [vmem:[%s360] sm:$0xff] %v3332
        %3344 = vst [vmem:[%s360 + $0x8] sm:$0xff] %v3333
        %3345 = vst [vmem:[%s360 + $0x10] sm:$0xff] %v3334
        %3346 = vst [vmem:[%s360 + $0x18] sm:$0xff] %v3335
        %3347 = vst [vmem:[%s360 + $0x20] sm:$0xff] %v3336
        %3348 = vst [vmem:[%s360 + $0x28] sm:$0xff] %v3337
        %3349 = vst [vmem:[%s360 + $0x30] sm:$0xff] %v3338
        %3350 = vst [vmem:[%s360 + $0x38] sm:$0xff] %v3339
        %3351 = vst [vmem:[%s360 + $0x40] sm:$0xff] %v3340
        %3352 = vst [vmem:[%s360 + $0x48] sm:$0xff] %v3341
        %3353 = vst [vmem:[%s360 + $0x50] sm:$0x1] %v3342
        %p3354 = scmp.lt.s32.totalorder %s22, 1
        %s3355 = scalar_select %p3354, %s22, 1
        %s3356 = smul.addr %s3355, 11
        %s3357 = smul.addr %s3356, 8
        %s3358 = scalar_lea.vmem %s7, %s3357
        // Predicated region
        $region73: #{hysn_forward.2} parent=47 // pred_check
          %p3359 = pneg %p192
        $region74: #{hysn_forward.2} parent=47 // pred_check_branch
          %3361 = sbr.rel (%p3359) target = $region76
        $region75: #{hysn_forward.2} parent=47 // pred_region
          _
        $region76: #{hysn_forward.2} parent=47 // pred_fallthru
          _
      $region48: #{hysn_forward.2} parent=5 // pred_fallthru
        _
      %p3362 = scmp.le.s32.totalorder 2, %s17
      // Predicated region
      $region77: #{hysn_forward.2} parent=5 // pred_check
        %p3363 = pneg %p3362
      $region78: #{hysn_forward.2} parent=5 // pred_check_branch
        %3365 = sbr.rel (%p3363) target = $region80
      $region79: #{hysn_forward.2} parent=5 // pred_region
        %s3366 = ssub.s32 %s17, 2
        // Predicated region
        $region81: #{hysn_forward.2} parent=79 // pred_check
          %p3367 = pneg %p198
        $region82: #{hysn_forward.2} parent=79 // pred_check_branch
          %3369 = sbr.rel (%p3367) target = $region84
        $region83: #{hysn_forward.2} parent=79 // pred_region
          %p3370 = scmp.lt.s32.totalorder %s23, 1
          %s3371 = scalar_select %p3370, %s23, 1
          %s3372 = smul.addr %s3371, 11
          %s3373 = smul.addr %s3372, 8
          %s3374 = scalar_lea.vmem %s7, %s3373
        $region84: #{hysn_forward.2} parent=79 // pred_fallthru
          _
      $region80: #{hysn_forward.2} parent=5 // pred_fallthru
        _
    $region6: #{hysn_forward.2} parent=1 // loop_footer
      %s21 = sadd.s32 1, %s17
    $region7: #{hysn_forward.2} parent=1 // loop_footer_branch
      %16 = sbr.rel target = $region3
    $region8: #{hysn_forward.2} parent=1 // loop_exit
      _
    %3375 = vsyncpa [#allocation4], 1
    %s3376 = scalar_lea.sflag [#allocation4], 1
    %3377 = vsyncpa %s3376, 1
    %3378 = vsyncpa [#allocation6], 1
    %3379 = vsyncpa [#allocation9], 1
    %3380 = vsyncpa [#allocation12], 1

// kernel: hysn_forward.3
$region0: #{hysn_forward.3}
  #allocation0 [shape = 'u32[]', space=smem, size = 0x4, offset = 0x4, fixed_abs, tag = 'smem constant byte address 0x4 - core index']
  #allocation1 [shape = 'u32[144,128]{1,0:T(1,128)}', space=vmem, size = 0x12000, scoped, tag = 'internal scratch']
  %s0 = inlined_call_operand.vmem [shape: f32[56,128], index: 0, kind: input, shape index: {}]
  %s1 = inlined_call_operand.vmem [shape: bf16[128,64], index: 1, kind: input, shape index: {}]
  %s2 = inlined_call_operand.vmem [shape: f32[1,64], index: 2, kind: input, shape index: {}]
  %s3 = inlined_call_operand.vmem [shape: f32[56,64], index: 3, kind: output, shape index: {}]
  %s4 = sld [smem:[#allocation0]]
  $region22: #{hysn_forward.3} parent=0
    _
  %s6 = ssub.s32 1, %s4
  %s7 = scalar_select 0, %s6, %s4
  // Predicated region
  $region2: #{hysn_forward.3} parent=0 // pred_check
    _
  $region3: #{hysn_forward.3} parent=0 // pred_check_branch
    %9 = sbr.rel (0) target = $region5
  $region4: #{hysn_forward.3} parent=0 // pred_region
    _
  $region5: #{hysn_forward.3} parent=0 // pred_fallthru
    _
  // Predicated region
  $region6: #{hysn_forward.3} parent=0 // pred_check
    _
  $region7: #{hysn_forward.3} parent=0 // pred_check_branch
    %11 = sbr.rel (0) target = $region9
  $region8: #{hysn_forward.3} parent=0 // pred_region
    _
  $region9: #{hysn_forward.3} parent=0 // pred_fallthru
    _
  // Predicated region
  $region10: #{hysn_forward.3} parent=0 // pred_check
    _
  $region11: #{hysn_forward.3} parent=0 // pred_check_branch
    %13 = sbr.rel (0) target = $region13
  $region12: #{hysn_forward.3} parent=0 // pred_region
    _
  $region13: #{hysn_forward.3} parent=0 // pred_fallthru
    _
  %v15 = vld [vmem:[%s0] sm:$0xff]
  %v16 = vld [vmem:[%s0 + $0x8] sm:$0xff]
  %v17 = vld [vmem:[%s0 + $0x10] sm:$0xff]
  %v18 = vld [vmem:[%s0 + $0x18] sm:$0xff]
  %v19 = vld [vmem:[%s0 + $0x20] sm:$0xff]
  %v20 = vld [vmem:[%s0 + $0x28] sm:$0xff]
  %v21 = vld [vmem:[%s0 + $0x30] sm:$0xff]
  %v22 = vpack.c.bf16 %v16, %v15
  %v23 = vpack.c.bf16 %v18, %v17
  %v24 = vpack.c.bf16 %v20, %v19
  %v25 = vpack.c.bf16 %v21, %v21
  %v26 = vld [vmem:[%s1] sm:$0xf]
  %v27 = vld [vmem:[%s1 + $0x4] sm:$0xf]
  %v28 = vld [vmem:[%s1 + $0x8] sm:$0xf]
  %v29 = vld [vmem:[%s1 + $0xc] sm:$0xf]
  %v30 = vld [vmem:[%s1 + $0x10] sm:$0xf]
  %v31 = vld [vmem:[%s1 + $0x14] sm:$0xf]
  %v32 = vld [vmem:[%s1 + $0x18] sm:$0xf]
  %v33 = vld [vmem:[%s1 + $0x1c] sm:$0xf]
  %v34 = vld [vmem:[%s1 + $0x20] sm:$0xf]
  %v35 = vld [vmem:[%s1 + $0x24] sm:$0xf]
  %v36 = vld [vmem:[%s1 + $0x28] sm:$0xf]
  %v37 = vld [vmem:[%s1 + $0x2c] sm:$0xf]
  %v38 = vld [vmem:[%s1 + $0x30] sm:$0xf]
  %v39 = vld [vmem:[%s1 + $0x34] sm:$0xf]
  %v40 = vld [vmem:[%s1 + $0x38] sm:$0xf]
  %v41 = vld [vmem:[%s1 + $0x3c] sm:$0xf]
  %v42 = vld [vmem:[%s2] sm:$0x1]
  %v44 = vlaneseq
  %v45 = vshrl.u32 %v44, 7
  %v46 = vsub.s32 0, %v45
  %v47 = vrot.slane %v42, %v46
  %v65 = vunpack.c.l.b16 %v26
  %v66 = vunpack.c.l.b16 %v27
  %v67 = vunpack.c.l.b16 %v28
  %v68 = vunpack.c.l.b16 %v29
  %v69 = vunpack.c.l.b16 %v30
  %v70 = vunpack.c.l.b16 %v31
  %v71 = vunpack.c.l.b16 %v32
  %v72 = vunpack.c.l.b16 %v33
  %v73 = vunpack.c.l.b16 %v34
  %v74 = vunpack.c.l.b16 %v35
  %v75 = vunpack.c.l.b16 %v36
  %v76 = vunpack.c.l.b16 %v37
  %v77 = vunpack.c.l.b16 %v38
  %v78 = vunpack.c.l.b16 %v39
  %v79 = vunpack.c.l.b16 %v40
  %v80 = vunpack.c.l.b16 %v41
  %v81 = vpack.c.b16 %v66, %v65
  %v82 = vpack.c.b16 %v68, %v67
  %v83 = vpack.c.b16 %v70, %v69
  %v84 = vpack.c.b16 %v72, %v71
  %v85 = vpack.c.b16 %v74, %v73
  %v86 = vpack.c.b16 %v76, %v75
  %v87 = vpack.c.b16 %v78, %v77
  %v88 = vpack.c.b16 %v80, %v79
  %97 = vmatprep.subr.bf16.mxu0 0
  %98 = vmatpush1.bf16.msra.mxu0 %v81
  %99 = vmatprep.subr.bf16.mxu0 0
  %100 = vmatpush1.bf16.msra.mxu0 %v82
  %101 = vmatprep.subr.bf16.mxu0 0
  %102 = vmatpush1.bf16.msra.mxu0 %v83
  %103 = vmatprep.subr.bf16.mxu0 0
  %104 = vmatpush1.bf16.msra.mxu0 %v84
  %105 = vmatprep.subr.bf16.mxu0 0
  %106 = vmatpush1.bf16.msra.mxu0 %v85
  %107 = vmatprep.subr.bf16.mxu0 0
  %108 = vmatpush1.bf16.msra.mxu0 %v86
  %109 = vmatprep.subr.bf16.mxu0 0
  %110 = vmatpush1.bf16.msra.mxu0 %v87
  %111 = vmatprep.subr.bf16.mxu0 0
  %112 = vmatpush1.bf16.msra.mxu0 %v88
  %113 = vmatprep.subr.bf16.mxu0 0
  %114 = vmatpush1.bf16.msra.mxu0 0
  %115 = vmatprep.subr.bf16.mxu0 0
  %116 = vmatpush1.bf16.msra.mxu0 0
  %117 = vmatprep.subr.bf16.mxu0 0
  %118 = vmatpush1.bf16.msra.mxu0 0
  %119 = vmatprep.subr.bf16.mxu0 0
  %120 = vmatpush1.bf16.msra.mxu0 0
  %121 = vmatprep.subr.bf16.mxu0 0
  %122 = vmatpush1.bf16.msra.mxu0 0
  %123 = vmatprep.subr.bf16.mxu0 0
  %124 = vmatpush1.bf16.msra.mxu0 0
  %125 = vmatprep.subr.bf16.mxu0 0
  %126 = vmatpush1.bf16.msra.mxu0 0
  %127 = vmatprep.subr.bf16.mxu0 0
  %128 = vmatpush1.bf16.msra.mxu0 0
  %129 = vmatprep.mubr.bf16.mxu0 0
  %130 = vmatmul.mubr.bf16.gmra.mrb[0].mxu0 %v22
  %v131 = vpop.f32.mrb[0].mxu0
  %v132 = vadd.f32 %v47, %v131
  %v133 = vpop.f32.mrb[0].mxu0
  %v134 = vpop.f32.mrb[0].mxu0
  %v135 = vadd.f32 %v47, %v134
  %v136 = vpop.f32.mrb[0].mxu0
  %137 = vmatprep.mubr.bf16.mxu0 0
  %138 = vmatmul.mubr.bf16.gmra.mrb[0].mxu0 %v23
  %v139 = vpop.f32.mrb[0].mxu0
  %v140 = vadd.f32 %v47, %v139
  %v141 = vpop.f32.mrb[0].mxu0
  %v142 = vpop.f32.mrb[0].mxu0
  %v143 = vadd.f32 %v47, %v142
  %v144 = vpop.f32.mrb[0].mxu0
  %145 = vmatprep.mubr.bf16.mxu0 0
  %146 = vmatmul.mubr.bf16.gmra.mrb[0].mxu0 %v24
  %v147 = vpop.f32.mrb[0].mxu0
  %v148 = vadd.f32 %v47, %v147
  %v149 = vpop.f32.mrb[0].mxu0
  %v150 = vpop.f32.mrb[0].mxu0
  %v151 = vadd.f32 %v47, %v150
  %v152 = vpop.f32.mrb[0].mxu0
  %153 = vmatprep.mubr.bf16.mxu0 0
  %154 = vmatmul.mubr.bf16.gmra.mrb[0].mxu0 %v25
  %v155 = vpop.f32.mrb[0].mxu0
  %v156 = vadd.f32 %v47, %v155
  %v157 = vpop.f32.mrb[0].mxu0
  %v158 = vpop.f32.mrb[0].mxu0
  %v159 = vpop.f32.mrb[0].mxu0
  %160 = vdwg.mxu0
  %v161 = vmax.f32 %v132, 0.0
  %v162 = vmax.f32 %v135, 0.0
  %v163 = vmax.f32 %v140, 0.0
  %v164 = vmax.f32 %v143, 0.0
  %v165 = vmax.f32 %v148, 0.0
  %v166 = vmax.f32 %v151, 0.0
  %v167 = vmax.f32 %v156, 0.0
  %vm168 = vcmask 523264
  %169 = vst.msk [vmem:[%s3] sm:$0xff] %vm168, %v161
  %170 = vst.msk [vmem:[%s3 + $0x8] sm:$0xff] %vm168, %v162
  %171 = vst.msk [vmem:[%s3 + $0x10] sm:$0xff] %vm168, %v163
  %172 = vst.msk [vmem:[%s3 + $0x18] sm:$0xff] %vm168, %v164
  %173 = vst.msk [vmem:[%s3 + $0x20] sm:$0xff] %vm168, %v165
  %174 = vst.msk [vmem:[%s3 + $0x28] sm:$0xff] %vm168, %v166
  %175 = vst.msk [vmem:[%s3 + $0x30] sm:$0xff] %vm168, %v167
  // Predicated region
  $region14: #{hysn_forward.3} parent=0 // pred_check
    _
  $region15: #{hysn_forward.3} parent=0 // pred_check_branch
    %177 = sbr.rel (0) target = $region17
  $region16: #{hysn_forward.3} parent=0 // pred_region
    _
  $region17: #{hysn_forward.3} parent=0 // pred_fallthru
    _
  // Predicated region
  $region18: #{hysn_forward.3} parent=0 // pred_check
    _
  $region19: #{hysn_forward.3} parent=0 // pred_check_branch
    %179 = sbr.rel (0) target = $region21
  $region20: #{hysn_forward.3} parent=0 // pred_region
    _
  $region21: #{hysn_forward.3} parent=0 // pred_fallthru
    _

</llo_original>
